<compile_context>
chip_gen: v7x
topology: tpu7x:2x2x1
jax: 0.10.0
libtpu: 0.0.40
codegen_flags: <defaults>
</compile_context>

<pallas_src>
import functools

import jax
import jax.numpy as jnp
from jax.experimental import pallas as pl
from jax.experimental.pallas import tpu as pltpu


# ---------------------------------------------------------------------------
# Kernels
# ---------------------------------------------------------------------------
def _conv_im2col_kernel(x_ref, w_ref, scale_ref, shift_ref,
                        y_ref, stats_ref, xp_ref, *, prenorm):
    """One image: [optional BN+ReLU of the input] -> 3x3 conv -> partial stats.

    x_ref     : (1, H, W, Cin)   f32   input block (raw x, or pre-BN conv1 out)
    w_ref     : (9*Cin, Cout)    bf16  conv weights, taps flattened row-major
    scale_ref : (1, Cin)         f32   per-channel BN scale for the *input*
    shift_ref : (1, Cin)         f32   per-channel BN shift for the *input*
    y_ref     : (1, H, W, Cout)  f32   pre-BN conv output
    stats_ref : (1, 2, Cout)     f32   per-image [sum, sum_of_squares]
    xp_ref    : (H+2, W+2, Cin)  f32   VMEM scratch (halo)
    """
    H, W, Cin = x_ref.shape[1], x_ref.shape[2], x_ref.shape[3]
    Cout = w_ref.shape[1]

    xv = x_ref[0]                                     # (H, W, Cin) f32
    if prenorm:
        # Fused BatchNorm + ReLU of the previous stage (f32 VPU math).
        s = scale_ref[...].reshape(1, 1, Cin)
        b = shift_ref[...].reshape(1, 1, Cin)
        xv = jnp.maximum(xv * s + b, 0.0)

    # Halo handled entirely in VMEM: zero scratch, write interior.  The border
    # stays zero, which is exactly the conv's "padding=1" (and, for the fused
    # prenorm path, the correct zero-padding of the post-ReLU activation).
    xp_ref[...] = jnp.zeros_like(xp_ref)
    xp_ref[1:H + 1, 1:W + 1, :] = xv
    xp = xp_ref[...]

    # im2col: nine shifted (H, W, Cin) windows -> one (H*W, 9*Cin) slab.
    cols = [xp[dy:dy + H, dx:dx + W, :] for dy in range(3) for dx in range(3)]
    patches = jnp.concatenate(cols, axis=-1).reshape(H * W, 9 * Cin)

    # Single MXU matmul, bf16 operands, f32 accumulation.
    acc = jnp.dot(patches.astype(jnp.bfloat16), w_ref[...],
                  preferred_element_type=jnp.float32)          # (H*W, Cout)

    # Single-pass partial BN statistics for this image (reduced globally in
    # the wrapper so the normalization stays mathematically global).
    ssum = jnp.sum(acc, axis=0, keepdims=True)                 # (1, Cout)
    ssq = jnp.sum(acc * acc, axis=0, keepdims=True)            # (1, Cout)
    stats_ref[0] = jnp.concatenate([ssum, ssq], axis=0)        # (2, Cout)

    y_ref[0] = acc.reshape(H, W, Cout)


def _norm_relu_kernel(y_ref, scale_ref, shift_ref, o_ref):
    """Final BatchNorm + ReLU (elementwise, f32)."""
    C = y_ref.shape[3]
    s = scale_ref[...].reshape(1, 1, C)
    b = shift_ref[...].reshape(1, 1, C)
    o_ref[0] = jnp.maximum(y_ref[0] * s + b, 0.0)


# ---------------------------------------------------------------------------
# pallas_call wrappers
# ---------------------------------------------------------------------------
def _conv_call(x, w_flat, scale, shift, *, prenorm):
    """Per-image pipelined conv stage: returns (pre-BN conv out, partial stats)."""
    N, H, W, Cin = x.shape
    KCin, Cout = w_flat.shape
    kernel = functools.partial(_conv_im2col_kernel, prenorm=prenorm)
    return pl.pallas_call(
        kernel,
        out_shape=(
            jax.ShapeDtypeStruct((N, H, W, Cout), jnp.float32),
            jax.ShapeDtypeStruct((N, 2, Cout), jnp.float32),
        ),
        grid_spec=pltpu.PrefetchScalarGridSpec(
            num_scalar_prefetch=0,
            grid=(N,),
            in_specs=[
                pl.BlockSpec((1, H, W, Cin), lambda i: (i, 0, 0, 0)),
                pl.BlockSpec((KCin, Cout), lambda i: (0, 0)),
                pl.BlockSpec((1, Cin), lambda i: (0, 0)),
                pl.BlockSpec((1, Cin), lambda i: (0, 0)),
            ],
            out_specs=[
                pl.BlockSpec((1, H, W, Cout), lambda i: (i, 0, 0, 0)),
                pl.BlockSpec((1, 2, Cout), lambda i: (i, 0, 0)),
            ],
            scratch_shapes=[pltpu.VMEM((H + 2, W + 2, Cin), jnp.float32)],
        ),
        compiler_params=pltpu.CompilerParams(
            dimension_semantics=("parallel",)),
    )(x, w_flat, scale, shift)


def _norm_relu_call(y, scale, shift):
    N, H, W, C = y.shape
    return pl.pallas_call(
        _norm_relu_kernel,
        out_shape=jax.ShapeDtypeStruct((N, H, W, C), jnp.float32),
        grid_spec=pltpu.PrefetchScalarGridSpec(
            num_scalar_prefetch=0,
            grid=(N,),
            in_specs=[
                pl.BlockSpec((1, H, W, C), lambda i: (i, 0, 0, 0)),
                pl.BlockSpec((1, C), lambda i: (0, 0)),
                pl.BlockSpec((1, C), lambda i: (0, 0)),
            ],
            out_specs=pl.BlockSpec((1, H, W, C), lambda i: (i, 0, 0, 0)),
        ),
        compiler_params=pltpu.CompilerParams(
            dimension_semantics=("parallel",)),
    )(y, scale, shift)


def _bn_affine(stats, gamma, beta, count, eps=1e-5):
    """Global (training-mode, biased) BN stats -> per-channel scale/shift."""
    s = jnp.sum(stats[:, 0, :], axis=0)
    sq = jnp.sum(stats[:, 1, :], axis=0)
    mean = s / count
    var = jnp.maximum(sq / count - mean * mean, 0.0)
    scale = gamma * jax.lax.rsqrt(var + eps)
    shift = beta - mean * scale
    return scale, shift


# ---------------------------------------------------------------------------
# Public module
# ---------------------------------------------------------------------------
def double_conv(x_nchw, params):
    """Equivalent of DoubleConv.forward on an NCHW input (training-mode BN)."""
    x = jnp.transpose(x_nchw, (0, 2, 3, 1)).astype(jnp.float32)   # NCHW -> NHWC
    N, H, W, Cin = x.shape
    Cmid = params["w1"].shape[-1]
    Cout = params["w2"].shape[-1]
    count = N * H * W

    w1 = params["w1"].reshape(9 * Cin, Cmid).astype(jnp.bfloat16)
    w2 = params["w2"].reshape(9 * Cmid, Cout).astype(jnp.bfloat16)

    # Stage 1: conv1 (+ partial BN1 stats).  Dummy scale/shift (unused).
    y1, st1 = _conv_call(x, w1,
                         jnp.ones((1, Cin), jnp.float32),
                         jnp.zeros((1, Cin), jnp.float32),
                         prenorm=False)
    s1, b1 = _bn_affine(st1, params["g1"], params["b1"], count)

    # Stage 2: BN1+ReLU fused into conv2 (+ partial BN2 stats).
    y2, st2 = _conv_call(y1, w2, s1.reshape(1, Cmid), b1.reshape(1, Cmid),
                         prenorm=True)
    s2, b2 = _bn_affine(st2, params["g2"], params["b2"], count)

    # Final BN2 + ReLU.
    out = _norm_relu_call(y2, s2.reshape(1, Cout), b2.reshape(1, Cout))
    return jnp.transpose(out, (0, 3, 1, 2))                      # NHWC -> NCHW


# ---------------------------------------------------------------------------
# Pure-JAX reference (same math: bf16 conv operands, f32 accum, batch-stat BN)
# ---------------------------------------------------------------------------
def _reference(x_nchw, params, eps=1e-5):
    def block(x, w9, g, b):
        Cin, Cout = w9.shape[1], w9.shape[2]
        wk = w9.reshape(3, 3, Cin, Cout).astype(jnp.bfloat16)    # HWIO
        y = jax.lax.conv_general_dilated(
            x.astype(jnp.bfloat16), wk, (1, 1), ((1, 1), (1, 1)),
            dimension_numbers=("NHWC", "HWIO", "NHWC"),
            preferred_element_type=jnp.float32)
        mean = jnp.mean(y, axis=(0, 1, 2))
        var = jnp.mean((y - mean) ** 2, axis=(0, 1, 2))
        h = (y - mean) * jax.lax.rsqrt(var + eps) * g + b
        return jnp.maximum(h, 0.0)

    x = jnp.transpose(x_nchw, (0, 2, 3, 1)).astype(jnp.float32)
    h = block(x, params["w1"], params["g1"], params["b1"])
    o = block(h, params["w2"], params["g2"], params["b2"])
    return jnp.transpose(o, (0, 3, 1, 2))


def init_params(key, in_channels, out_channels, mid_channels=None):
    if not mid_channels:
        mid_channels = out_channels
    k1, k2 = jax.random.split(key)
    # Weights in (kh*kw, Cin, Cout) layout (torch (Cout,Cin,3,3) transposed).
    w1 = 0.1 * jax.random.normal(k1, (9, in_channels, mid_channels), jnp.float32)
    w2 = 0.1 * jax.random.normal(k2, (9, mid_channels, out_channels), jnp.float32)
    return {
        "w1": w1,
        "g1": jnp.ones((mid_channels,), jnp.float32),    # BN gamma init
        "b1": jnp.zeros((mid_channels,), jnp.float32),   # BN beta init
        "w2": w2,
        "g2": jnp.ones((out_channels,), jnp.float32),
        "b2": jnp.zeros((out_channels,), jnp.float32),
    }


if __name__ == "__main__":
    # TODO(synk): eval-mode BatchNorm (running statistics) is not modeled; this
    # matches a freshly-constructed nn.BatchNorm2d forward (training-mode stats).
    key = jax.random.PRNGKey(0)
    kx, kp = jax.random.split(key)

    N, Cin, H, W = 2, 4, 16, 16
    Cout = 8
    x = jax.random.normal(kx, (N, Cin, H, W), jnp.float32)       # NCHW like torch
    params = init_params(kp, Cin, Cout)

    out = jax.jit(double_conv)(x, params)
    out = jax.block_until_ready(out)

    ref = _reference(x, params)
    assert out.shape == (N, Cout, H, W)
    assert jnp.allclose(out, ref, atol=1e-2, rtol=1e-2), "mismatch vs JAX reference"

    print("KERNEL_OK")
</pallas_src>

<mosaic_0001>
module attributes {stable_mosaic.version = 11 : i64} {
  func.func @_conv_im2col_kernel(%arg0: i32, %arg1: memref<1x16x16x4xf32, #tpu.memory_space<vmem>>, %arg2: memref<36x8xbf16, #tpu.memory_space<vmem>>, %arg3: memref<1x4xf32, #tpu.memory_space<vmem>>, %arg4: memref<1x4xf32, #tpu.memory_space<vmem>>, %arg5: memref<1x16x16x8xf32, #tpu.memory_space<vmem>>, %arg6: memref<1x2x8xf32, #tpu.memory_space<vmem>>, %arg7: memref<18x18x4xf32, #tpu.memory_space<vmem>>) attributes {dimension_semantics = [#tpu.dimension_semantics<parallel>], iteration_bounds = array<i64: 2>, scalar_prefetch = 0 : i64, scratch_operands = 1 : i64, tpu.core_type = #tpu.core_type<tc>, window_params = [{transform_indices = @transform_0, window_bounds = array<i64: 1, 16, 16, 4>}, {pipeline_mode = #tpu.pipeline_mode<synchronous>, transform_indices = @transform_1, window_bounds = array<i64: 36, 8>}, {pipeline_mode = #tpu.pipeline_mode<synchronous>, transform_indices = @transform_2, window_bounds = array<i64: 1, 4>}, {pipeline_mode = #tpu.pipeline_mode<synchronous>, transform_indices = @transform_3, window_bounds = array<i64: 1, 4>}, {transform_indices = @transform_4, window_bounds = array<i64: 1, 16, 16, 8>}, {transform_indices = @transform_5, window_bounds = array<i64: 1, 2, 8>}]} {
    %c0 = arith.constant 0 : index
    %c0_0 = arith.constant 0 : index
    %c0_1 = arith.constant 0 : index
    %c0_2 = arith.constant 0 : index
    %0 = vector.load %arg1[%c0, %c0_0, %c0_1, %c0_2] : memref<1x16x16x4xf32, #tpu.memory_space<vmem>>, vector<1x16x16x4xf32>
    %1 = vector.shape_cast %0 : vector<1x16x16x4xf32> to vector<16x16x4xf32>
    %cst = arith.constant 0.000000e+00 : f32
    %2 = vector.broadcast %cst : f32 to vector<18x18x4xf32>
    %c0_3 = arith.constant 0 : index
    %c0_4 = arith.constant 0 : index
    %c0_5 = arith.constant 0 : index
    %3 = vector.load %arg7[%c0_3, %c0_4, %c0_5] : memref<18x18x4xf32, #tpu.memory_space<vmem>>, vector<18x18x4xf32>
    tpu.vector_store %arg7[%c0_3, %c0_4, %c0_5], %2 {strides = array<i32>} : memref<18x18x4xf32, #tpu.memory_space<vmem>>, vector<18x18x4xf32>,
    %c1 = arith.constant 1 : index
    %c1_6 = arith.constant 1 : index
    %c0_7 = arith.constant 0 : index
    %4 = vector.load %arg7[%c1, %c1_6, %c0_7] : memref<18x18x4xf32, #tpu.memory_space<vmem>>, vector<16x16x4xf32>
    tpu.vector_store %arg7[%c1, %c1_6, %c0_7], %1 {strides = array<i32>} : memref<18x18x4xf32, #tpu.memory_space<vmem>>, vector<16x16x4xf32>,
    %c0_8 = arith.constant 0 : index
    %c0_9 = arith.constant 0 : index
    %c0_10 = arith.constant 0 : index
    %5 = vector.load %arg7[%c0_8, %c0_9, %c0_10] : memref<18x18x4xf32, #tpu.memory_space<vmem>>, vector<18x18x4xf32>
    %6 = vector.extract_strided_slice %5 {offsets = [0, 0, 0], sizes = [16, 16, 4], strides = [1, 1, 1]} : vector<18x18x4xf32> to vector<16x16x4xf32>
    %7 = vector.extract_strided_slice %5 {offsets = [0, 1, 0], sizes = [16, 16, 4], strides = [1, 1, 1]} : vector<18x18x4xf32> to vector<16x16x4xf32>
    %8 = vector.extract_strided_slice %5 {offsets = [0, 2, 0], sizes = [16, 16, 4], strides = [1, 1, 1]} : vector<18x18x4xf32> to vector<16x16x4xf32>
    %9 = vector.extract_strided_slice %5 {offsets = [1, 0, 0], sizes = [16, 16, 4], strides = [1, 1, 1]} : vector<18x18x4xf32> to vector<16x16x4xf32>
    %10 = vector.extract_strided_slice %5 {offsets = [1, 1, 0], sizes = [16, 16, 4], strides = [1, 1, 1]} : vector<18x18x4xf32> to vector<16x16x4xf32>
    %11 = vector.extract_strided_slice %5 {offsets = [1, 2, 0], sizes = [16, 16, 4], strides = [1, 1, 1]} : vector<18x18x4xf32> to vector<16x16x4xf32>
    %12 = vector.extract_strided_slice %5 {offsets = [2, 0, 0], sizes = [16, 16, 4], strides = [1, 1, 1]} : vector<18x18x4xf32> to vector<16x16x4xf32>
    %13 = vector.extract_strided_slice %5 {offsets = [2, 1, 0], sizes = [16, 16, 4], strides = [1, 1, 1]} : vector<18x18x4xf32> to vector<16x16x4xf32>
    %14 = vector.extract_strided_slice %5 {offsets = [2, 2, 0], sizes = [16, 16, 4], strides = [1, 1, 1]} : vector<18x18x4xf32> to vector<16x16x4xf32>
    %15 = tpu.concatenate %6, %7, %8, %9, %10, %11, %12, %13, %14 in 2 : vector<16x16x4xf32>, vector<16x16x4xf32>, vector<16x16x4xf32>, vector<16x16x4xf32>, vector<16x16x4xf32>, vector<16x16x4xf32>, vector<16x16x4xf32>, vector<16x16x4xf32>, vector<16x16x4xf32> -> vector<16x16x36xf32>
    %16 = vector.shape_cast %15 : vector<16x16x36xf32> to vector<256x36xf32>
    %17 = arith.truncf %16 : vector<256x36xf32> to vector<256x36xbf16>
    %c0_11 = arith.constant 0 : index
    %c0_12 = arith.constant 0 : index
    %18 = vector.load %arg2[%c0_11, %c0_12] : memref<36x8xbf16, #tpu.memory_space<vmem>>, vector<36x8xbf16>
    %cst_13 = arith.constant dense<0.000000e+00> : vector<256x8xf32>
    %19 = tpu.matmul %17, %18, %cst_13 {dimension_numbers = #tpu.dot_dimension_numbers<[1], [0], [0], [1], [0, 0, 1, 1], [], []>} : vector<256x36xbf16>, vector<36x8xbf16>, vector<256x8xf32> -> vector<256x8xf32>
    %cst_14 = arith.constant dense<0.000000e+00> : vector<8xf32>
    %20 = vector.multi_reduction <add>, %19, %cst_14 [0] : vector<256x8xf32> to vector<8xf32>
    %21 = vector.shape_cast %20 : vector<8xf32> to vector<1x8xf32>
    %22 = arith.mulf %19, %19 : vector<256x8xf32>
    %cst_15 = arith.constant dense<0.000000e+00> : vector<8xf32>
    %23 = vector.multi_reduction <add>, %22, %cst_15 [0] : vector<256x8xf32> to vector<8xf32>
    %24 = vector.shape_cast %23 : vector<8xf32> to vector<1x8xf32>
    %25 = tpu.concatenate %21, %24 in 0 : vector<1x8xf32>, vector<1x8xf32> -> vector<2x8xf32>
    %c0_16 = arith.constant 0 : index
    %c0_17 = arith.constant 0 : index
    %c0_18 = arith.constant 0 : index
    %26 = vector.load %arg6[%c0_16, %c0_17, %c0_18] : memref<1x2x8xf32, #tpu.memory_space<vmem>>, vector<1x2x8xf32>
    %27 = vector.shape_cast %26 : vector<1x2x8xf32> to vector<2x8xf32>
    %28 = vector.shape_cast %25 : vector<2x8xf32> to vector<1x2x8xf32>
    tpu.vector_store %arg6[%c0_16, %c0_17, %c0_18], %28 {strides = array<i32>} : memref<1x2x8xf32, #tpu.memory_space<vmem>>, vector<1x2x8xf32>,
    %29 = vector.shape_cast %19 : vector<256x8xf32> to vector<16x16x8xf32>
    %c0_19 = arith.constant 0 : index
    %c0_20 = arith.constant 0 : index
    %c0_21 = arith.constant 0 : index
    %c0_22 = arith.constant 0 : index
    %30 = vector.load %arg5[%c0_19, %c0_20, %c0_21, %c0_22] : memref<1x16x16x8xf32, #tpu.memory_space<vmem>>, vector<1x16x16x8xf32>
    %31 = vector.shape_cast %30 : vector<1x16x16x8xf32> to vector<16x16x8xf32>
    %32 = vector.shape_cast %29 : vector<16x16x8xf32> to vector<1x16x16x8xf32>
    tpu.vector_store %arg5[%c0_19, %c0_20, %c0_21, %c0_22], %32 {strides = array<i32>} : memref<1x16x16x8xf32, #tpu.memory_space<vmem>>, vector<1x16x16x8xf32>,
    return
  }
  func.func @transform_0(%arg0: i32) -> (i32, i32, i32, i32) {
    %c0_i32 = arith.constant 0 : i32
    %c0_i32_0 = arith.constant 0 : i32
    %c0_i32_1 = arith.constant 0 : i32
    %c0_i32_2 = arith.constant 0 : i32
    return %arg0, %c0_i32, %c0_i32_0, %c0_i32_1 : i32, i32, i32, i32
  }
  func.func @transform_1(%arg0: i32) -> (i32, i32) {
    %c0_i32 = arith.constant 0 : i32
    %c0_i32_0 = arith.constant 0 : i32
    %c0_i32_1 = arith.constant 0 : i32
    return %c0_i32, %c0_i32_0 : i32, i32
  }
  func.func @transform_2(%arg0: i32) -> (i32, i32) {
    %c0_i32 = arith.constant 0 : i32
    %c0_i32_0 = arith.constant 0 : i32
    %c0_i32_1 = arith.constant 0 : i32
    return %c0_i32, %c0_i32_0 : i32, i32
  }
  func.func @transform_3(%arg0: i32) -> (i32, i32) {
    %c0_i32 = arith.constant 0 : i32
    %c0_i32_0 = arith.constant 0 : i32
    %c0_i32_1 = arith.constant 0 : i32
    return %c0_i32, %c0_i32_0 : i32, i32
  }
  func.func @transform_4(%arg0: i32) -> (i32, i32, i32, i32) {
    %c0_i32 = arith.constant 0 : i32
    %c0_i32_0 = arith.constant 0 : i32
    %c0_i32_1 = arith.constant 0 : i32
    %c0_i32_2 = arith.constant 0 : i32
    return %arg0, %c0_i32, %c0_i32_0, %c0_i32_1 : i32, i32, i32, i32
  }
  func.func @transform_5(%arg0: i32) -> (i32, i32, i32) {
    %c0_i32 = arith.constant 0 : i32
    %c0_i32_0 = arith.constant 0 : i32
    %c0_i32_1 = arith.constant 0 : i32
    return %arg0, %c0_i32, %c0_i32_0 : i32, i32, i32
  }
}

module attributes {stable_mosaic.version = 11 : i64} {
  func.func @_conv_im2col_kernel(%arg0: i32, %arg1: memref<1x16x16x8xf32, #tpu.memory_space<vmem>>, %arg2: memref<72x8xbf16, #tpu.memory_space<vmem>>, %arg3: memref<1x8xf32, #tpu.memory_space<vmem>>, %arg4: memref<1x8xf32, #tpu.memory_space<vmem>>, %arg5: memref<1x16x16x8xf32, #tpu.memory_space<vmem>>, %arg6: memref<1x2x8xf32, #tpu.memory_space<vmem>>, %arg7: memref<18x18x8xf32, #tpu.memory_space<vmem>>) attributes {dimension_semantics = [#tpu.dimension_semantics<parallel>], iteration_bounds = array<i64: 2>, scalar_prefetch = 0 : i64, scratch_operands = 1 : i64, tpu.core_type = #tpu.core_type<tc>, window_params = [{transform_indices = @transform_0, window_bounds = array<i64: 1, 16, 16, 8>}, {pipeline_mode = #tpu.pipeline_mode<synchronous>, transform_indices = @transform_1, window_bounds = array<i64: 72, 8>}, {pipeline_mode = #tpu.pipeline_mode<synchronous>, transform_indices = @transform_2, window_bounds = array<i64: 1, 8>}, {pipeline_mode = #tpu.pipeline_mode<synchronous>, transform_indices = @transform_3, window_bounds = array<i64: 1, 8>}, {transform_indices = @transform_4, window_bounds = array<i64: 1, 16, 16, 8>}, {transform_indices = @transform_5, window_bounds = array<i64: 1, 2, 8>}]} {
    %c0 = arith.constant 0 : index
    %c0_0 = arith.constant 0 : index
    %c0_1 = arith.constant 0 : index
    %c0_2 = arith.constant 0 : index
    %0 = vector.load %arg1[%c0, %c0_0, %c0_1, %c0_2] : memref<1x16x16x8xf32, #tpu.memory_space<vmem>>, vector<1x16x16x8xf32>
    %1 = vector.shape_cast %0 : vector<1x16x16x8xf32> to vector<16x16x8xf32>
    %c0_3 = arith.constant 0 : index
    %c0_4 = arith.constant 0 : index
    %2 = vector.load %arg3[%c0_3, %c0_4] : memref<1x8xf32, #tpu.memory_space<vmem>>, vector<1x8xf32>
    %3 = vector.shape_cast %2 : vector<1x8xf32> to vector<1x1x8xf32>
    %c0_5 = arith.constant 0 : index
    %c0_6 = arith.constant 0 : index
    %4 = vector.load %arg4[%c0_5, %c0_6] : memref<1x8xf32, #tpu.memory_space<vmem>>, vector<1x8xf32>
    %5 = vector.shape_cast %4 : vector<1x8xf32> to vector<1x1x8xf32>
    %6 = vector.broadcast %3 : vector<1x1x8xf32> to vector<16x16x8xf32>
    %7 = arith.mulf %1, %6 : vector<16x16x8xf32>
    %8 = vector.broadcast %5 : vector<1x1x8xf32> to vector<16x16x8xf32>
    %9 = arith.addf %7, %8 : vector<16x16x8xf32>
    %cst = arith.constant 0.000000e+00 : f32
    %10 = vector.broadcast %cst : f32 to vector<16x16x8xf32>
    %11 = arith.maximumf %9, %10 : vector<16x16x8xf32>
    %cst_7 = arith.constant 0.000000e+00 : f32
    %12 = vector.broadcast %cst_7 : f32 to vector<18x18x8xf32>
    %c0_8 = arith.constant 0 : index
    %c0_9 = arith.constant 0 : index
    %c0_10 = arith.constant 0 : index
    %13 = vector.load %arg7[%c0_8, %c0_9, %c0_10] : memref<18x18x8xf32, #tpu.memory_space<vmem>>, vector<18x18x8xf32>
    tpu.vector_store %arg7[%c0_8, %c0_9, %c0_10], %12 {strides = array<i32>} : memref<18x18x8xf32, #tpu.memory_space<vmem>>, vector<18x18x8xf32>,
    %c1 = arith.constant 1 : index
    %c1_11 = arith.constant 1 : index
    %c0_12 = arith.constant 0 : index
    %14 = vector.load %arg7[%c1, %c1_11, %c0_12] : memref<18x18x8xf32, #tpu.memory_space<vmem>>, vector<16x16x8xf32>
    tpu.vector_store %arg7[%c1, %c1_11, %c0_12], %11 {strides = array<i32>} : memref<18x18x8xf32, #tpu.memory_space<vmem>>, vector<16x16x8xf32>,
    %c0_13 = arith.constant 0 : index
    %c0_14 = arith.constant 0 : index
    %c0_15 = arith.constant 0 : index
    %15 = vector.load %arg7[%c0_13, %c0_14, %c0_15] : memref<18x18x8xf32, #tpu.memory_space<vmem>>, vector<18x18x8xf32>
    %16 = vector.extract_strided_slice %15 {offsets = [0, 0, 0], sizes = [16, 16, 8], strides = [1, 1, 1]} : vector<18x18x8xf32> to vector<16x16x8xf32>
    %17 = vector.extract_strided_slice %15 {offsets = [0, 1, 0], sizes = [16, 16, 8], strides = [1, 1, 1]} : vector<18x18x8xf32> to vector<16x16x8xf32>
    %18 = vector.extract_strided_slice %15 {offsets = [0, 2, 0], sizes = [16, 16, 8], strides = [1, 1, 1]} : vector<18x18x8xf32> to vector<16x16x8xf32>
    %19 = vector.extract_strided_slice %15 {offsets = [1, 0, 0], sizes = [16, 16, 8], strides = [1, 1, 1]} : vector<18x18x8xf32> to vector<16x16x8xf32>
    %20 = vector.extract_strided_slice %15 {offsets = [1, 1, 0], sizes = [16, 16, 8], strides = [1, 1, 1]} : vector<18x18x8xf32> to vector<16x16x8xf32>
    %21 = vector.extract_strided_slice %15 {offsets = [1, 2, 0], sizes = [16, 16, 8], strides = [1, 1, 1]} : vector<18x18x8xf32> to vector<16x16x8xf32>
    %22 = vector.extract_strided_slice %15 {offsets = [2, 0, 0], sizes = [16, 16, 8], strides = [1, 1, 1]} : vector<18x18x8xf32> to vector<16x16x8xf32>
    %23 = vector.extract_strided_slice %15 {offsets = [2, 1, 0], sizes = [16, 16, 8], strides = [1, 1, 1]} : vector<18x18x8xf32> to vector<16x16x8xf32>
    %24 = vector.extract_strided_slice %15 {offsets = [2, 2, 0], sizes = [16, 16, 8], strides = [1, 1, 1]} : vector<18x18x8xf32> to vector<16x16x8xf32>
    %25 = tpu.concatenate %16, %17, %18, %19, %20, %21, %22, %23, %24 in 2 : vector<16x16x8xf32>, vector<16x16x8xf32>, vector<16x16x8xf32>, vector<16x16x8xf32>, vector<16x16x8xf32>, vector<16x16x8xf32>, vector<16x16x8xf32>, vector<16x16x8xf32>, vector<16x16x8xf32> -> vector<16x16x72xf32>
    %26 = vector.shape_cast %25 : vector<16x16x72xf32> to vector<256x72xf32>
    %27 = arith.truncf %26 : vector<256x72xf32> to vector<256x72xbf16>
    %c0_16 = arith.constant 0 : index
    %c0_17 = arith.constant 0 : index
    %28 = vector.load %arg2[%c0_16, %c0_17] : memref<72x8xbf16, #tpu.memory_space<vmem>>, vector<72x8xbf16>
    %cst_18 = arith.constant dense<0.000000e+00> : vector<256x8xf32>
    %29 = tpu.matmul %27, %28, %cst_18 {dimension_numbers = #tpu.dot_dimension_numbers<[1], [0], [0], [1], [0, 0, 1, 1], [], []>} : vector<256x72xbf16>, vector<72x8xbf16>, vector<256x8xf32> -> vector<256x8xf32>
    %cst_19 = arith.constant dense<0.000000e+00> : vector<8xf32>
    %30 = vector.multi_reduction <add>, %29, %cst_19 [0] : vector<256x8xf32> to vector<8xf32>
    %31 = vector.shape_cast %30 : vector<8xf32> to vector<1x8xf32>
    %32 = arith.mulf %29, %29 : vector<256x8xf32>
    %cst_20 = arith.constant dense<0.000000e+00> : vector<8xf32>
    %33 = vector.multi_reduction <add>, %32, %cst_20 [0] : vector<256x8xf32> to vector<8xf32>
    %34 = vector.shape_cast %33 : vector<8xf32> to vector<1x8xf32>
    %35 = tpu.concatenate %31, %34 in 0 : vector<1x8xf32>, vector<1x8xf32> -> vector<2x8xf32>
    %c0_21 = arith.constant 0 : index
    %c0_22 = arith.constant 0 : index
    %c0_23 = arith.constant 0 : index
    %36 = vector.load %arg6[%c0_21, %c0_22, %c0_23] : memref<1x2x8xf32, #tpu.memory_space<vmem>>, vector<1x2x8xf32>
    %37 = vector.shape_cast %36 : vector<1x2x8xf32> to vector<2x8xf32>
    %38 = vector.shape_cast %35 : vector<2x8xf32> to vector<1x2x8xf32>
    tpu.vector_store %arg6[%c0_21, %c0_22, %c0_23], %38 {strides = array<i32>} : memref<1x2x8xf32, #tpu.memory_space<vmem>>, vector<1x2x8xf32>,
    %39 = vector.shape_cast %29 : vector<256x8xf32> to vector<16x16x8xf32>
    %c0_24 = arith.constant 0 : index
    %c0_25 = arith.constant 0 : index
    %c0_26 = arith.constant 0 : index
    %c0_27 = arith.constant 0 : index
    %40 = vector.load %arg5[%c0_24, %c0_25, %c0_26, %c0_27] : memref<1x16x16x8xf32, #tpu.memory_space<vmem>>, vector<1x16x16x8xf32>
    %41 = vector.shape_cast %40 : vector<1x16x16x8xf32> to vector<16x16x8xf32>
    %42 = vector.shape_cast %39 : vector<16x16x8xf32> to vector<1x16x16x8xf32>
    tpu.vector_store %arg5[%c0_24, %c0_25, %c0_26, %c0_27], %42 {strides = array<i32>} : memref<1x16x16x8xf32, #tpu.memory_space<vmem>>, vector<1x16x16x8xf32>,
    return
  }
  func.func @transform_0(%arg0: i32) -> (i32, i32, i32, i32) {
    %c0_i32 = arith.constant 0 : i32
    %c0_i32_0 = arith.constant 0 : i32
    %c0_i32_1 = arith.constant 0 : i32
    %c0_i32_2 = arith.constant 0 : i32
    return %arg0, %c0_i32, %c0_i32_0, %c0_i32_1 : i32, i32, i32, i32
  }
  func.func @transform_1(%arg0: i32) -> (i32, i32) {
    %c0_i32 = arith.constant 0 : i32
    %c0_i32_0 = arith.constant 0 : i32
    %c0_i32_1 = arith.constant 0 : i32
    return %c0_i32, %c0_i32_0 : i32, i32
  }
  func.func @transform_2(%arg0: i32) -> (i32, i32) {
    %c0_i32 = arith.constant 0 : i32
    %c0_i32_0 = arith.constant 0 : i32
    %c0_i32_1 = arith.constant 0 : i32
    return %c0_i32, %c0_i32_0 : i32, i32
  }
  func.func @transform_3(%arg0: i32) -> (i32, i32) {
    %c0_i32 = arith.constant 0 : i32
    %c0_i32_0 = arith.constant 0 : i32
    %c0_i32_1 = arith.constant 0 : i32
    return %c0_i32, %c0_i32_0 : i32, i32
  }
  func.func @transform_4(%arg0: i32) -> (i32, i32, i32, i32) {
    %c0_i32 = arith.constant 0 : i32
    %c0_i32_0 = arith.constant 0 : i32
    %c0_i32_1 = arith.constant 0 : i32
    %c0_i32_2 = arith.constant 0 : i32
    return %arg0, %c0_i32, %c0_i32_0, %c0_i32_1 : i32, i32, i32, i32
  }
  func.func @transform_5(%arg0: i32) -> (i32, i32, i32) {
    %c0_i32 = arith.constant 0 : i32
    %c0_i32_0 = arith.constant 0 : i32
    %c0_i32_1 = arith.constant 0 : i32
    return %arg0, %c0_i32, %c0_i32_0 : i32, i32, i32
  }
}

module attributes {stable_mosaic.version = 11 : i64} {
  func.func @_norm_relu_kernel(%arg0: i32, %arg1: memref<1x16x16x8xf32, #tpu.memory_space<vmem>>, %arg2: memref<1x8xf32, #tpu.memory_space<vmem>>, %arg3: memref<1x8xf32, #tpu.memory_space<vmem>>, %arg4: memref<1x16x16x8xf32, #tpu.memory_space<vmem>>) attributes {dimension_semantics = [#tpu.dimension_semantics<parallel>], iteration_bounds = array<i64: 2>, scalar_prefetch = 0 : i64, scratch_operands = 0 : i64, tpu.core_type = #tpu.core_type<tc>, window_params = [{transform_indices = @transform_0, window_bounds = array<i64: 1, 16, 16, 8>}, {pipeline_mode = #tpu.pipeline_mode<synchronous>, transform_indices = @transform_1, window_bounds = array<i64: 1, 8>}, {pipeline_mode = #tpu.pipeline_mode<synchronous>, transform_indices = @transform_2, window_bounds = array<i64: 1, 8>}, {transform_indices = @transform_3, window_bounds = array<i64: 1, 16, 16, 8>}]} {
    %c0 = arith.constant 0 : index
    %c0_0 = arith.constant 0 : index
    %0 = vector.load %arg2[%c0, %c0_0] : memref<1x8xf32, #tpu.memory_space<vmem>>, vector<1x8xf32>
    %1 = vector.shape_cast %0 : vector<1x8xf32> to vector<1x1x8xf32>
    %c0_1 = arith.constant 0 : index
    %c0_2 = arith.constant 0 : index
    %2 = vector.load %arg3[%c0_1, %c0_2] : memref<1x8xf32, #tpu.memory_space<vmem>>, vector<1x8xf32>
    %3 = vector.shape_cast %2 : vector<1x8xf32> to vector<1x1x8xf32>
    %c0_3 = arith.constant 0 : index
    %c0_4 = arith.constant 0 : index
    %c0_5 = arith.constant 0 : index
    %c0_6 = arith.constant 0 : index
    %4 = vector.load %arg1[%c0_3, %c0_4, %c0_5, %c0_6] : memref<1x16x16x8xf32, #tpu.memory_space<vmem>>, vector<1x16x16x8xf32>
    %5 = vector.shape_cast %4 : vector<1x16x16x8xf32> to vector<16x16x8xf32>
    %6 = vector.broadcast %1 : vector<1x1x8xf32> to vector<16x16x8xf32>
    %7 = arith.mulf %5, %6 : vector<16x16x8xf32>
    %8 = vector.broadcast %3 : vector<1x1x8xf32> to vector<16x16x8xf32>
    %9 = arith.addf %7, %8 : vector<16x16x8xf32>
    %cst = arith.constant 0.000000e+00 : f32
    %10 = vector.broadcast %cst : f32 to vector<16x16x8xf32>
    %11 = arith.maximumf %9, %10 : vector<16x16x8xf32>
    %c0_7 = arith.constant 0 : index
    %c0_8 = arith.constant 0 : index
    %c0_9 = arith.constant 0 : index
    %c0_10 = arith.constant 0 : index
    %12 = vector.load %arg4[%c0_7, %c0_8, %c0_9, %c0_10] : memref<1x16x16x8xf32, #tpu.memory_space<vmem>>, vector<1x16x16x8xf32>
    %13 = vector.shape_cast %12 : vector<1x16x16x8xf32> to vector<16x16x8xf32>
    %14 = vector.shape_cast %11 : vector<16x16x8xf32> to vector<1x16x16x8xf32>
    tpu.vector_store %arg4[%c0_7, %c0_8, %c0_9, %c0_10], %14 {strides = array<i32>} : memref<1x16x16x8xf32, #tpu.memory_space<vmem>>, vector<1x16x16x8xf32>,
    return
  }
  func.func @transform_0(%arg0: i32) -> (i32, i32, i32, i32) {
    %c0_i32 = arith.constant 0 : i32
    %c0_i32_0 = arith.constant 0 : i32
    %c0_i32_1 = arith.constant 0 : i32
    %c0_i32_2 = arith.constant 0 : i32
    return %arg0, %c0_i32, %c0_i32_0, %c0_i32_1 : i32, i32, i32, i32
  }
  func.func @transform_1(%arg0: i32) -> (i32, i32) {
    %c0_i32 = arith.constant 0 : i32
    %c0_i32_0 = arith.constant 0 : i32
    %c0_i32_1 = arith.constant 0 : i32
    return %c0_i32, %c0_i32_0 : i32, i32
  }
  func.func @transform_2(%arg0: i32) -> (i32, i32) {
    %c0_i32 = arith.constant 0 : i32
    %c0_i32_0 = arith.constant 0 : i32
    %c0_i32_1 = arith.constant 0 : i32
    return %c0_i32, %c0_i32_0 : i32, i32
  }
  func.func @transform_3(%arg0: i32) -> (i32, i32, i32, i32) {
    %c0_i32 = arith.constant 0 : i32
    %c0_i32_0 = arith.constant 0 : i32
    %c0_i32_1 = arith.constant 0 : i32
    %c0_i32_2 = arith.constant 0 : i32
    return %arg0, %c0_i32, %c0_i32_0, %c0_i32_1 : i32, i32, i32, i32
  }
}

</mosaic_0001>

<llo_original>
// kernel: double_conv.5
$region0: #{double_conv.5}
  #allocation0 [shape = 'u32[]', space=smem, size = 0x4, offset = 0x4, fixed_abs, tag = 'smem constant byte address 0x4 - core index']
  #allocation1 [shape = 'u32[144,128]{1,0:T(1,128)}', space=vmem, size = 0x12000, scoped, tag = 'internal scratch']
  %s0 = inlined_call_operand.vmem [shape: f32[2,16,16,8], index: 0, kind: input, shape index: {}]
  %s1 = inlined_call_operand.vmem [shape: f32[1,8], index: 1, kind: input, shape index: {}]
  %s2 = inlined_call_operand.vmem [shape: f32[1,8], index: 2, kind: input, shape index: {}]
  %s3 = inlined_call_operand.vmem [shape: f32[2,16,16,8], index: 3, kind: output, shape index: {}]
  %s4 = sld [smem:[#allocation0]]
  $region45: #{double_conv.5} parent=0
    _
  %s6 = ssub.s32 1, %s4
  %s7 = scalar_select 0, %s6, %s4
  loop: start=0, step=1, limit=4
  $region2: #{double_conv.5} parent=0 // loop_pre_header
    _
  $region3: #{double_conv.5} parent=0 // loop_header
    %s9 = sphi 0, %s13
    %p10 = scmp.ge.s32.totalorder %s9, 4
    %s19 = sphi 0, %s21
    %s22 = sphi 0, %s19
    %s23 = sphi 0, %s22
    %s39 = sphi 0, %s23
    %s43 = sphi 0, %s43
    %s45 = sphi 0, %s43
    %s46 = sphi 0, %s45
    %s60 = sphi 0, %s46
    %s64 = sphi 0, %s64
    %s66 = sphi 0, %s64
    %s67 = sphi 0, %s66
    %s81 = sphi 0, %s67
    %s87 = sphi 0, %s89
    %s90 = sphi 0, %s87
    %s91 = sphi 0, %s90
    %s107 = sphi 0, %s91
  $region4: #{double_conv.5} parent=0 // loop_header_branch
    %12 = sbr.rel (%p10) target = $region8
  $region5: #{double_conv.5} parent=0 // loop_body
    %s14 = ssub.s32 %s9, 1
    %s15 = ssub.s32 %s9, 2
    %s16 = sadd.s32 %s9, 1
    %s17 = ssub.s32 %s9, %s16
    %p18 = scmp.eq.s32.totalorder %s17, 0
    %s20 = sadd.s32 %s19, 1
    %s21 = scalar_select %p18, %s19, %s20
    %p24 = pneg %p18
    %p25 = scmp.eq.s32.totalorder %s9, 1
    %p26 = por %p24, %p25
    %p27 = scmp.ne.s32.totalorder %s19, %s22
    %p28 = scmp.eq.s32.totalorder %s9, 0
    %p29 = por %p27, %p28
    %p30 = scmp.ne.s32.totalorder %s19, %s22
    %p31 = scmp.eq.s32.totalorder %s14, 1
    %p32 = por %p30, %p31
    %p33 = scmp.ne.s32.totalorder %s22, %s23
    %p34 = scmp.eq.s32.totalorder %s14, 0
    %p35 = por %p33, %p34
    %p36 = scmp.ne.s32.totalorder %s22, %s23
    %p37 = scmp.eq.s32.totalorder %s15, 1
    %p38 = por %p36, %p37
    %p40 = scmp.ne.s32.totalorder %s23, %s39
    %p41 = scmp.eq.s32.totalorder %s15, 0
    %p42 = por %p40, %p41
    %s44 = sadd.s32 %s43, 1
    %p47 = scmp.eq.s32.totalorder %s9, 1
    %p48 = scmp.ne.s32.totalorder %s43, %s45
    %p49 = scmp.eq.s32.totalorder %s9, 0
    %p50 = por %p48, %p49
    %p51 = scmp.ne.s32.totalorder %s43, %s45
    %p52 = scmp.eq.s32.totalorder %s14, 1
    %p53 = por %p51, %p52
    %p54 = scmp.ne.s32.totalorder %s45, %s46
    %p55 = scmp.eq.s32.totalorder %s14, 0
    %p56 = por %p54, %p55
    %p57 = scmp.ne.s32.totalorder %s45, %s46
    %p58 = scmp.eq.s32.totalorder %s15, 1
    %p59 = por %p57, %p58
    %p61 = scmp.ne.s32.totalorder %s46, %s60
    %p62 = scmp.eq.s32.totalorder %s15, 0
    %p63 = por %p61, %p62
    %s65 = sadd.s32 %s64, 1
    %p68 = scmp.eq.s32.totalorder %s9, 1
    %p69 = scmp.ne.s32.totalorder %s64, %s66
    %p70 = scmp.eq.s32.totalorder %s9, 0
    %p71 = por %p69, %p70
    %p72 = scmp.ne.s32.totalorder %s64, %s66
    %p73 = scmp.eq.s32.totalorder %s14, 1
    %p74 = por %p72, %p73
    %p75 = scmp.ne.s32.totalorder %s66, %s67
    %p76 = scmp.eq.s32.totalorder %s14, 0
    %p77 = por %p75, %p76
    %p78 = scmp.ne.s32.totalorder %s66, %s67
    %p79 = scmp.eq.s32.totalorder %s15, 1
    %p80 = por %p78, %p79
    %p82 = scmp.ne.s32.totalorder %s67, %s81
    %p83 = scmp.eq.s32.totalorder %s15, 0
    %p84 = por %p82, %p83
    %s85 = ssub.s32 %s9, %s16
    %p86 = scmp.eq.s32.totalorder %s85, 0
    %s88 = sadd.s32 %s87, 1
    %s89 = scalar_select %p86, %s87, %s88
    %p92 = pneg %p86
    %p93 = scmp.eq.s32.totalorder %s9, 1
    %p94 = por %p92, %p93
    %p95 = scmp.ne.s32.totalorder %s87, %s90
    %p96 = scmp.eq.s32.totalorder %s9, 0
    %p97 = por %p95, %p96
    %p98 = scmp.ne.s32.totalorder %s87, %s90
    %p99 = scmp.eq.s32.totalorder %s14, 1
    %p100 = por %p98, %p99
    %p101 = scmp.ne.s32.totalorder %s90, %s91
    %p102 = scmp.eq.s32.totalorder %s14, 0
    %p103 = por %p101, %p102
    %p104 = scmp.ne.s32.totalorder %s90, %s91
    %p105 = scmp.eq.s32.totalorder %s15, 1
    %p106 = por %p104, %p105
    %p108 = scmp.ne.s32.totalorder %s91, %s107
    %p109 = scmp.eq.s32.totalorder %s15, 0
    %p110 = por %p108, %p109
    %p111 = scmp.le.s32.totalorder 1, %s9
    %p112 = scmp.lt.s32.totalorder %s9, 3
    %p113 = pnand %p111, %p112
    %p114 = pneg %p113
    // Predicated region
    $region9: #{double_conv.5} parent=5 // pred_check
      _
    $region10: #{double_conv.5} parent=5 // pred_check_branch
      %116 = sbr.rel (%p113) target = $region12
    $region11: #{double_conv.5} parent=5 // pred_region
      %s117 = ssub.s32 %s9, 1
      // Predicated region
      $region13: #{double_conv.5} parent=11 // pred_check
        %p118 = pneg %p56
      $region14: #{double_conv.5} parent=11 // pred_check_branch
        %120 = sbr.rel (%p118) target = $region16
      $region15: #{double_conv.5} parent=11 // pred_region
        _
      $region16: #{double_conv.5} parent=11 // pred_fallthru
        _
      // Predicated region
      $region17: #{double_conv.5} parent=11 // pred_check
        %p121 = pneg %p77
      $region18: #{double_conv.5} parent=11 // pred_check_branch
        %123 = sbr.rel (%p121) target = $region20
      $region19: #{double_conv.5} parent=11 // pred_region
        _
      $region20: #{double_conv.5} parent=11 // pred_fallthru
        _
    $region12: #{double_conv.5} parent=5 // pred_fallthru
      _
    %p124 = scmp.lt.s32.totalorder %s9, 2
    // Predicated region
    $region21: #{double_conv.5} parent=5 // pred_check
      %p125 = pneg %p124
    $region22: #{double_conv.5} parent=5 // pred_check_branch
      %127 = sbr.rel (%p125) target = $region24
    $region23: #{double_conv.5} parent=5 // pred_region
      // Predicated region
      $region25: #{double_conv.5} parent=23 // pred_check
        %p128 = pneg %p29
      $region26: #{double_conv.5} parent=23 // pred_check_branch
        %130 = sbr.rel (%p128) target = $region28
      $region27: #{double_conv.5} parent=23 // pred_region
        %p131 = scmp.lt.s32.totalorder %s9, 1
        %s132 = scalar_select %p131, %s9, 1
        %s133 = smul.addr %s132, 32
        %s134 = smul.addr %s133, 8
        %s135 = scalar_lea.vmem %s0, %s134
      $region28: #{double_conv.5} parent=23 // pred_fallthru
        _
    $region24: #{double_conv.5} parent=5 // pred_fallthru
      _
    %p136 = scmp.le.s32.totalorder 1, %s9
    %p137 = scmp.lt.s32.totalorder %s9, 3
    %p138 = pnand %p136, %p137
    %p139 = pneg %p138
    // Predicated region
    $region29: #{double_conv.5} parent=5 // pred_check
      _
    $region30: #{double_conv.5} parent=5 // pred_check_branch
      %141 = sbr.rel (%p138) target = $region32
    $region31: #{double_conv.5} parent=5 // pred_region
      %s142 = ssub.s32 %s9, 1
      %p143 = scmp.lt.s32.totalorder %s14, 1
      %s144 = scalar_select %p143, %s14, 1
      %s145 = smul.addr %s144, 32
      %s146 = smul.addr %s145, 8
      %s147 = scalar_lea.vmem %s0, %s146
      %p148 = pneg %p35
      %p149 = pneg %p32
      %p150 = pneg %p56
      %p151 = pneg %p53
      %p152 = pneg %p77
      %p153 = pneg %p74
      %p154 = pneg %p103
      %p155 = pneg %p100
      %p156 = scmp.lt.s32.totalorder %s14, 1
      %s157 = scalar_select %p156, %s14, 1
      %s158 = smul.addr %s157, 32
      %s159 = smul.addr %s158, 8
      %s160 = scalar_lea.vmem %s3, %s159
      %p161 = scmp.lt.s32.totalorder %s14, 1
      %s162 = scalar_select %p161, %s14, 1
      %s163 = smul.addr %s162, 32
      %s164 = smul.addr %s163, 8
      %s165 = scalar_lea.vmem %s0, %s164
      %p166 = scmp.lt.s32.totalorder %s14, 1
      %s167 = scalar_select %p166, %s14, 1
      %s168 = smul.addr %s167, 32
      %s169 = smul.addr %s168, 8
      %s170 = scalar_lea.vmem %s3, %s169
      %v171 = vld [vmem:[%s1] sm:$0x1]
      %v172 = vld [vmem:[%s2] sm:$0x1]
      %v173 = vld [vmem:[%s165] sm:$0xff]
      %v174 = vld [vmem:[%s165 + $0x8] sm:$0xff]
      %v175 = vld [vmem:[%s165 + $0x10] sm:$0xff]
      %v176 = vld [vmem:[%s165 + $0x18] sm:$0xff]
      %v177 = vld [vmem:[%s165 + $0x20] sm:$0xff]
      %v178 = vld [vmem:[%s165 + $0x28] sm:$0xff]
      %v179 = vld [vmem:[%s165 + $0x30] sm:$0xff]
      %v180 = vld [vmem:[%s165 + $0x38] sm:$0xff]
      %v181 = vld [vmem:[%s165 + $0x40] sm:$0xff]
      %v182 = vld [vmem:[%s165 + $0x48] sm:$0xff]
      %v183 = vld [vmem:[%s165 + $0x50] sm:$0xff]
      %v184 = vld [vmem:[%s165 + $0x58] sm:$0xff]
      %v185 = vld [vmem:[%s165 + $0x60] sm:$0xff]
      %v186 = vld [vmem:[%s165 + $0x68] sm:$0xff]
      %v187 = vld [vmem:[%s165 + $0x70] sm:$0xff]
      %v188 = vld [vmem:[%s165 + $0x78] sm:$0xff]
      %v189 = vld [vmem:[%s165 + $0x80] sm:$0xff]
      %v190 = vld [vmem:[%s165 + $0x88] sm:$0xff]
      %v191 = vld [vmem:[%s165 + $0x90] sm:$0xff]
      %v192 = vld [vmem:[%s165 + $0x98] sm:$0xff]
      %v193 = vld [vmem:[%s165 + $0xa0] sm:$0xff]
      %v194 = vld [vmem:[%s165 + $0xa8] sm:$0xff]
      %v195 = vld [vmem:[%s165 + $0xb0] sm:$0xff]
      %v196 = vld [vmem:[%s165 + $0xb8] sm:$0xff]
      %v197 = vld [vmem:[%s165 + $0xc0] sm:$0xff]
      %v198 = vld [vmem:[%s165 + $0xc8] sm:$0xff]
      %v199 = vld [vmem:[%s165 + $0xd0] sm:$0xff]
      %v200 = vld [vmem:[%s165 + $0xd8] sm:$0xff]
      %v201 = vld [vmem:[%s165 + $0xe0] sm:$0xff]
      %v202 = vld [vmem:[%s165 + $0xe8] sm:$0xff]
      %v203 = vld [vmem:[%s165 + $0xf0] sm:$0xff]
      %v204 = vld [vmem:[%s165 + $0xf8] sm:$0xff]
      %v206 = vlaneseq
      %v207 = vshrl.u32 %v206, 7
      %v208 = vsub.s32 0, %v207
      %v209 = vrot.slane %v171, %v208
      %v211 = vmul.f32 %v173, %v209
      %v212 = vmul.f32 %v174, %v209
      %v213 = vmul.f32 %v175, %v209
      %v214 = vmul.f32 %v176, %v209
      %v215 = vmul.f32 %v177, %v209
      %v216 = vmul.f32 %v178, %v209
      %v217 = vmul.f32 %v179, %v209
      %v218 = vmul.f32 %v180, %v209
      %v219 = vmul.f32 %v181, %v209
      %v220 = vmul.f32 %v182, %v209
      %v221 = vmul.f32 %v183, %v209
      %v222 = vmul.f32 %v184, %v209
      %v223 = vmul.f32 %v185, %v209
      %v224 = vmul.f32 %v186, %v209
      %v225 = vmul.f32 %v187, %v209
      %v226 = vmul.f32 %v188, %v209
      %v227 = vmul.f32 %v189, %v209
      %v228 = vmul.f32 %v190, %v209
      %v229 = vmul.f32 %v191, %v209
      %v230 = vmul.f32 %v192, %v209
      %v231 = vmul.f32 %v193, %v209
      %v232 = vmul.f32 %v194, %v209
      %v233 = vmul.f32 %v195, %v209
      %v234 = vmul.f32 %v196, %v209
      %v235 = vmul.f32 %v197, %v209
      %v236 = vmul.f32 %v198, %v209
      %v237 = vmul.f32 %v199, %v209
      %v238 = vmul.f32 %v200, %v209
      %v239 = vmul.f32 %v201, %v209
      %v240 = vmul.f32 %v202, %v209
      %v241 = vmul.f32 %v203, %v209
      %v242 = vmul.f32 %v204, %v209
      %v244 = vlaneseq
      %v245 = vshrl.u32 %v244, 7
      %v246 = vsub.s32 0, %v245
      %v247 = vrot.slane %v172, %v246
      %v249 = vadd.f32 %v211, %v247
      %v250 = vadd.f32 %v212, %v247
      %v251 = vadd.f32 %v213, %v247
      %v252 = vadd.f32 %v214, %v247
      %v253 = vadd.f32 %v215, %v247
      %v254 = vadd.f32 %v216, %v247
      %v255 = vadd.f32 %v217, %v247
      %v256 = vadd.f32 %v218, %v247
      %v257 = vadd.f32 %v219, %v247
      %v258 = vadd.f32 %v220, %v247
      %v259 = vadd.f32 %v221, %v247
      %v260 = vadd.f32 %v222, %v247
      %v261 = vadd.f32 %v223, %v247
      %v262 = vadd.f32 %v224, %v247
      %v263 = vadd.f32 %v225, %v247
      %v264 = vadd.f32 %v226, %v247
      %v265 = vadd.f32 %v227, %v247
      %v266 = vadd.f32 %v228, %v247
      %v267 = vadd.f32 %v229, %v247
      %v268 = vadd.f32 %v230, %v247
      %v269 = vadd.f32 %v231, %v247
      %v270 = vadd.f32 %v232, %v247
      %v271 = vadd.f32 %v233, %v247
      %v272 = vadd.f32 %v234, %v247
      %v273 = vadd.f32 %v235, %v247
      %v274 = vadd.f32 %v236, %v247
      %v275 = vadd.f32 %v237, %v247
      %v276 = vadd.f32 %v238, %v247
      %v277 = vadd.f32 %v239, %v247
      %v278 = vadd.f32 %v240, %v247
      %v279 = vadd.f32 %v241, %v247
      %v280 = vadd.f32 %v242, %v247
      %v281 = vmax.f32 %v249, 0.0
      %v282 = vmax.f32 %v250, 0.0
      %v283 = vmax.f32 %v251, 0.0
      %v284 = vmax.f32 %v252, 0.0
      %v285 = vmax.f32 %v253, 0.0
      %v286 = vmax.f32 %v254, 0.0
      %v287 = vmax.f32 %v255, 0.0
      %v288 = vmax.f32 %v256, 0.0
      %v289 = vmax.f32 %v257, 0.0
      %v290 = vmax.f32 %v258, 0.0
      %v291 = vmax.f32 %v259, 0.0
      %v292 = vmax.f32 %v260, 0.0
      %v293 = vmax.f32 %v261, 0.0
      %v294 = vmax.f32 %v262, 0.0
      %v295 = vmax.f32 %v263, 0.0
      %v296 = vmax.f32 %v264, 0.0
      %v297 = vmax.f32 %v265, 0.0
      %v298 = vmax.f32 %v266, 0.0
      %v299 = vmax.f32 %v267, 0.0
      %v300 = vmax.f32 %v268, 0.0
      %v301 = vmax.f32 %v269, 0.0
      %v302 = vmax.f32 %v270, 0.0
      %v303 = vmax.f32 %v271, 0.0
      %v304 = vmax.f32 %v272, 0.0
      %v305 = vmax.f32 %v273, 0.0
      %v306 = vmax.f32 %v274, 0.0
      %v307 = vmax.f32 %v275, 0.0
      %v308 = vmax.f32 %v276, 0.0
      %v309 = vmax.f32 %v277, 0.0
      %v310 = vmax.f32 %v278, 0.0
      %v311 = vmax.f32 %v279, 0.0
      %v312 = vmax.f32 %v280, 0.0
      %vm313 = vcmask 64512
      %314 = vst.msk [vmem:[%s170] sm:$0xff] %vm313, %v281
      %315 = vst.msk [vmem:[%s170 + $0x8] sm:$0xff] %vm313, %v282
      %316 = vst.msk [vmem:[%s170 + $0x10] sm:$0xff] %vm313, %v283
      %317 = vst.msk [vmem:[%s170 + $0x18] sm:$0xff] %vm313, %v284
      %318 = vst.msk [vmem:[%s170 + $0x20] sm:$0xff] %vm313, %v285
      %319 = vst.msk [vmem:[%s170 + $0x28] sm:$0xff] %vm313, %v286
      %320 = vst.msk [vmem:[%s170 + $0x30] sm:$0xff] %vm313, %v287
      %321 = vst.msk [vmem:[%s170 + $0x38] sm:$0xff] %vm313, %v288
      %322 = vst.msk [vmem:[%s170 + $0x40] sm:$0xff] %vm313, %v289
      %323 = vst.msk [vmem:[%s170 + $0x48] sm:$0xff] %vm313, %v290
      %324 = vst.msk [vmem:[%s170 + $0x50] sm:$0xff] %vm313, %v291
      %325 = vst.msk [vmem:[%s170 + $0x58] sm:$0xff] %vm313, %v292
      %326 = vst.msk [vmem:[%s170 + $0x60] sm:$0xff] %vm313, %v293
      %327 = vst.msk [vmem:[%s170 + $0x68] sm:$0xff] %vm313, %v294
      %328 = vst.msk [vmem:[%s170 + $0x70] sm:$0xff] %vm313, %v295
      %329 = vst.msk [vmem:[%s170 + $0x78] sm:$0xff] %vm313, %v296
      %330 = vst.msk [vmem:[%s170 + $0x80] sm:$0xff] %vm313, %v297
      %331 = vst.msk [vmem:[%s170 + $0x88] sm:$0xff] %vm313, %v298
      %332 = vst.msk [vmem:[%s170 + $0x90] sm:$0xff] %vm313, %v299
      %333 = vst.msk [vmem:[%s170 + $0x98] sm:$0xff] %vm313, %v300
      %334 = vst.msk [vmem:[%s170 + $0xa0] sm:$0xff] %vm313, %v301
      %335 = vst.msk [vmem:[%s170 + $0xa8] sm:$0xff] %vm313, %v302
      %336 = vst.msk [vmem:[%s170 + $0xb0] sm:$0xff] %vm313, %v303
      %337 = vst.msk [vmem:[%s170 + $0xb8] sm:$0xff] %vm313, %v304
      %338 = vst.msk [vmem:[%s170 + $0xc0] sm:$0xff] %vm313, %v305
      %339 = vst.msk [vmem:[%s170 + $0xc8] sm:$0xff] %vm313, %v306
      %340 = vst.msk [vmem:[%s170 + $0xd0] sm:$0xff] %vm313, %v307
      %341 = vst.msk [vmem:[%s170 + $0xd8] sm:$0xff] %vm313, %v308
      %342 = vst.msk [vmem:[%s170 + $0xe0] sm:$0xff] %vm313, %v309
      %343 = vst.msk [vmem:[%s170 + $0xe8] sm:$0xff] %vm313, %v310
      %344 = vst.msk [vmem:[%s170 + $0xf0] sm:$0xff] %vm313, %v311
      %345 = vst.msk [vmem:[%s170 + $0xf8] sm:$0xff] %vm313, %v312
      %p346 = scmp.lt.s32.totalorder %s14, 1
      %s347 = scalar_select %p346, %s14, 1
      %s348 = smul.addr %s347, 32
      %s349 = smul.addr %s348, 8
      %s350 = scalar_lea.vmem %s3, %s349
      // Predicated region
      $region33: #{double_conv.5} parent=31 // pred_check
        %p351 = pneg %p100
      $region34: #{double_conv.5} parent=31 // pred_check_branch
        %353 = sbr.rel (%p351) target = $region36
      $region35: #{double_conv.5} parent=31 // pred_region
        _
      $region36: #{double_conv.5} parent=31 // pred_fallthru
        _
    $region32: #{double_conv.5} parent=5 // pred_fallthru
      _
    %p354 = scmp.le.s32.totalorder 2, %s9
    // Predicated region
    $region37: #{double_conv.5} parent=5 // pred_check
      %p355 = pneg %p354
    $region38: #{double_conv.5} parent=5 // pred_check_branch
      %357 = sbr.rel (%p355) target = $region40
    $region39: #{double_conv.5} parent=5 // pred_region
      %s358 = ssub.s32 %s9, 2
      // Predicated region
      $region41: #{double_conv.5} parent=39 // pred_check
        %p359 = pneg %p106
      $region42: #{double_conv.5} parent=39 // pred_check_branch
        %361 = sbr.rel (%p359) target = $region44
      $region43: #{double_conv.5} parent=39 // pred_region
        %p362 = scmp.lt.s32.totalorder %s15, 1
        %s363 = scalar_select %p362, %s15, 1
        %s364 = smul.addr %s363, 32
        %s365 = smul.addr %s364, 8
        %s366 = scalar_lea.vmem %s3, %s365
      $region44: #{double_conv.5} parent=39 // pred_fallthru
        _
    $region40: #{double_conv.5} parent=5 // pred_fallthru
      _
  $region6: #{double_conv.5} parent=0 // loop_footer
    %s13 = sadd.s32 1, %s9
  $region7: #{double_conv.5} parent=0 // loop_footer_branch
    %8 = sbr.rel target = $region3
  $region8: #{double_conv.5} parent=0 // loop_exit
    _

// kernel: double_conv.4
$region0: #{double_conv.4}
  #allocation0 [shape = 'u32[]', space=smem, size = 0x4, offset = 0x4, fixed_abs, tag = 'smem constant byte address 0x4 - core index']
  #allocation1 [shape = 'u32[144,128]{1,0:T(1,128)}', space=vmem, size = 0x12000, scoped, tag = 'internal scratch']
  #allocation2 [shape = 'f32[18,18,8]{2,1,0:T(8,128)}', space=vmem, size = 0x36000, scoped, tag = 'scratch operand']
  %s0 = inlined_call_operand.vmem [shape: f32[2,16,16,8], index: 0, kind: input, shape index: {}]
  %s1 = inlined_call_operand.vmem [shape: bf16[72,8], index: 1, kind: input, shape index: {}]
  %s2 = inlined_call_operand.vmem [shape: f32[1,8], index: 2, kind: input, shape index: {}]
  %s3 = inlined_call_operand.vmem [shape: f32[1,8], index: 3, kind: input, shape index: {}]
  %s4 = inlined_call_operand.vmem [shape: f32[2,16,16,8], index: 4, kind: output, shape index: {0}]
  %s5 = inlined_call_operand.vmem [shape: f32[2,2,8], index: 5, kind: output, shape index: {1}]
  %6 = xla_tuple %s4, %s5
  %s7 = sld [smem:[#allocation0]]
  $region57: #{double_conv.4} parent=0
    _
  %s9 = ssub.s32 1, %s7
  %s10 = scalar_select 0, %s9, %s7
  loop: start=0, step=1, limit=4
  $region2: #{double_conv.4} parent=0 // loop_pre_header
    _
  $region3: #{double_conv.4} parent=0 // loop_header
    %s12 = sphi 0, %s16
    %p13 = scmp.ge.s32.totalorder %s12, 4
    %s22 = sphi 0, %s24
    %s25 = sphi 0, %s22
    %s26 = sphi 0, %s25
    %s42 = sphi 0, %s26
    %s46 = sphi 0, %s46
    %s48 = sphi 0, %s46
    %s49 = sphi 0, %s48
    %s63 = sphi 0, %s49
    %s67 = sphi 0, %s67
    %s69 = sphi 0, %s67
    %s70 = sphi 0, %s69
    %s84 = sphi 0, %s70
    %s88 = sphi 0, %s88
    %s90 = sphi 0, %s88
    %s91 = sphi 0, %s90
    %s105 = sphi 0, %s91
    %s111 = sphi 0, %s113
    %s114 = sphi 0, %s111
    %s115 = sphi 0, %s114
    %s131 = sphi 0, %s115
    %s137 = sphi 0, %s139
    %s140 = sphi 0, %s137
    %s141 = sphi 0, %s140
    %s157 = sphi 0, %s141
  $region4: #{double_conv.4} parent=0 // loop_header_branch
    %15 = sbr.rel (%p13) target = $region8
  $region5: #{double_conv.4} parent=0 // loop_body
    %s17 = ssub.s32 %s12, 1
    %s18 = ssub.s32 %s12, 2
    %s19 = sadd.s32 %s12, 1
    %s20 = ssub.s32 %s12, %s19
    %p21 = scmp.eq.s32.totalorder %s20, 0
    %s23 = sadd.s32 %s22, 1
    %s24 = scalar_select %p21, %s22, %s23
    %p27 = pneg %p21
    %p28 = scmp.eq.s32.totalorder %s12, 1
    %p29 = por %p27, %p28
    %p30 = scmp.ne.s32.totalorder %s22, %s25
    %p31 = scmp.eq.s32.totalorder %s12, 0
    %p32 = por %p30, %p31
    %p33 = scmp.ne.s32.totalorder %s22, %s25
    %p34 = scmp.eq.s32.totalorder %s17, 1
    %p35 = por %p33, %p34
    %p36 = scmp.ne.s32.totalorder %s25, %s26
    %p37 = scmp.eq.s32.totalorder %s17, 0
    %p38 = por %p36, %p37
    %p39 = scmp.ne.s32.totalorder %s25, %s26
    %p40 = scmp.eq.s32.totalorder %s18, 1
    %p41 = por %p39, %p40
    %p43 = scmp.ne.s32.totalorder %s26, %s42
    %p44 = scmp.eq.s32.totalorder %s18, 0
    %p45 = por %p43, %p44
    %s47 = sadd.s32 %s46, 1
    %p50 = scmp.eq.s32.totalorder %s12, 1
    %p51 = scmp.ne.s32.totalorder %s46, %s48
    %p52 = scmp.eq.s32.totalorder %s12, 0
    %p53 = por %p51, %p52
    %p54 = scmp.ne.s32.totalorder %s46, %s48
    %p55 = scmp.eq.s32.totalorder %s17, 1
    %p56 = por %p54, %p55
    %p57 = scmp.ne.s32.totalorder %s48, %s49
    %p58 = scmp.eq.s32.totalorder %s17, 0
    %p59 = por %p57, %p58
    %p60 = scmp.ne.s32.totalorder %s48, %s49
    %p61 = scmp.eq.s32.totalorder %s18, 1
    %p62 = por %p60, %p61
    %p64 = scmp.ne.s32.totalorder %s49, %s63
    %p65 = scmp.eq.s32.totalorder %s18, 0
    %p66 = por %p64, %p65
    %s68 = sadd.s32 %s67, 1
    %p71 = scmp.eq.s32.totalorder %s12, 1
    %p72 = scmp.ne.s32.totalorder %s67, %s69
    %p73 = scmp.eq.s32.totalorder %s12, 0
    %p74 = por %p72, %p73
    %p75 = scmp.ne.s32.totalorder %s67, %s69
    %p76 = scmp.eq.s32.totalorder %s17, 1
    %p77 = por %p75, %p76
    %p78 = scmp.ne.s32.totalorder %s69, %s70
    %p79 = scmp.eq.s32.totalorder %s17, 0
    %p80 = por %p78, %p79
    %p81 = scmp.ne.s32.totalorder %s69, %s70
    %p82 = scmp.eq.s32.totalorder %s18, 1
    %p83 = por %p81, %p82
    %p85 = scmp.ne.s32.totalorder %s70, %s84
    %p86 = scmp.eq.s32.totalorder %s18, 0
    %p87 = por %p85, %p86
    %s89 = sadd.s32 %s88, 1
    %p92 = scmp.eq.s32.totalorder %s12, 1
    %p93 = scmp.ne.s32.totalorder %s88, %s90
    %p94 = scmp.eq.s32.totalorder %s12, 0
    %p95 = por %p93, %p94
    %p96 = scmp.ne.s32.totalorder %s88, %s90
    %p97 = scmp.eq.s32.totalorder %s17, 1
    %p98 = por %p96, %p97
    %p99 = scmp.ne.s32.totalorder %s90, %s91
    %p100 = scmp.eq.s32.totalorder %s17, 0
    %p101 = por %p99, %p100
    %p102 = scmp.ne.s32.totalorder %s90, %s91
    %p103 = scmp.eq.s32.totalorder %s18, 1
    %p104 = por %p102, %p103
    %p106 = scmp.ne.s32.totalorder %s91, %s105
    %p107 = scmp.eq.s32.totalorder %s18, 0
    %p108 = por %p106, %p107
    %s109 = ssub.s32 %s12, %s19
    %p110 = scmp.eq.s32.totalorder %s109, 0
    %s112 = sadd.s32 %s111, 1
    %s113 = scalar_select %p110, %s111, %s112
    %p116 = pneg %p110
    %p117 = scmp.eq.s32.totalorder %s12, 1
    %p118 = por %p116, %p117
    %p119 = scmp.ne.s32.totalorder %s111, %s114
    %p120 = scmp.eq.s32.totalorder %s12, 0
    %p121 = por %p119, %p120
    %p122 = scmp.ne.s32.totalorder %s111, %s114
    %p123 = scmp.eq.s32.totalorder %s17, 1
    %p124 = por %p122, %p123
    %p125 = scmp.ne.s32.totalorder %s114, %s115
    %p126 = scmp.eq.s32.totalorder %s17, 0
    %p127 = por %p125, %p126
    %p128 = scmp.ne.s32.totalorder %s114, %s115
    %p129 = scmp.eq.s32.totalorder %s18, 1
    %p130 = por %p128, %p129
    %p132 = scmp.ne.s32.totalorder %s115, %s131
    %p133 = scmp.eq.s32.totalorder %s18, 0
    %p134 = por %p132, %p133
    %s135 = ssub.s32 %s12, %s19
    %p136 = scmp.eq.s32.totalorder %s135, 0
    %s138 = sadd.s32 %s137, 1
    %s139 = scalar_select %p136, %s137, %s138
    %p142 = pneg %p136
    %p143 = scmp.eq.s32.totalorder %s12, 1
    %p144 = por %p142, %p143
    %p145 = scmp.ne.s32.totalorder %s137, %s140
    %p146 = scmp.eq.s32.totalorder %s12, 0
    %p147 = por %p145, %p146
    %p148 = scmp.ne.s32.totalorder %s137, %s140
    %p149 = scmp.eq.s32.totalorder %s17, 1
    %p150 = por %p148, %p149
    %p151 = scmp.ne.s32.totalorder %s140, %s141
    %p152 = scmp.eq.s32.totalorder %s17, 0
    %p153 = por %p151, %p152
    %p154 = scmp.ne.s32.totalorder %s140, %s141
    %p155 = scmp.eq.s32.totalorder %s18, 1
    %p156 = por %p154, %p155
    %p158 = scmp.ne.s32.totalorder %s141, %s157
    %p159 = scmp.eq.s32.totalorder %s18, 0
    %p160 = por %p158, %p159
    %p161 = scmp.le.s32.totalorder 1, %s12
    %p162 = scmp.lt.s32.totalorder %s12, 3
    %p163 = pnand %p161, %p162
    %p164 = pneg %p163
    // Predicated region
    $region9: #{double_conv.4} parent=5 // pred_check
      _
    $region10: #{double_conv.4} parent=5 // pred_check_branch
      %166 = sbr.rel (%p163) target = $region12
    $region11: #{double_conv.4} parent=5 // pred_region
      %s167 = ssub.s32 %s12, 1
      // Predicated region
      $region13: #{double_conv.4} parent=11 // pred_check
        %p168 = pneg %p59
      $region14: #{double_conv.4} parent=11 // pred_check_branch
        %170 = sbr.rel (%p168) target = $region16
      $region15: #{double_conv.4} parent=11 // pred_region
        _
      $region16: #{double_conv.4} parent=11 // pred_fallthru
        _
      // Predicated region
      $region17: #{double_conv.4} parent=11 // pred_check
        %p171 = pneg %p80
      $region18: #{double_conv.4} parent=11 // pred_check_branch
        %173 = sbr.rel (%p171) target = $region20
      $region19: #{double_conv.4} parent=11 // pred_region
        _
      $region20: #{double_conv.4} parent=11 // pred_fallthru
        _
      // Predicated region
      $region21: #{double_conv.4} parent=11 // pred_check
        %p174 = pneg %p101
      $region22: #{double_conv.4} parent=11 // pred_check_branch
        %176 = sbr.rel (%p174) target = $region24
      $region23: #{double_conv.4} parent=11 // pred_region
        _
      $region24: #{double_conv.4} parent=11 // pred_fallthru
        _
    $region12: #{double_conv.4} parent=5 // pred_fallthru
      _
    %p177 = scmp.lt.s32.totalorder %s12, 2
    // Predicated region
    $region25: #{double_conv.4} parent=5 // pred_check
      %p178 = pneg %p177
    $region26: #{double_conv.4} parent=5 // pred_check_branch
      %180 = sbr.rel (%p178) target = $region28
    $region27: #{double_conv.4} parent=5 // pred_region
      // Predicated region
      $region29: #{double_conv.4} parent=27 // pred_check
        %p181 = pneg %p32
      $region30: #{double_conv.4} parent=27 // pred_check_branch
        %183 = sbr.rel (%p181) target = $region32
      $region31: #{double_conv.4} parent=27 // pred_region
        %p184 = scmp.lt.s32.totalorder %s12, 1
        %s185 = scalar_select %p184, %s12, 1
        %s186 = smul.addr %s185, 32
        %s187 = smul.addr %s186, 8
        %s188 = scalar_lea.vmem %s0, %s187
      $region32: #{double_conv.4} parent=27 // pred_fallthru
        _
    $region28: #{double_conv.4} parent=5 // pred_fallthru
      _
    %p189 = scmp.le.s32.totalorder 1, %s12
    %p190 = scmp.lt.s32.totalorder %s12, 3
    %p191 = pnand %p189, %p190
    %p192 = pneg %p191
    // Predicated region
    $region33: #{double_conv.4} parent=5 // pred_check
      _
    $region34: #{double_conv.4} parent=5 // pred_check_branch
      %194 = sbr.rel (%p191) target = $region36
    $region35: #{double_conv.4} parent=5 // pred_region
      %s195 = ssub.s32 %s12, 1
      %p196 = scmp.lt.s32.totalorder %s17, 1
      %s197 = scalar_select %p196, %s17, 1
      %s198 = smul.addr %s197, 32
      %s199 = smul.addr %s198, 8
      %s200 = scalar_lea.vmem %s0, %s199
      %p201 = pneg %p38
      %p202 = pneg %p35
      %p203 = pneg %p59
      %p204 = pneg %p56
      %p205 = pneg %p80
      %p206 = pneg %p77
      %p207 = pneg %p101
      %p208 = pneg %p98
      %p209 = pneg %p127
      %p210 = pneg %p124
      %p211 = scmp.lt.s32.totalorder %s17, 1
      %s212 = scalar_select %p211, %s17, 1
      %s213 = smul.addr %s212, 32
      %s214 = smul.addr %s213, 8
      %s215 = scalar_lea.vmem %s4, %s214
      %p216 = pneg %p153
      %p217 = pneg %p150
      %p218 = scmp.lt.s32.totalorder %s17, 1
      %s219 = scalar_select %p218, %s17, 1
      %s220 = smul.addr %s219, 2
      %s221 = scalar_lea.vmem %s5, %s220
      %p222 = scmp.lt.s32.totalorder %s17, 1
      %s223 = scalar_select %p222, %s17, 1
      %s224 = smul.addr %s223, 32
      %s225 = smul.addr %s224, 8
      %s226 = scalar_lea.vmem %s0, %s225
      %p227 = scmp.lt.s32.totalorder %s17, 1
      %s228 = scalar_select %p227, %s17, 1
      %s229 = smul.addr %s228, 32
      %s230 = smul.addr %s229, 8
      %s231 = scalar_lea.vmem %s4, %s230
      %p232 = scmp.lt.s32.totalorder %s17, 1
      %s233 = scalar_select %p232, %s17, 1
      %s234 = smul.addr %s233, 2
      %s235 = scalar_lea.vmem %s5, %s234
      %v237 = vld [vmem:[%s226] sm:$0xff]
      %v238 = vld [vmem:[%s226 + $0x8] sm:$0xff]
      %v239 = vld [vmem:[%s226 + $0x10] sm:$0xff]
      %v240 = vld [vmem:[%s226 + $0x18] sm:$0xff]
      %v241 = vld [vmem:[%s226 + $0x20] sm:$0xff]
      %v242 = vld [vmem:[%s226 + $0x28] sm:$0xff]
      %v243 = vld [vmem:[%s226 + $0x30] sm:$0xff]
      %v244 = vld [vmem:[%s226 + $0x38] sm:$0xff]
      %v245 = vld [vmem:[%s226 + $0x40] sm:$0xff]
      %v246 = vld [vmem:[%s226 + $0x48] sm:$0xff]
      %v247 = vld [vmem:[%s226 + $0x50] sm:$0xff]
      %v248 = vld [vmem:[%s226 + $0x58] sm:$0xff]
      %v249 = vld [vmem:[%s226 + $0x60] sm:$0xff]
      %v250 = vld [vmem:[%s226 + $0x68] sm:$0xff]
      %v251 = vld [vmem:[%s226 + $0x70] sm:$0xff]
      %v252 = vld [vmem:[%s226 + $0x78] sm:$0xff]
      %v253 = vld [vmem:[%s226 + $0x80] sm:$0xff]
      %v254 = vld [vmem:[%s226 + $0x88] sm:$0xff]
      %v255 = vld [vmem:[%s226 + $0x90] sm:$0xff]
      %v256 = vld [vmem:[%s226 + $0x98] sm:$0xff]
      %v257 = vld [vmem:[%s226 + $0xa0] sm:$0xff]
      %v258 = vld [vmem:[%s226 + $0xa8] sm:$0xff]
      %v259 = vld [vmem:[%s226 + $0xb0] sm:$0xff]
      %v260 = vld [vmem:[%s226 + $0xb8] sm:$0xff]
      %v261 = vld [vmem:[%s226 + $0xc0] sm:$0xff]
      %v262 = vld [vmem:[%s226 + $0xc8] sm:$0xff]
      %v263 = vld [vmem:[%s226 + $0xd0] sm:$0xff]
      %v264 = vld [vmem:[%s226 + $0xd8] sm:$0xff]
      %v265 = vld [vmem:[%s226 + $0xe0] sm:$0xff]
      %v266 = vld [vmem:[%s226 + $0xe8] sm:$0xff]
      %v267 = vld [vmem:[%s226 + $0xf0] sm:$0xff]
      %v268 = vld [vmem:[%s226 + $0xf8] sm:$0xff]
      %v269 = vld [vmem:[%s2] sm:$0x1]
      %v270 = vld [vmem:[%s3] sm:$0x1]
      %v272 = vlaneseq
      %v273 = vshrl.u32 %v272, 7
      %v274 = vsub.s32 0, %v273
      %v275 = vrot.slane %v269, %v274
      %v277 = vmul.f32 %v237, %v275
      %v278 = vmul.f32 %v238, %v275
      %v279 = vmul.f32 %v239, %v275
      %v280 = vmul.f32 %v240, %v275
      %v281 = vmul.f32 %v241, %v275
      %v282 = vmul.f32 %v242, %v275
      %v283 = vmul.f32 %v243, %v275
      %v284 = vmul.f32 %v244, %v275
      %v285 = vmul.f32 %v245, %v275
      %v286 = vmul.f32 %v246, %v275
      %v287 = vmul.f32 %v247, %v275
      %v288 = vmul.f32 %v248, %v275
      %v289 = vmul.f32 %v249, %v275
      %v290 = vmul.f32 %v250, %v275
      %v291 = vmul.f32 %v251, %v275
      %v292 = vmul.f32 %v252, %v275
      %v293 = vmul.f32 %v253, %v275
      %v294 = vmul.f32 %v254, %v275
      %v295 = vmul.f32 %v255, %v275
      %v296 = vmul.f32 %v256, %v275
      %v297 = vmul.f32 %v257, %v275
      %v298 = vmul.f32 %v258, %v275
      %v299 = vmul.f32 %v259, %v275
      %v300 = vmul.f32 %v260, %v275
      %v301 = vmul.f32 %v261, %v275
      %v302 = vmul.f32 %v262, %v275
      %v303 = vmul.f32 %v263, %v275
      %v304 = vmul.f32 %v264, %v275
      %v305 = vmul.f32 %v265, %v275
      %v306 = vmul.f32 %v266, %v275
      %v307 = vmul.f32 %v267, %v275
      %v308 = vmul.f32 %v268, %v275
      %v310 = vlaneseq
      %v311 = vshrl.u32 %v310, 7
      %v312 = vsub.s32 0, %v311
      %v313 = vrot.slane %v270, %v312
      %v315 = vadd.f32 %v277, %v313
      %v316 = vadd.f32 %v278, %v313
      %v317 = vadd.f32 %v279, %v313
      %v318 = vadd.f32 %v280, %v313
      %v319 = vadd.f32 %v281, %v313
      %v320 = vadd.f32 %v282, %v313
      %v321 = vadd.f32 %v283, %v313
      %v322 = vadd.f32 %v284, %v313
      %v323 = vadd.f32 %v285, %v313
      %v324 = vadd.f32 %v286, %v313
      %v325 = vadd.f32 %v287, %v313
      %v326 = vadd.f32 %v288, %v313
      %v327 = vadd.f32 %v289, %v313
      %v328 = vadd.f32 %v290, %v313
      %v329 = vadd.f32 %v291, %v313
      %v330 = vadd.f32 %v292, %v313
      %v331 = vadd.f32 %v293, %v313
      %v332 = vadd.f32 %v294, %v313
      %v333 = vadd.f32 %v295, %v313
      %v334 = vadd.f32 %v296, %v313
      %v335 = vadd.f32 %v297, %v313
      %v336 = vadd.f32 %v298, %v313
      %v337 = vadd.f32 %v299, %v313
      %v338 = vadd.f32 %v300, %v313
      %v339 = vadd.f32 %v301, %v313
      %v340 = vadd.f32 %v302, %v313
      %v341 = vadd.f32 %v303, %v313
      %v342 = vadd.f32 %v304, %v313
      %v343 = vadd.f32 %v305, %v313
      %v344 = vadd.f32 %v306, %v313
      %v345 = vadd.f32 %v307, %v313
      %v346 = vadd.f32 %v308, %v313
      %v347 = vmax.f32 %v315, 0.0
      %v348 = vmax.f32 %v316, 0.0
      %v349 = vmax.f32 %v317, 0.0
      %v350 = vmax.f32 %v318, 0.0
      %v351 = vmax.f32 %v319, 0.0
      %v352 = vmax.f32 %v320, 0.0
      %v353 = vmax.f32 %v321, 0.0
      %v354 = vmax.f32 %v322, 0.0
      %v355 = vmax.f32 %v323, 0.0
      %v356 = vmax.f32 %v324, 0.0
      %v357 = vmax.f32 %v325, 0.0
      %v358 = vmax.f32 %v326, 0.0
      %v359 = vmax.f32 %v327, 0.0
      %v360 = vmax.f32 %v328, 0.0
      %v361 = vmax.f32 %v329, 0.0
      %v362 = vmax.f32 %v330, 0.0
      %v363 = vmax.f32 %v331, 0.0
      %v364 = vmax.f32 %v332, 0.0
      %v365 = vmax.f32 %v333, 0.0
      %v366 = vmax.f32 %v334, 0.0
      %v367 = vmax.f32 %v335, 0.0
      %v368 = vmax.f32 %v336, 0.0
      %v369 = vmax.f32 %v337, 0.0
      %v370 = vmax.f32 %v338, 0.0
      %v371 = vmax.f32 %v339, 0.0
      %v372 = vmax.f32 %v340, 0.0
      %v373 = vmax.f32 %v341, 0.0
      %v374 = vmax.f32 %v342, 0.0
      %v375 = vmax.f32 %v343, 0.0
      %v376 = vmax.f32 %v344, 0.0
      %v377 = vmax.f32 %v345, 0.0
      %v378 = vmax.f32 %v346, 0.0
      %vm379 = vcmask 64512
      %380 = vst.msk [vmem:[#allocation2] sm:$0xff] %vm379, 0.0
      %381 = vst.msk [vmem:[#allocation2 + $0x8] sm:$0xff] %vm379, 0.0
      %vm382 = vcmask 58368
      %383 = vst.msk [vmem:[#allocation2 + $0x10] sm:$0x3] %vm382, 0.0
      %384 = vst.msk [vmem:[#allocation2 + $0x18] sm:$0xff] %vm379, 0.0
      %385 = vst.msk [vmem:[#allocation2 + $0x20] sm:$0xff] %vm379, 0.0
      %386 = vst.msk [vmem:[#allocation2 + $0x28] sm:$0x3] %vm382, 0.0
      %387 = vst.msk [vmem:[#allocation2 + $0x30] sm:$0xff] %vm379, 0.0
      %388 = vst.msk [vmem:[#allocation2 + $0x38] sm:$0xff] %vm379, 0.0
      %389 = vst.msk [vmem:[#allocation2 + $0x40] sm:$0x3] %vm382, 0.0
      %390 = vst.msk [vmem:[#allocation2 + $0x48] sm:$0xff] %vm379, 0.0
      %391 = vst.msk [vmem:[#allocation2 + $0x50] sm:$0xff] %vm379, 0.0
      %392 = vst.msk [vmem:[#allocation2 + $0x58] sm:$0x3] %vm382, 0.0
      %393 = vst.msk [vmem:[#allocation2 + $0x60] sm:$0xff] %vm379, 0.0
      %394 = vst.msk [vmem:[#allocation2 + $0x68] sm:$0xff] %vm379, 0.0
      %395 = vst.msk [vmem:[#allocation2 + $0x70] sm:$0x3] %vm382, 0.0
      %396 = vst.msk [vmem:[#allocation2 + $0x78] sm:$0xff] %vm379, 0.0
      %397 = vst.msk [vmem:[#allocation2 + $0x80] sm:$0xff] %vm379, 0.0
      %398 = vst.msk [vmem:[#allocation2 + $0x88] sm:$0x3] %vm382, 0.0
      %399 = vst.msk [vmem:[#allocation2 + $0x90] sm:$0xff] %vm379, 0.0
      %400 = vst.msk [vmem:[#allocation2 + $0x98] sm:$0xff] %vm379, 0.0
      %401 = vst.msk [vmem:[#allocation2 + $0xa0] sm:$0x3] %vm382, 0.0
      %402 = vst.msk [vmem:[#allocation2 + $0xa8] sm:$0xff] %vm379, 0.0
      %403 = vst.msk [vmem:[#allocation2 + $0xb0] sm:$0xff] %vm379, 0.0
      %404 = vst.msk [vmem:[#allocation2 + $0xb8] sm:$0x3] %vm382, 0.0
      %405 = vst.msk [vmem:[#allocation2 + $0xc0] sm:$0xff] %vm379, 0.0
      %406 = vst.msk [vmem:[#allocation2 + $0xc8] sm:$0xff] %vm379, 0.0
      %407 = vst.msk [vmem:[#allocation2 + $0xd0] sm:$0x3] %vm382, 0.0
      %408 = vst.msk [vmem:[#allocation2 + $0xd8] sm:$0xff] %vm379, 0.0
      %409 = vst.msk [vmem:[#allocation2 + $0xe0] sm:$0xff] %vm379, 0.0
      %410 = vst.msk [vmem:[#allocation2 + $0xe8] sm:$0x3] %vm382, 0.0
      %411 = vst.msk [vmem:[#allocation2 + $0xf0] sm:$0xff] %vm379, 0.0
      %412 = vst.msk [vmem:[#allocation2 + $0xf8] sm:$0xff] %vm379, 0.0
      %413 = vst.msk [vmem:[#allocation2 + $0x100] sm:$0x3] %vm382, 0.0
      %414 = vst.msk [vmem:[#allocation2 + $0x108] sm:$0xff] %vm379, 0.0
      %415 = vst.msk [vmem:[#allocation2 + $0x110] sm:$0xff] %vm379, 0.0
      %416 = vst.msk [vmem:[#allocation2 + $0x118] sm:$0x3] %vm382, 0.0
      %417 = vst.msk [vmem:[#allocation2 + $0x120] sm:$0xff] %vm379, 0.0
      %418 = vst.msk [vmem:[#allocation2 + $0x128] sm:$0xff] %vm379, 0.0
      %419 = vst.msk [vmem:[#allocation2 + $0x130] sm:$0x3] %vm382, 0.0
      %420 = vst.msk [vmem:[#allocation2 + $0x138] sm:$0xff] %vm379, 0.0
      %421 = vst.msk [vmem:[#allocation2 + $0x140] sm:$0xff] %vm379, 0.0
      %422 = vst.msk [vmem:[#allocation2 + $0x148] sm:$0x3] %vm382, 0.0
      %423 = vst.msk [vmem:[#allocation2 + $0x150] sm:$0xff] %vm379, 0.0
      %424 = vst.msk [vmem:[#allocation2 + $0x158] sm:$0xff] %vm379, 0.0
      %425 = vst.msk [vmem:[#allocation2 + $0x160] sm:$0x3] %vm382, 0.0
      %426 = vst.msk [vmem:[#allocation2 + $0x168] sm:$0xff] %vm379, 0.0
      %427 = vst.msk [vmem:[#allocation2 + $0x170] sm:$0xff] %vm379, 0.0
      %428 = vst.msk [vmem:[#allocation2 + $0x178] sm:$0x3] %vm382, 0.0
      %429 = vst.msk [vmem:[#allocation2 + $0x180] sm:$0xff] %vm379, 0.0
      %430 = vst.msk [vmem:[#allocation2 + $0x188] sm:$0xff] %vm379, 0.0
      %431 = vst.msk [vmem:[#allocation2 + $0x190] sm:$0x3] %vm382, 0.0
      %432 = vst.msk [vmem:[#allocation2 + $0x198] sm:$0xff] %vm379, 0.0
      %433 = vst.msk [vmem:[#allocation2 + $0x1a0] sm:$0xff] %vm379, 0.0
      %434 = vst.msk [vmem:[#allocation2 + $0x1a8] sm:$0x3] %vm382, 0.0
      %s435 = scalar_lea.vmem [#allocation2], 24
      %436 = vst.msk [vmem:[%s435 + $0x1] sm:$0xff] %vm379, %v347
      %437 = vst.msk [vmem:[%s435 + $0x9] sm:$0xff] %vm379, %v348
      %438 = vst.msk [vmem:[%s435 + $0x19] sm:$0xff] %vm379, %v349
      %439 = vst.msk [vmem:[%s435 + $0x21] sm:$0xff] %vm379, %v350
      %440 = vst.msk [vmem:[%s435 + $0x31] sm:$0xff] %vm379, %v351
      %441 = vst.msk [vmem:[%s435 + $0x39] sm:$0xff] %vm379, %v352
      %442 = vst.msk [vmem:[%s435 + $0x49] sm:$0xff] %vm379, %v353
      %443 = vst.msk [vmem:[%s435 + $0x51] sm:$0xff] %vm379, %v354
      %444 = vst.msk [vmem:[%s435 + $0x61] sm:$0xff] %vm379, %v355
      %445 = vst.msk [vmem:[%s435 + $0x69] sm:$0xff] %vm379, %v356
      %446 = vst.msk [vmem:[%s435 + $0x79] sm:$0xff] %vm379, %v357
      %447 = vst.msk [vmem:[%s435 + $0x81] sm:$0xff] %vm379, %v358
      %448 = vst.msk [vmem:[%s435 + $0x91] sm:$0xff] %vm379, %v359
      %449 = vst.msk [vmem:[%s435 + $0x99] sm:$0xff] %vm379, %v360
      %450 = vst.msk [vmem:[%s435 + $0xa9] sm:$0xff] %vm379, %v361
      %451 = vst.msk [vmem:[%s435 + $0xb1] sm:$0xff] %vm379, %v362
      %452 = vst.msk [vmem:[%s435 + $0xc1] sm:$0xff] %vm379, %v363
      %453 = vst.msk [vmem:[%s435 + $0xc9] sm:$0xff] %vm379, %v364
      %454 = vst.msk [vmem:[%s435 + $0xd9] sm:$0xff] %vm379, %v365
      %455 = vst.msk [vmem:[%s435 + $0xe1] sm:$0xff] %vm379, %v366
      %456 = vst.msk [vmem:[%s435 + $0xf1] sm:$0xff] %vm379, %v367
      %457 = vst.msk [vmem:[%s435 + $0xf9] sm:$0xff] %vm379, %v368
      %458 = vst.msk [vmem:[%s435 + $0x109] sm:$0xff] %vm379, %v369
      %459 = vst.msk [vmem:[%s435 + $0x111] sm:$0xff] %vm379, %v370
      %460 = vst.msk [vmem:[%s435 + $0x121] sm:$0xff] %vm379, %v371
      %461 = vst.msk [vmem:[%s435 + $0x129] sm:$0xff] %vm379, %v372
      %462 = vst.msk [vmem:[%s435 + $0x139] sm:$0xff] %vm379, %v373
      %463 = vst.msk [vmem:[%s435 + $0x141] sm:$0xff] %vm379, %v374
      %464 = vst.msk [vmem:[%s435 + $0x151] sm:$0xff] %vm379, %v375
      %465 = vst.msk [vmem:[%s435 + $0x159] sm:$0xff] %vm379, %v376
      %466 = vst.msk [vmem:[%s435 + $0x169] sm:$0xff] %vm379, %v377
      %467 = vst.msk [vmem:[%s435 + $0x171] sm:$0xff] %vm379, %v378
      %v468 = vld [vmem:[#allocation2] sm:$0xff]
      %v469 = vld [vmem:[#allocation2 + $0x8] sm:$0xff]
      %v470 = vld [vmem:[#allocation2 + $0x10] sm:$0x3]
      %v471 = vld [vmem:[#allocation2 + $0x18] sm:$0xff]
      %v472 = vld [vmem:[#allocation2 + $0x20] sm:$0xff]
      %v473 = vld [vmem:[#allocation2 + $0x28] sm:$0x3]
      %v474 = vld [vmem:[#allocation2 + $0x30] sm:$0xff]
      %v475 = vld [vmem:[#allocation2 + $0x38] sm:$0xff]
      %v476 = vld [vmem:[#allocation2 + $0x40] sm:$0x3]
      %v477 = vld [vmem:[#allocation2 + $0x48] sm:$0xff]
      %v478 = vld [vmem:[#allocation2 + $0x50] sm:$0xff]
      %v479 = vld [vmem:[#allocation2 + $0x58] sm:$0x3]
      %v480 = vld [vmem:[#allocation2 + $0x60] sm:$0xff]
      %v481 = vld [vmem:[#allocation2 + $0x68] sm:$0xff]
      %v482 = vld [vmem:[#allocation2 + $0x70] sm:$0x3]
      %v483 = vld [vmem:[#allocation2 + $0x78] sm:$0xff]
      %v484 = vld [vmem:[#allocation2 + $0x80] sm:$0xff]
      %v485 = vld [vmem:[#allocation2 + $0x88] sm:$0x3]
      %v486 = vld [vmem:[#allocation2 + $0x90] sm:$0xff]
      %v487 = vld [vmem:[#allocation2 + $0x98] sm:$0xff]
      %v488 = vld [vmem:[#allocation2 + $0xa0] sm:$0x3]
      %v489 = vld [vmem:[#allocation2 + $0xa8] sm:$0xff]
      %v490 = vld [vmem:[#allocation2 + $0xb0] sm:$0xff]
      %v491 = vld [vmem:[#allocation2 + $0xb8] sm:$0x3]
      %v492 = vld [vmem:[#allocation2 + $0xc0] sm:$0xff]
      %v493 = vld [vmem:[#allocation2 + $0xc8] sm:$0xff]
      %v494 = vld [vmem:[#allocation2 + $0xd0] sm:$0x3]
      %v495 = vld [vmem:[#allocation2 + $0xd8] sm:$0xff]
      %v496 = vld [vmem:[#allocation2 + $0xe0] sm:$0xff]
      %v497 = vld [vmem:[#allocation2 + $0xe8] sm:$0x3]
      %v498 = vld [vmem:[#allocation2 + $0xf0] sm:$0xff]
      %v499 = vld [vmem:[#allocation2 + $0xf8] sm:$0xff]
      %v500 = vld [vmem:[#allocation2 + $0x100] sm:$0x3]
      %v501 = vld [vmem:[#allocation2 + $0x108] sm:$0xff]
      %v502 = vld [vmem:[#allocation2 + $0x110] sm:$0xff]
      %v503 = vld [vmem:[#allocation2 + $0x118] sm:$0x3]
      %v504 = vld [vmem:[#allocation2 + $0x120] sm:$0xff]
      %v505 = vld [vmem:[#allocation2 + $0x128] sm:$0xff]
      %v506 = vld [vmem:[#allocation2 + $0x130] sm:$0x3]
      %v507 = vld [vmem:[#allocation2 + $0x138] sm:$0xff]
      %v508 = vld [vmem:[#allocation2 + $0x140] sm:$0xff]
      %v509 = vld [vmem:[#allocation2 + $0x148] sm:$0x3]
      %v510 = vld [vmem:[#allocation2 + $0x150] sm:$0xff]
      %v511 = vld [vmem:[#allocation2 + $0x158] sm:$0xff]
      %v512 = vld [vmem:[#allocation2 + $0x160] sm:$0x3]
      %v513 = vld [vmem:[#allocation2 + $0x168] sm:$0xff]
      %v514 = vld [vmem:[#allocation2 + $0x170] sm:$0xff]
      %v515 = vld [vmem:[#allocation2 + $0x178] sm:$0x3]
      %v516 = vld [vmem:[#allocation2 + $0x180] sm:$0xff]
      %v517 = vld [vmem:[#allocation2 + $0x188] sm:$0xff]
      %v518 = vld [vmem:[#allocation2 + $0x190] sm:$0x3]
      %v519 = vld [vmem:[#allocation2 + $0x198] sm:$0xff]
      %v520 = vld [vmem:[#allocation2 + $0x1a0] sm:$0xff]
      %v521 = vld [vmem:[#allocation2 + $0x1a8] sm:$0x3]
      %vm570 = vcmask 1046528
      %v571 = vrot.slane %v468, 1
      %v572 = vrot.slane %v469, 1
      %v573 = vsel %vm570, %v571, %v572
      %v574 = vrot.slane %v470, 1
      %v575 = vsel %vm570, %v572, %v574
      %v576 = vrot.slane %v471, 1
      %v577 = vrot.slane %v472, 1
      %v578 = vsel %vm570, %v576, %v577
      %v579 = vrot.slane %v473, 1
      %v580 = vsel %vm570, %v577, %v579
      %v581 = vrot.slane %v474, 1
      %v582 = vrot.slane %v475, 1
      %v583 = vsel %vm570, %v581, %v582
      %v584 = vrot.slane %v476, 1
      %v585 = vsel %vm570, %v582, %v584
      %v586 = vrot.slane %v477, 1
      %v587 = vrot.slane %v478, 1
      %v588 = vsel %vm570, %v586, %v587
      %v589 = vrot.slane %v479, 1
      %v590 = vsel %vm570, %v587, %v589
      %v591 = vrot.slane %v480, 1
      %v592 = vrot.slane %v481, 1
      %v593 = vsel %vm570, %v591, %v592
      %v594 = vrot.slane %v482, 1
      %v595 = vsel %vm570, %v592, %v594
      %v596 = vrot.slane %v483, 1
      %v597 = vrot.slane %v484, 1
      %v598 = vsel %vm570, %v596, %v597
      %v599 = vrot.slane %v485, 1
      %v600 = vsel %vm570, %v597, %v599
      %v601 = vrot.slane %v486, 1
      %v602 = vrot.slane %v487, 1
      %v603 = vsel %vm570, %v601, %v602
      %v604 = vrot.slane %v488, 1
      %v605 = vsel %vm570, %v602, %v604
      %v606 = vrot.slane %v489, 1
      %v607 = vrot.slane %v490, 1
      %v608 = vsel %vm570, %v606, %v607
      %v609 = vrot.slane %v491, 1
      %v610 = vsel %vm570, %v607, %v609
      %v611 = vrot.slane %v492, 1
      %v612 = vrot.slane %v493, 1
      %v613 = vsel %vm570, %v611, %v612
      %v614 = vrot.slane %v494, 1
      %v615 = vsel %vm570, %v612, %v614
      %v616 = vrot.slane %v495, 1
      %v617 = vrot.slane %v496, 1
      %v618 = vsel %vm570, %v616, %v617
      %v619 = vrot.slane %v497, 1
      %v620 = vsel %vm570, %v617, %v619
      %v621 = vrot.slane %v498, 1
      %v622 = vrot.slane %v499, 1
      %v623 = vsel %vm570, %v621, %v622
      %v624 = vrot.slane %v500, 1
      %v625 = vsel %vm570, %v622, %v624
      %v626 = vrot.slane %v501, 1
      %v627 = vrot.slane %v502, 1
      %v628 = vsel %vm570, %v626, %v627
      %v629 = vrot.slane %v503, 1
      %v630 = vsel %vm570, %v627, %v629
      %v631 = vrot.slane %v504, 1
      %v632 = vrot.slane %v505, 1
      %v633 = vsel %vm570, %v631, %v632
      %v634 = vrot.slane %v506, 1
      %v635 = vsel %vm570, %v632, %v634
      %v636 = vrot.slane %v507, 1
      %v637 = vrot.slane %v508, 1
      %v638 = vsel %vm570, %v636, %v637
      %v639 = vrot.slane %v509, 1
      %v640 = vsel %vm570, %v637, %v639
      %v641 = vrot.slane %v510, 1
      %v642 = vrot.slane %v511, 1
      %v643 = vsel %vm570, %v641, %v642
      %v644 = vrot.slane %v512, 1
      %v645 = vsel %vm570, %v642, %v644
      %v646 = vrot.slane %v513, 1
      %v647 = vrot.slane %v514, 1
      %v648 = vsel %vm570, %v646, %v647
      %v649 = vrot.slane %v515, 1
      %v650 = vsel %vm570, %v647, %v649
      %651 = vrot.lane.b32.xlu0 %v573, 8
      %v652 = vpop.permute.xlu0 %651
      %653 = vrot.lane.b32.xlu0 %v575, 8
      %v654 = vpop.permute.xlu0 %653
      %655 = vrot.lane.b32.xlu0 %v578, 8
      %v656 = vpop.permute.xlu0 %655
      %657 = vrot.lane.b32.xlu0 %v580, 8
      %v658 = vpop.permute.xlu0 %657
      %659 = vrot.lane.b32.xlu0 %v583, 8
      %v660 = vpop.permute.xlu0 %659
      %661 = vrot.lane.b32.xlu0 %v585, 8
      %v662 = vpop.permute.xlu0 %661
      %663 = vrot.lane.b32.xlu0 %v588, 8
      %v664 = vpop.permute.xlu0 %663
      %665 = vrot.lane.b32.xlu0 %v590, 8
      %v666 = vpop.permute.xlu0 %665
      %667 = vrot.lane.b32.xlu0 %v593, 8
      %v668 = vpop.permute.xlu0 %667
      %669 = vrot.lane.b32.xlu0 %v595, 8
      %v670 = vpop.permute.xlu0 %669
      %671 = vrot.lane.b32.xlu0 %v598, 8
      %v672 = vpop.permute.xlu0 %671
      %673 = vrot.lane.b32.xlu0 %v600, 8
      %v674 = vpop.permute.xlu0 %673
      %675 = vrot.lane.b32.xlu0 %v603, 8
      %v676 = vpop.permute.xlu0 %675
      %677 = vrot.lane.b32.xlu0 %v605, 8
      %v678 = vpop.permute.xlu0 %677
      %679 = vrot.lane.b32.xlu0 %v608, 8
      %v680 = vpop.permute.xlu0 %679
      %681 = vrot.lane.b32.xlu0 %v610, 8
      %v682 = vpop.permute.xlu0 %681
      %683 = vrot.lane.b32.xlu0 %v613, 8
      %v684 = vpop.permute.xlu0 %683
      %685 = vrot.lane.b32.xlu0 %v615, 8
      %v686 = vpop.permute.xlu0 %685
      %687 = vrot.lane.b32.xlu0 %v618, 8
      %v688 = vpop.permute.xlu0 %687
      %689 = vrot.lane.b32.xlu0 %v620, 8
      %v690 = vpop.permute.xlu0 %689
      %691 = vrot.lane.b32.xlu0 %v623, 8
      %v692 = vpop.permute.xlu0 %691
      %693 = vrot.lane.b32.xlu0 %v625, 8
      %v694 = vpop.permute.xlu0 %693
      %695 = vrot.lane.b32.xlu0 %v628, 8
      %v696 = vpop.permute.xlu0 %695
      %697 = vrot.lane.b32.xlu0 %v630, 8
      %v698 = vpop.permute.xlu0 %697
      %699 = vrot.lane.b32.xlu0 %v633, 8
      %v700 = vpop.permute.xlu0 %699
      %701 = vrot.lane.b32.xlu0 %v635, 8
      %v702 = vpop.permute.xlu0 %701
      %703 = vrot.lane.b32.xlu0 %v638, 8
      %v704 = vpop.permute.xlu0 %703
      %705 = vrot.lane.b32.xlu0 %v640, 8
      %v706 = vpop.permute.xlu0 %705
      %707 = vrot.lane.b32.xlu0 %v643, 8
      %v708 = vpop.permute.xlu0 %707
      %709 = vrot.lane.b32.xlu0 %v645, 8
      %v710 = vpop.permute.xlu0 %709
      %711 = vrot.lane.b32.xlu0 %v648, 8
      %v712 = vpop.permute.xlu0 %711
      %713 = vrot.lane.b32.xlu0 %v650, 8
      %v714 = vpop.permute.xlu0 %713
      %vm747 = vcmask 1045504
      %v748 = vrot.slane %v468, 2
      %v749 = vrot.slane %v469, 2
      %v750 = vsel %vm747, %v748, %v749
      %v751 = vrot.slane %v470, 2
      %v752 = vsel %vm747, %v749, %v751
      %v753 = vrot.slane %v471, 2
      %v754 = vrot.slane %v472, 2
      %v755 = vsel %vm747, %v753, %v754
      %v756 = vrot.slane %v473, 2
      %v757 = vsel %vm747, %v754, %v756
      %v758 = vrot.slane %v474, 2
      %v759 = vrot.slane %v475, 2
      %v760 = vsel %vm747, %v758, %v759
      %v761 = vrot.slane %v476, 2
      %v762 = vsel %vm747, %v759, %v761
      %v763 = vrot.slane %v477, 2
      %v764 = vrot.slane %v478, 2
      %v765 = vsel %vm747, %v763, %v764
      %v766 = vrot.slane %v479, 2
      %v767 = vsel %vm747, %v764, %v766
      %v768 = vrot.slane %v480, 2
      %v769 = vrot.slane %v481, 2
      %v770 = vsel %vm747, %v768, %v769
      %v771 = vrot.slane %v482, 2
      %v772 = vsel %vm747, %v769, %v771
      %v773 = vrot.slane %v483, 2
      %v774 = vrot.slane %v484, 2
      %v775 = vsel %vm747, %v773, %v774
      %v776 = vrot.slane %v485, 2
      %v777 = vsel %vm747, %v774, %v776
      %v778 = vrot.slane %v486, 2
      %v779 = vrot.slane %v487, 2
      %v780 = vsel %vm747, %v778, %v779
      %v781 = vrot.slane %v488, 2
      %v782 = vsel %vm747, %v779, %v781
      %v783 = vrot.slane %v489, 2
      %v784 = vrot.slane %v490, 2
      %v785 = vsel %vm747, %v783, %v784
      %v786 = vrot.slane %v491, 2
      %v787 = vsel %vm747, %v784, %v786
      %v788 = vrot.slane %v492, 2
      %v789 = vrot.slane %v493, 2
      %v790 = vsel %vm747, %v788, %v789
      %v791 = vrot.slane %v494, 2
      %v792 = vsel %vm747, %v789, %v791
      %v793 = vrot.slane %v495, 2
      %v794 = vrot.slane %v496, 2
      %v795 = vsel %vm747, %v793, %v794
      %v796 = vrot.slane %v497, 2
      %v797 = vsel %vm747, %v794, %v796
      %v798 = vrot.slane %v498, 2
      %v799 = vrot.slane %v499, 2
      %v800 = vsel %vm747, %v798, %v799
      %v801 = vrot.slane %v500, 2
      %v802 = vsel %vm747, %v799, %v801
      %v803 = vrot.slane %v501, 2
      %v804 = vrot.slane %v502, 2
      %v805 = vsel %vm747, %v803, %v804
      %v806 = vrot.slane %v503, 2
      %v807 = vsel %vm747, %v804, %v806
      %v808 = vrot.slane %v504, 2
      %v809 = vrot.slane %v505, 2
      %v810 = vsel %vm747, %v808, %v809
      %v811 = vrot.slane %v506, 2
      %v812 = vsel %vm747, %v809, %v811
      %v813 = vrot.slane %v507, 2
      %v814 = vrot.slane %v508, 2
      %v815 = vsel %vm747, %v813, %v814
      %v816 = vrot.slane %v509, 2
      %v817 = vsel %vm747, %v814, %v816
      %v818 = vrot.slane %v510, 2
      %v819 = vrot.slane %v511, 2
      %v820 = vsel %vm747, %v818, %v819
      %v821 = vrot.slane %v512, 2
      %v822 = vsel %vm747, %v819, %v821
      %v823 = vrot.slane %v513, 2
      %v824 = vrot.slane %v514, 2
      %v825 = vsel %vm747, %v823, %v824
      %v826 = vrot.slane %v515, 2
      %v827 = vsel %vm747, %v824, %v826
      %828 = vrot.lane.b32.xlu0 %v750, 16
      %v829 = vpop.permute.xlu0 %828
      %830 = vrot.lane.b32.xlu0 %v752, 16
      %v831 = vpop.permute.xlu0 %830
      %832 = vrot.lane.b32.xlu0 %v755, 16
      %v833 = vpop.permute.xlu0 %832
      %834 = vrot.lane.b32.xlu0 %v757, 16
      %v835 = vpop.permute.xlu0 %834
      %836 = vrot.lane.b32.xlu0 %v760, 16
      %v837 = vpop.permute.xlu0 %836
      %838 = vrot.lane.b32.xlu0 %v762, 16
      %v839 = vpop.permute.xlu0 %838
      %840 = vrot.lane.b32.xlu0 %v765, 16
      %v841 = vpop.permute.xlu0 %840
      %842 = vrot.lane.b32.xlu0 %v767, 16
      %v843 = vpop.permute.xlu0 %842
      %844 = vrot.lane.b32.xlu0 %v770, 16
      %v845 = vpop.permute.xlu0 %844
      %846 = vrot.lane.b32.xlu0 %v772, 16
      %v847 = vpop.permute.xlu0 %846
      %848 = vrot.lane.b32.xlu0 %v775, 16
      %v849 = vpop.permute.xlu0 %848
      %850 = vrot.lane.b32.xlu0 %v777, 16
      %v851 = vpop.permute.xlu0 %850
      %852 = vrot.lane.b32.xlu0 %v780, 16
      %v853 = vpop.permute.xlu0 %852
      %854 = vrot.lane.b32.xlu0 %v782, 16
      %v855 = vpop.permute.xlu0 %854
      %856 = vrot.lane.b32.xlu0 %v785, 16
      %v857 = vpop.permute.xlu0 %856
      %858 = vrot.lane.b32.xlu0 %v787, 16
      %v859 = vpop.permute.xlu0 %858
      %860 = vrot.lane.b32.xlu0 %v790, 16
      %v861 = vpop.permute.xlu0 %860
      %862 = vrot.lane.b32.xlu0 %v792, 16
      %v863 = vpop.permute.xlu0 %862
      %864 = vrot.lane.b32.xlu0 %v795, 16
      %v865 = vpop.permute.xlu0 %864
      %866 = vrot.lane.b32.xlu0 %v797, 16
      %v867 = vpop.permute.xlu0 %866
      %868 = vrot.lane.b32.xlu0 %v800, 16
      %v869 = vpop.permute.xlu0 %868
      %870 = vrot.lane.b32.xlu0 %v802, 16
      %v871 = vpop.permute.xlu0 %870
      %872 = vrot.lane.b32.xlu0 %v805, 16
      %v873 = vpop.permute.xlu0 %872
      %874 = vrot.lane.b32.xlu0 %v807, 16
      %v875 = vpop.permute.xlu0 %874
      %876 = vrot.lane.b32.xlu0 %v810, 16
      %v877 = vpop.permute.xlu0 %876
      %878 = vrot.lane.b32.xlu0 %v812, 16
      %v879 = vpop.permute.xlu0 %878
      %880 = vrot.lane.b32.xlu0 %v815, 16
      %v881 = vpop.permute.xlu0 %880
      %882 = vrot.lane.b32.xlu0 %v817, 16
      %v883 = vpop.permute.xlu0 %882
      %884 = vrot.lane.b32.xlu0 %v820, 16
      %v885 = vpop.permute.xlu0 %884
      %886 = vrot.lane.b32.xlu0 %v822, 16
      %v887 = vpop.permute.xlu0 %886
      %888 = vrot.lane.b32.xlu0 %v825, 16
      %v889 = vpop.permute.xlu0 %888
      %890 = vrot.lane.b32.xlu0 %v827, 16
      %v891 = vpop.permute.xlu0 %890
      %926 = vrot.lane.b32.xlu0 %v471, 24
      %v927 = vpop.permute.xlu0 %926
      %928 = vrot.lane.b32.xlu0 %v472, 24
      %v929 = vpop.permute.xlu0 %928
      %930 = vrot.lane.b32.xlu0 %v474, 24
      %v931 = vpop.permute.xlu0 %930
      %932 = vrot.lane.b32.xlu0 %v475, 24
      %v933 = vpop.permute.xlu0 %932
      %934 = vrot.lane.b32.xlu0 %v477, 24
      %v935 = vpop.permute.xlu0 %934
      %936 = vrot.lane.b32.xlu0 %v478, 24
      %v937 = vpop.permute.xlu0 %936
      %938 = vrot.lane.b32.xlu0 %v480, 24
      %v939 = vpop.permute.xlu0 %938
      %940 = vrot.lane.b32.xlu0 %v481, 24
      %v941 = vpop.permute.xlu0 %940
      %942 = vrot.lane.b32.xlu0 %v483, 24
      %v943 = vpop.permute.xlu0 %942
      %944 = vrot.lane.b32.xlu0 %v484, 24
      %v945 = vpop.permute.xlu0 %944
      %946 = vrot.lane.b32.xlu0 %v486, 24
      %v947 = vpop.permute.xlu0 %946
      %948 = vrot.lane.b32.xlu0 %v487, 24
      %v949 = vpop.permute.xlu0 %948
      %950 = vrot.lane.b32.xlu0 %v489, 24
      %v951 = vpop.permute.xlu0 %950
      %952 = vrot.lane.b32.xlu0 %v490, 24
      %v953 = vpop.permute.xlu0 %952
      %954 = vrot.lane.b32.xlu0 %v492, 24
      %v955 = vpop.permute.xlu0 %954
      %956 = vrot.lane.b32.xlu0 %v493, 24
      %v957 = vpop.permute.xlu0 %956
      %958 = vrot.lane.b32.xlu0 %v495, 24
      %v959 = vpop.permute.xlu0 %958
      %960 = vrot.lane.b32.xlu0 %v496, 24
      %v961 = vpop.permute.xlu0 %960
      %962 = vrot.lane.b32.xlu0 %v498, 24
      %v963 = vpop.permute.xlu0 %962
      %964 = vrot.lane.b32.xlu0 %v499, 24
      %v965 = vpop.permute.xlu0 %964
      %966 = vrot.lane.b32.xlu0 %v501, 24
      %v967 = vpop.permute.xlu0 %966
      %968 = vrot.lane.b32.xlu0 %v502, 24
      %v969 = vpop.permute.xlu0 %968
      %970 = vrot.lane.b32.xlu0 %v504, 24
      %v971 = vpop.permute.xlu0 %970
      %972 = vrot.lane.b32.xlu0 %v505, 24
      %v973 = vpop.permute.xlu0 %972
      %974 = vrot.lane.b32.xlu0 %v507, 24
      %v975 = vpop.permute.xlu0 %974
      %976 = vrot.lane.b32.xlu0 %v508, 24
      %v977 = vpop.permute.xlu0 %976
      %978 = vrot.lane.b32.xlu0 %v510, 24
      %v979 = vpop.permute.xlu0 %978
      %980 = vrot.lane.b32.xlu0 %v511, 24
      %v981 = vpop.permute.xlu0 %980
      %982 = vrot.lane.b32.xlu0 %v513, 24
      %v983 = vpop.permute.xlu0 %982
      %984 = vrot.lane.b32.xlu0 %v514, 24
      %v985 = vpop.permute.xlu0 %984
      %986 = vrot.lane.b32.xlu0 %v516, 24
      %v987 = vpop.permute.xlu0 %986
      %988 = vrot.lane.b32.xlu0 %v517, 24
      %v989 = vpop.permute.xlu0 %988
      %v1023 = vrot.slane %v516, 1
      %v1024 = vrot.slane %v517, 1
      %v1025 = vsel %vm570, %v1023, %v1024
      %v1026 = vrot.slane %v518, 1
      %v1027 = vsel %vm570, %v1024, %v1026
      %1028 = vrot.lane.b32.xlu0 %v578, 32
      %v1029 = vpop.permute.xlu0 %1028
      %1030 = vrot.lane.b32.xlu0 %v580, 32
      %v1031 = vpop.permute.xlu0 %1030
      %1032 = vrot.lane.b32.xlu0 %v583, 32
      %v1033 = vpop.permute.xlu0 %1032
      %1034 = vrot.lane.b32.xlu0 %v585, 32
      %v1035 = vpop.permute.xlu0 %1034
      %1036 = vrot.lane.b32.xlu0 %v588, 32
      %v1037 = vpop.permute.xlu0 %1036
      %1038 = vrot.lane.b32.xlu0 %v590, 32
      %v1039 = vpop.permute.xlu0 %1038
      %1040 = vrot.lane.b32.xlu0 %v593, 32
      %v1041 = vpop.permute.xlu0 %1040
      %1042 = vrot.lane.b32.xlu0 %v595, 32
      %v1043 = vpop.permute.xlu0 %1042
      %1044 = vrot.lane.b32.xlu0 %v598, 32
      %v1045 = vpop.permute.xlu0 %1044
      %1046 = vrot.lane.b32.xlu0 %v600, 32
      %v1047 = vpop.permute.xlu0 %1046
      %1048 = vrot.lane.b32.xlu0 %v603, 32
      %v1049 = vpop.permute.xlu0 %1048
      %1050 = vrot.lane.b32.xlu0 %v605, 32
      %v1051 = vpop.permute.xlu0 %1050
      %1052 = vrot.lane.b32.xlu0 %v608, 32
      %v1053 = vpop.permute.xlu0 %1052
      %1054 = vrot.lane.b32.xlu0 %v610, 32
      %v1055 = vpop.permute.xlu0 %1054
      %1056 = vrot.lane.b32.xlu0 %v613, 32
      %v1057 = vpop.permute.xlu0 %1056
      %1058 = vrot.lane.b32.xlu0 %v615, 32
      %v1059 = vpop.permute.xlu0 %1058
      %1060 = vrot.lane.b32.xlu0 %v618, 32
      %v1061 = vpop.permute.xlu0 %1060
      %1062 = vrot.lane.b32.xlu0 %v620, 32
      %v1063 = vpop.permute.xlu0 %1062
      %1064 = vrot.lane.b32.xlu0 %v623, 32
      %v1065 = vpop.permute.xlu0 %1064
      %1066 = vrot.lane.b32.xlu0 %v625, 32
      %v1067 = vpop.permute.xlu0 %1066
      %1068 = vrot.lane.b32.xlu0 %v628, 32
      %v1069 = vpop.permute.xlu0 %1068
      %1070 = vrot.lane.b32.xlu0 %v630, 32
      %v1071 = vpop.permute.xlu0 %1070
      %1072 = vrot.lane.b32.xlu0 %v633, 32
      %v1073 = vpop.permute.xlu0 %1072
      %1074 = vrot.lane.b32.xlu0 %v635, 32
      %v1075 = vpop.permute.xlu0 %1074
      %1076 = vrot.lane.b32.xlu0 %v638, 32
      %v1077 = vpop.permute.xlu0 %1076
      %1078 = vrot.lane.b32.xlu0 %v640, 32
      %v1079 = vpop.permute.xlu0 %1078
      %1080 = vrot.lane.b32.xlu0 %v643, 32
      %v1081 = vpop.permute.xlu0 %1080
      %1082 = vrot.lane.b32.xlu0 %v645, 32
      %v1083 = vpop.permute.xlu0 %1082
      %1084 = vrot.lane.b32.xlu0 %v648, 32
      %v1085 = vpop.permute.xlu0 %1084
      %1086 = vrot.lane.b32.xlu0 %v650, 32
      %v1087 = vpop.permute.xlu0 %1086
      %1088 = vrot.lane.b32.xlu0 %v1025, 32
      %v1089 = vpop.permute.xlu0 %1088
      %1090 = vrot.lane.b32.xlu0 %v1027, 32
      %v1091 = vpop.permute.xlu0 %1090
      %v1124 = vrot.slane %v516, 2
      %v1125 = vrot.slane %v517, 2
      %v1126 = vsel %vm747, %v1124, %v1125
      %v1127 = vrot.slane %v518, 2
      %v1128 = vsel %vm747, %v1125, %v1127
      %1129 = vrot.lane.b32.xlu0 %v755, 40
      %v1130 = vpop.permute.xlu0 %1129
      %1131 = vrot.lane.b32.xlu0 %v757, 40
      %v1132 = vpop.permute.xlu0 %1131
      %1133 = vrot.lane.b32.xlu0 %v760, 40
      %v1134 = vpop.permute.xlu0 %1133
      %1135 = vrot.lane.b32.xlu0 %v762, 40
      %v1136 = vpop.permute.xlu0 %1135
      %1137 = vrot.lane.b32.xlu0 %v765, 40
      %v1138 = vpop.permute.xlu0 %1137
      %1139 = vrot.lane.b32.xlu0 %v767, 40
      %v1140 = vpop.permute.xlu0 %1139
      %1141 = vrot.lane.b32.xlu0 %v770, 40
      %v1142 = vpop.permute.xlu0 %1141
      %1143 = vrot.lane.b32.xlu0 %v772, 40
      %v1144 = vpop.permute.xlu0 %1143
      %1145 = vrot.lane.b32.xlu0 %v775, 40
      %v1146 = vpop.permute.xlu0 %1145
      %1147 = vrot.lane.b32.xlu0 %v777, 40
      %v1148 = vpop.permute.xlu0 %1147
      %1149 = vrot.lane.b32.xlu0 %v780, 40
      %v1150 = vpop.permute.xlu0 %1149
      %1151 = vrot.lane.b32.xlu0 %v782, 40
      %v1152 = vpop.permute.xlu0 %1151
      %1153 = vrot.lane.b32.xlu0 %v785, 40
      %v1154 = vpop.permute.xlu0 %1153
      %1155 = vrot.lane.b32.xlu0 %v787, 40
      %v1156 = vpop.permute.xlu0 %1155
      %1157 = vrot.lane.b32.xlu0 %v790, 40
      %v1158 = vpop.permute.xlu0 %1157
      %1159 = vrot.lane.b32.xlu0 %v792, 40
      %v1160 = vpop.permute.xlu0 %1159
      %1161 = vrot.lane.b32.xlu0 %v795, 40
      %v1162 = vpop.permute.xlu0 %1161
      %1163 = vrot.lane.b32.xlu0 %v797, 40
      %v1164 = vpop.permute.xlu0 %1163
      %1165 = vrot.lane.b32.xlu0 %v800, 40
      %v1166 = vpop.permute.xlu0 %1165
      %1167 = vrot.lane.b32.xlu0 %v802, 40
      %v1168 = vpop.permute.xlu0 %1167
      %1169 = vrot.lane.b32.xlu0 %v805, 40
      %v1170 = vpop.permute.xlu0 %1169
      %1171 = vrot.lane.b32.xlu0 %v807, 40
      %v1172 = vpop.permute.xlu0 %1171
      %1173 = vrot.lane.b32.xlu0 %v810, 40
      %v1174 = vpop.permute.xlu0 %1173
      %1175 = vrot.lane.b32.xlu0 %v812, 40
      %v1176 = vpop.permute.xlu0 %1175
      %1177 = vrot.lane.b32.xlu0 %v815, 40
      %v1178 = vpop.permute.xlu0 %1177
      %1179 = vrot.lane.b32.xlu0 %v817, 40
      %v1180 = vpop.permute.xlu0 %1179
      %1181 = vrot.lane.b32.xlu0 %v820, 40
      %v1182 = vpop.permute.xlu0 %1181
      %1183 = vrot.lane.b32.xlu0 %v822, 40
      %v1184 = vpop.permute.xlu0 %1183
      %1185 = vrot.lane.b32.xlu0 %v825, 40
      %v1186 = vpop.permute.xlu0 %1185
      %1187 = vrot.lane.b32.xlu0 %v827, 40
      %v1188 = vpop.permute.xlu0 %1187
      %1189 = vrot.lane.b32.xlu0 %v1126, 40
      %v1190 = vpop.permute.xlu0 %1189
      %1191 = vrot.lane.b32.xlu0 %v1128, 40
      %v1192 = vpop.permute.xlu0 %1191
      %1227 = vrot.lane.b32.xlu0 %v474, 48
      %v1228 = vpop.permute.xlu0 %1227
      %1229 = vrot.lane.b32.xlu0 %v475, 48
      %v1230 = vpop.permute.xlu0 %1229
      %1231 = vrot.lane.b32.xlu0 %v477, 48
      %v1232 = vpop.permute.xlu0 %1231
      %1233 = vrot.lane.b32.xlu0 %v478, 48
      %v1234 = vpop.permute.xlu0 %1233
      %1235 = vrot.lane.b32.xlu0 %v480, 48
      %v1236 = vpop.permute.xlu0 %1235
      %1237 = vrot.lane.b32.xlu0 %v481, 48
      %v1238 = vpop.permute.xlu0 %1237
      %1239 = vrot.lane.b32.xlu0 %v483, 48
      %v1240 = vpop.permute.xlu0 %1239
      %1241 = vrot.lane.b32.xlu0 %v484, 48
      %v1242 = vpop.permute.xlu0 %1241
      %1243 = vrot.lane.b32.xlu0 %v486, 48
      %v1244 = vpop.permute.xlu0 %1243
      %1245 = vrot.lane.b32.xlu0 %v487, 48
      %v1246 = vpop.permute.xlu0 %1245
      %1247 = vrot.lane.b32.xlu0 %v489, 48
      %v1248 = vpop.permute.xlu0 %1247
      %1249 = vrot.lane.b32.xlu0 %v490, 48
      %v1250 = vpop.permute.xlu0 %1249
      %1251 = vrot.lane.b32.xlu0 %v492, 48
      %v1252 = vpop.permute.xlu0 %1251
      %1253 = vrot.lane.b32.xlu0 %v493, 48
      %v1254 = vpop.permute.xlu0 %1253
      %1255 = vrot.lane.b32.xlu0 %v495, 48
      %v1256 = vpop.permute.xlu0 %1255
      %1257 = vrot.lane.b32.xlu0 %v496, 48
      %v1258 = vpop.permute.xlu0 %1257
      %1259 = vrot.lane.b32.xlu0 %v498, 48
      %v1260 = vpop.permute.xlu0 %1259
      %1261 = vrot.lane.b32.xlu0 %v499, 48
      %v1262 = vpop.permute.xlu0 %1261
      %1263 = vrot.lane.b32.xlu0 %v501, 48
      %v1264 = vpop.permute.xlu0 %1263
      %1265 = vrot.lane.b32.xlu0 %v502, 48
      %v1266 = vpop.permute.xlu0 %1265
      %1267 = vrot.lane.b32.xlu0 %v504, 48
      %v1268 = vpop.permute.xlu0 %1267
      %1269 = vrot.lane.b32.xlu0 %v505, 48
      %v1270 = vpop.permute.xlu0 %1269
      %1271 = vrot.lane.b32.xlu0 %v507, 48
      %v1272 = vpop.permute.xlu0 %1271
      %1273 = vrot.lane.b32.xlu0 %v508, 48
      %v1274 = vpop.permute.xlu0 %1273
      %1275 = vrot.lane.b32.xlu0 %v510, 48
      %v1276 = vpop.permute.xlu0 %1275
      %1277 = vrot.lane.b32.xlu0 %v511, 48
      %v1278 = vpop.permute.xlu0 %1277
      %1279 = vrot.lane.b32.xlu0 %v513, 48
      %v1280 = vpop.permute.xlu0 %1279
      %1281 = vrot.lane.b32.xlu0 %v514, 48
      %v1282 = vpop.permute.xlu0 %1281
      %1283 = vrot.lane.b32.xlu0 %v516, 48
      %v1284 = vpop.permute.xlu0 %1283
      %1285 = vrot.lane.b32.xlu0 %v517, 48
      %v1286 = vpop.permute.xlu0 %1285
      %1287 = vrot.lane.b32.xlu0 %v519, 48
      %v1288 = vpop.permute.xlu0 %1287
      %1289 = vrot.lane.b32.xlu0 %v520, 48
      %v1290 = vpop.permute.xlu0 %1289
      %v1324 = vrot.slane %v519, 1
      %v1325 = vrot.slane %v520, 1
      %v1326 = vsel %vm570, %v1324, %v1325
      %v1327 = vrot.slane %v521, 1
      %v1328 = vsel %vm570, %v1325, %v1327
      %1329 = vrot.lane.b32.xlu0 %v583, 56
      %v1330 = vpop.permute.xlu0 %1329
      %1331 = vrot.lane.b32.xlu0 %v585, 56
      %v1332 = vpop.permute.xlu0 %1331
      %1333 = vrot.lane.b32.xlu0 %v588, 56
      %v1334 = vpop.permute.xlu0 %1333
      %1335 = vrot.lane.b32.xlu0 %v590, 56
      %v1336 = vpop.permute.xlu0 %1335
      %1337 = vrot.lane.b32.xlu0 %v593, 56
      %v1338 = vpop.permute.xlu0 %1337
      %1339 = vrot.lane.b32.xlu0 %v595, 56
      %v1340 = vpop.permute.xlu0 %1339
      %1341 = vrot.lane.b32.xlu0 %v598, 56
      %v1342 = vpop.permute.xlu0 %1341
      %1343 = vrot.lane.b32.xlu0 %v600, 56
      %v1344 = vpop.permute.xlu0 %1343
      %1345 = vrot.lane.b32.xlu0 %v603, 56
      %v1346 = vpop.permute.xlu0 %1345
      %1347 = vrot.lane.b32.xlu0 %v605, 56
      %v1348 = vpop.permute.xlu0 %1347
      %1349 = vrot.lane.b32.xlu0 %v608, 56
      %v1350 = vpop.permute.xlu0 %1349
      %1351 = vrot.lane.b32.xlu0 %v610, 56
      %v1352 = vpop.permute.xlu0 %1351
      %1353 = vrot.lane.b32.xlu0 %v613, 56
      %v1354 = vpop.permute.xlu0 %1353
      %1355 = vrot.lane.b32.xlu0 %v615, 56
      %v1356 = vpop.permute.xlu0 %1355
      %1357 = vrot.lane.b32.xlu0 %v618, 56
      %v1358 = vpop.permute.xlu0 %1357
      %1359 = vrot.lane.b32.xlu0 %v620, 56
      %v1360 = vpop.permute.xlu0 %1359
      %1361 = vrot.lane.b32.xlu0 %v623, 56
      %v1362 = vpop.permute.xlu0 %1361
      %1363 = vrot.lane.b32.xlu0 %v625, 56
      %v1364 = vpop.permute.xlu0 %1363
      %1365 = vrot.lane.b32.xlu0 %v628, 56
      %v1366 = vpop.permute.xlu0 %1365
      %1367 = vrot.lane.b32.xlu0 %v630, 56
      %v1368 = vpop.permute.xlu0 %1367
      %1369 = vrot.lane.b32.xlu0 %v633, 56
      %v1370 = vpop.permute.xlu0 %1369
      %1371 = vrot.lane.b32.xlu0 %v635, 56
      %v1372 = vpop.permute.xlu0 %1371
      %1373 = vrot.lane.b32.xlu0 %v638, 56
      %v1374 = vpop.permute.xlu0 %1373
      %1375 = vrot.lane.b32.xlu0 %v640, 56
      %v1376 = vpop.permute.xlu0 %1375
      %1377 = vrot.lane.b32.xlu0 %v643, 56
      %v1378 = vpop.permute.xlu0 %1377
      %1379 = vrot.lane.b32.xlu0 %v645, 56
      %v1380 = vpop.permute.xlu0 %1379
      %1381 = vrot.lane.b32.xlu0 %v648, 56
      %v1382 = vpop.permute.xlu0 %1381
      %1383 = vrot.lane.b32.xlu0 %v650, 56
      %v1384 = vpop.permute.xlu0 %1383
      %1385 = vrot.lane.b32.xlu0 %v1025, 56
      %v1386 = vpop.permute.xlu0 %1385
      %1387 = vrot.lane.b32.xlu0 %v1027, 56
      %v1388 = vpop.permute.xlu0 %1387
      %1389 = vrot.lane.b32.xlu0 %v1326, 56
      %v1390 = vpop.permute.xlu0 %1389
      %1391 = vrot.lane.b32.xlu0 %v1328, 56
      %v1392 = vpop.permute.xlu0 %1391
      %v1425 = vrot.slane %v519, 2
      %v1426 = vrot.slane %v520, 2
      %v1427 = vsel %vm747, %v1425, %v1426
      %v1428 = vrot.slane %v521, 2
      %v1429 = vsel %vm747, %v1426, %v1428
      %1430 = vrot.lane.b32.xlu0 %v760, 64
      %v1431 = vpop.permute.xlu0 %1430
      %1432 = vrot.lane.b32.xlu0 %v762, 64
      %v1433 = vpop.permute.xlu0 %1432
      %1434 = vrot.lane.b32.xlu0 %v765, 64
      %v1435 = vpop.permute.xlu0 %1434
      %1436 = vrot.lane.b32.xlu0 %v767, 64
      %v1437 = vpop.permute.xlu0 %1436
      %1438 = vrot.lane.b32.xlu0 %v770, 64
      %v1439 = vpop.permute.xlu0 %1438
      %1440 = vrot.lane.b32.xlu0 %v772, 64
      %v1441 = vpop.permute.xlu0 %1440
      %1442 = vrot.lane.b32.xlu0 %v775, 64
      %v1443 = vpop.permute.xlu0 %1442
      %1444 = vrot.lane.b32.xlu0 %v777, 64
      %v1445 = vpop.permute.xlu0 %1444
      %1446 = vrot.lane.b32.xlu0 %v780, 64
      %v1447 = vpop.permute.xlu0 %1446
      %1448 = vrot.lane.b32.xlu0 %v782, 64
      %v1449 = vpop.permute.xlu0 %1448
      %1450 = vrot.lane.b32.xlu0 %v785, 64
      %v1451 = vpop.permute.xlu0 %1450
      %1452 = vrot.lane.b32.xlu0 %v787, 64
      %v1453 = vpop.permute.xlu0 %1452
      %1454 = vrot.lane.b32.xlu0 %v790, 64
      %v1455 = vpop.permute.xlu0 %1454
      %1456 = vrot.lane.b32.xlu0 %v792, 64
      %v1457 = vpop.permute.xlu0 %1456
      %1458 = vrot.lane.b32.xlu0 %v795, 64
      %v1459 = vpop.permute.xlu0 %1458
      %1460 = vrot.lane.b32.xlu0 %v797, 64
      %v1461 = vpop.permute.xlu0 %1460
      %1462 = vrot.lane.b32.xlu0 %v800, 64
      %v1463 = vpop.permute.xlu0 %1462
      %1464 = vrot.lane.b32.xlu0 %v802, 64
      %v1465 = vpop.permute.xlu0 %1464
      %1466 = vrot.lane.b32.xlu0 %v805, 64
      %v1467 = vpop.permute.xlu0 %1466
      %1468 = vrot.lane.b32.xlu0 %v807, 64
      %v1469 = vpop.permute.xlu0 %1468
      %1470 = vrot.lane.b32.xlu0 %v810, 64
      %v1471 = vpop.permute.xlu0 %1470
      %1472 = vrot.lane.b32.xlu0 %v812, 64
      %v1473 = vpop.permute.xlu0 %1472
      %1474 = vrot.lane.b32.xlu0 %v815, 64
      %v1475 = vpop.permute.xlu0 %1474
      %1476 = vrot.lane.b32.xlu0 %v817, 64
      %v1477 = vpop.permute.xlu0 %1476
      %1478 = vrot.lane.b32.xlu0 %v820, 64
      %v1479 = vpop.permute.xlu0 %1478
      %1480 = vrot.lane.b32.xlu0 %v822, 64
      %v1481 = vpop.permute.xlu0 %1480
      %1482 = vrot.lane.b32.xlu0 %v825, 64
      %v1483 = vpop.permute.xlu0 %1482
      %1484 = vrot.lane.b32.xlu0 %v827, 64
      %v1485 = vpop.permute.xlu0 %1484
      %1486 = vrot.lane.b32.xlu0 %v1126, 64
      %v1487 = vpop.permute.xlu0 %1486
      %1488 = vrot.lane.b32.xlu0 %v1128, 64
      %v1489 = vpop.permute.xlu0 %1488
      %1490 = vrot.lane.b32.xlu0 %v1427, 64
      %v1491 = vpop.permute.xlu0 %1490
      %1492 = vrot.lane.b32.xlu0 %v1429, 64
      %v1493 = vpop.permute.xlu0 %1492
      %v1526 = vsel %vm379, %v468, %v652
      %v1527 = vsel %vm379, %v469, %v654
      %v1528 = vsel %vm379, %v471, %v656
      %v1529 = vsel %vm379, %v472, %v658
      %v1530 = vsel %vm379, %v474, %v660
      %v1531 = vsel %vm379, %v475, %v662
      %v1532 = vsel %vm379, %v477, %v664
      %v1533 = vsel %vm379, %v478, %v666
      %v1534 = vsel %vm379, %v480, %v668
      %v1535 = vsel %vm379, %v481, %v670
      %v1536 = vsel %vm379, %v483, %v672
      %v1537 = vsel %vm379, %v484, %v674
      %v1538 = vsel %vm379, %v486, %v676
      %v1539 = vsel %vm379, %v487, %v678
      %v1540 = vsel %vm379, %v489, %v680
      %v1541 = vsel %vm379, %v490, %v682
      %v1542 = vsel %vm379, %v492, %v684
      %v1543 = vsel %vm379, %v493, %v686
      %v1544 = vsel %vm379, %v495, %v688
      %v1545 = vsel %vm379, %v496, %v690
      %v1546 = vsel %vm379, %v498, %v692
      %v1547 = vsel %vm379, %v499, %v694
      %v1548 = vsel %vm379, %v501, %v696
      %v1549 = vsel %vm379, %v502, %v698
      %v1550 = vsel %vm379, %v504, %v700
      %v1551 = vsel %vm379, %v505, %v702
      %v1552 = vsel %vm379, %v507, %v704
      %v1553 = vsel %vm379, %v508, %v706
      %v1554 = vsel %vm379, %v510, %v708
      %v1555 = vsel %vm379, %v511, %v710
      %v1556 = vsel %vm379, %v513, %v712
      %v1557 = vsel %vm379, %v514, %v714
      %vm1558 = vcmask 130048
      %v1559 = vsel %vm1558, %v1526, %v829
      %v1560 = vsel %vm1558, %v1527, %v831
      %v1561 = vsel %vm1558, %v1528, %v833
      %v1562 = vsel %vm1558, %v1529, %v835
      %v1563 = vsel %vm1558, %v1530, %v837
      %v1564 = vsel %vm1558, %v1531, %v839
      %v1565 = vsel %vm1558, %v1532, %v841
      %v1566 = vsel %vm1558, %v1533, %v843
      %v1567 = vsel %vm1558, %v1534, %v845
      %v1568 = vsel %vm1558, %v1535, %v847
      %v1569 = vsel %vm1558, %v1536, %v849
      %v1570 = vsel %vm1558, %v1537, %v851
      %v1571 = vsel %vm1558, %v1538, %v853
      %v1572 = vsel %vm1558, %v1539, %v855
      %v1573 = vsel %vm1558, %v1540, %v857
      %v1574 = vsel %vm1558, %v1541, %v859
      %v1575 = vsel %vm1558, %v1542, %v861
      %v1576 = vsel %vm1558, %v1543, %v863
      %v1577 = vsel %vm1558, %v1544, %v865
      %v1578 = vsel %vm1558, %v1545, %v867
      %v1579 = vsel %vm1558, %v1546, %v869
      %v1580 = vsel %vm1558, %v1547, %v871
      %v1581 = vsel %vm1558, %v1548, %v873
      %v1582 = vsel %vm1558, %v1549, %v875
      %v1583 = vsel %vm1558, %v1550, %v877
      %v1584 = vsel %vm1558, %v1551, %v879
      %v1585 = vsel %vm1558, %v1552, %v881
      %v1586 = vsel %vm1558, %v1553, %v883
      %v1587 = vsel %vm1558, %v1554, %v885
      %v1588 = vsel %vm1558, %v1555, %v887
      %v1589 = vsel %vm1558, %v1556, %v889
      %v1590 = vsel %vm1558, %v1557, %v891
      %vm1591 = vcmask 195584
      %v1592 = vsel %vm1591, %v1559, %v927
      %v1593 = vsel %vm1591, %v1560, %v929
      %v1594 = vsel %vm1591, %v1561, %v931
      %v1595 = vsel %vm1591, %v1562, %v933
      %v1596 = vsel %vm1591, %v1563, %v935
      %v1597 = vsel %vm1591, %v1564, %v937
      %v1598 = vsel %vm1591, %v1565, %v939
      %v1599 = vsel %vm1591, %v1566, %v941
      %v1600 = vsel %vm1591, %v1567, %v943
      %v1601 = vsel %vm1591, %v1568, %v945
      %v1602 = vsel %vm1591, %v1569, %v947
      %v1603 = vsel %vm1591, %v1570, %v949
      %v1604 = vsel %vm1591, %v1571, %v951
      %v1605 = vsel %vm1591, %v1572, %v953
      %v1606 = vsel %vm1591, %v1573, %v955
      %v1607 = vsel %vm1591, %v1574, %v957
      %v1608 = vsel %vm1591, %v1575, %v959
      %v1609 = vsel %vm1591, %v1576, %v961
      %v1610 = vsel %vm1591, %v1577, %v963
      %v1611 = vsel %vm1591, %v1578, %v965
      %v1612 = vsel %vm1591, %v1579, %v967
      %v1613 = vsel %vm1591, %v1580, %v969
      %v1614 = vsel %vm1591, %v1581, %v971
      %v1615 = vsel %vm1591, %v1582, %v973
      %v1616 = vsel %vm1591, %v1583, %v975
      %v1617 = vsel %vm1591, %v1584, %v977
      %v1618 = vsel %vm1591, %v1585, %v979
      %v1619 = vsel %vm1591, %v1586, %v981
      %v1620 = vsel %vm1591, %v1587, %v983
      %v1621 = vsel %vm1591, %v1588, %v985
      %v1622 = vsel %vm1591, %v1589, %v987
      %v1623 = vsel %vm1591, %v1590, %v989
      %vm1624 = vcmask 261120
      %v1625 = vsel %vm1624, %v1592, %v1029
      %v1626 = vsel %vm1624, %v1593, %v1031
      %v1627 = vsel %vm1624, %v1594, %v1033
      %v1628 = vsel %vm1624, %v1595, %v1035
      %v1629 = vsel %vm1624, %v1596, %v1037
      %v1630 = vsel %vm1624, %v1597, %v1039
      %v1631 = vsel %vm1624, %v1598, %v1041
      %v1632 = vsel %vm1624, %v1599, %v1043
      %v1633 = vsel %vm1624, %v1600, %v1045
      %v1634 = vsel %vm1624, %v1601, %v1047
      %v1635 = vsel %vm1624, %v1602, %v1049
      %v1636 = vsel %vm1624, %v1603, %v1051
      %v1637 = vsel %vm1624, %v1604, %v1053
      %v1638 = vsel %vm1624, %v1605, %v1055
      %v1639 = vsel %vm1624, %v1606, %v1057
      %v1640 = vsel %vm1624, %v1607, %v1059
      %v1641 = vsel %vm1624, %v1608, %v1061
      %v1642 = vsel %vm1624, %v1609, %v1063
      %v1643 = vsel %vm1624, %v1610, %v1065
      %v1644 = vsel %vm1624, %v1611, %v1067
      %v1645 = vsel %vm1624, %v1612, %v1069
      %v1646 = vsel %vm1624, %v1613, %v1071
      %v1647 = vsel %vm1624, %v1614, %v1073
      %v1648 = vsel %vm1624, %v1615, %v1075
      %v1649 = vsel %vm1624, %v1616, %v1077
      %v1650 = vsel %vm1624, %v1617, %v1079
      %v1651 = vsel %vm1624, %v1618, %v1081
      %v1652 = vsel %vm1624, %v1619, %v1083
      %v1653 = vsel %vm1624, %v1620, %v1085
      %v1654 = vsel %vm1624, %v1621, %v1087
      %v1655 = vsel %vm1624, %v1622, %v1089
      %v1656 = vsel %vm1624, %v1623, %v1091
      %vm1657 = vcmask 326656
      %v1658 = vsel %vm1657, %v1625, %v1130
      %v1659 = vsel %vm1657, %v1626, %v1132
      %v1660 = vsel %vm1657, %v1627, %v1134
      %v1661 = vsel %vm1657, %v1628, %v1136
      %v1662 = vsel %vm1657, %v1629, %v1138
      %v1663 = vsel %vm1657, %v1630, %v1140
      %v1664 = vsel %vm1657, %v1631, %v1142
      %v1665 = vsel %vm1657, %v1632, %v1144
      %v1666 = vsel %vm1657, %v1633, %v1146
      %v1667 = vsel %vm1657, %v1634, %v1148
      %v1668 = vsel %vm1657, %v1635, %v1150
      %v1669 = vsel %vm1657, %v1636, %v1152
      %v1670 = vsel %vm1657, %v1637, %v1154
      %v1671 = vsel %vm1657, %v1638, %v1156
      %v1672 = vsel %vm1657, %v1639, %v1158
      %v1673 = vsel %vm1657, %v1640, %v1160
      %v1674 = vsel %vm1657, %v1641, %v1162
      %v1675 = vsel %vm1657, %v1642, %v1164
      %v1676 = vsel %vm1657, %v1643, %v1166
      %v1677 = vsel %vm1657, %v1644, %v1168
      %v1678 = vsel %vm1657, %v1645, %v1170
      %v1679 = vsel %vm1657, %v1646, %v1172
      %v1680 = vsel %vm1657, %v1647, %v1174
      %v1681 = vsel %vm1657, %v1648, %v1176
      %v1682 = vsel %vm1657, %v1649, %v1178
      %v1683 = vsel %vm1657, %v1650, %v1180
      %v1684 = vsel %vm1657, %v1651, %v1182
      %v1685 = vsel %vm1657, %v1652, %v1184
      %v1686 = vsel %vm1657, %v1653, %v1186
      %v1687 = vsel %vm1657, %v1654, %v1188
      %v1688 = vsel %vm1657, %v1655, %v1190
      %v1689 = vsel %vm1657, %v1656, %v1192
      %vm1690 = vcmask 392192
      %v1691 = vsel %vm1690, %v1658, %v1228
      %v1692 = vsel %vm1690, %v1659, %v1230
      %v1693 = vsel %vm1690, %v1660, %v1232
      %v1694 = vsel %vm1690, %v1661, %v1234
      %v1695 = vsel %vm1690, %v1662, %v1236
      %v1696 = vsel %vm1690, %v1663, %v1238
      %v1697 = vsel %vm1690, %v1664, %v1240
      %v1698 = vsel %vm1690, %v1665, %v1242
      %v1699 = vsel %vm1690, %v1666, %v1244
      %v1700 = vsel %vm1690, %v1667, %v1246
      %v1701 = vsel %vm1690, %v1668, %v1248
      %v1702 = vsel %vm1690, %v1669, %v1250
      %v1703 = vsel %vm1690, %v1670, %v1252
      %v1704 = vsel %vm1690, %v1671, %v1254
      %v1705 = vsel %vm1690, %v1672, %v1256
      %v1706 = vsel %vm1690, %v1673, %v1258
      %v1707 = vsel %vm1690, %v1674, %v1260
      %v1708 = vsel %vm1690, %v1675, %v1262
      %v1709 = vsel %vm1690, %v1676, %v1264
      %v1710 = vsel %vm1690, %v1677, %v1266
      %v1711 = vsel %vm1690, %v1678, %v1268
      %v1712 = vsel %vm1690, %v1679, %v1270
      %v1713 = vsel %vm1690, %v1680, %v1272
      %v1714 = vsel %vm1690, %v1681, %v1274
      %v1715 = vsel %vm1690, %v1682, %v1276
      %v1716 = vsel %vm1690, %v1683, %v1278
      %v1717 = vsel %vm1690, %v1684, %v1280
      %v1718 = vsel %vm1690, %v1685, %v1282
      %v1719 = vsel %vm1690, %v1686, %v1284
      %v1720 = vsel %vm1690, %v1687, %v1286
      %v1721 = vsel %vm1690, %v1688, %v1288
      %v1722 = vsel %vm1690, %v1689, %v1290
      %vm1723 = vcmask 457728
      %v1724 = vsel %vm1723, %v1691, %v1330
      %v1725 = vsel %vm1723, %v1692, %v1332
      %v1726 = vsel %vm1723, %v1693, %v1334
      %v1727 = vsel %vm1723, %v1694, %v1336
      %v1728 = vsel %vm1723, %v1695, %v1338
      %v1729 = vsel %vm1723, %v1696, %v1340
      %v1730 = vsel %vm1723, %v1697, %v1342
      %v1731 = vsel %vm1723, %v1698, %v1344
      %v1732 = vsel %vm1723, %v1699, %v1346
      %v1733 = vsel %vm1723, %v1700, %v1348
      %v1734 = vsel %vm1723, %v1701, %v1350
      %v1735 = vsel %vm1723, %v1702, %v1352
      %v1736 = vsel %vm1723, %v1703, %v1354
      %v1737 = vsel %vm1723, %v1704, %v1356
      %v1738 = vsel %vm1723, %v1705, %v1358
      %v1739 = vsel %vm1723, %v1706, %v1360
      %v1740 = vsel %vm1723, %v1707, %v1362
      %v1741 = vsel %vm1723, %v1708, %v1364
      %v1742 = vsel %vm1723, %v1709, %v1366
      %v1743 = vsel %vm1723, %v1710, %v1368
      %v1744 = vsel %vm1723, %v1711, %v1370
      %v1745 = vsel %vm1723, %v1712, %v1372
      %v1746 = vsel %vm1723, %v1713, %v1374
      %v1747 = vsel %vm1723, %v1714, %v1376
      %v1748 = vsel %vm1723, %v1715, %v1378
      %v1749 = vsel %vm1723, %v1716, %v1380
      %v1750 = vsel %vm1723, %v1717, %v1382
      %v1751 = vsel %vm1723, %v1718, %v1384
      %v1752 = vsel %vm1723, %v1719, %v1386
      %v1753 = vsel %vm1723, %v1720, %v1388
      %v1754 = vsel %vm1723, %v1721, %v1390
      %v1755 = vsel %vm1723, %v1722, %v1392
      %vm1756 = vcmask 523264
      %v1757 = vsel %vm1756, %v1724, %v1431
      %v1758 = vsel %vm1756, %v1725, %v1433
      %v1759 = vsel %vm1756, %v1726, %v1435
      %v1760 = vsel %vm1756, %v1727, %v1437
      %v1761 = vsel %vm1756, %v1728, %v1439
      %v1762 = vsel %vm1756, %v1729, %v1441
      %v1763 = vsel %vm1756, %v1730, %v1443
      %v1764 = vsel %vm1756, %v1731, %v1445
      %v1765 = vsel %vm1756, %v1732, %v1447
      %v1766 = vsel %vm1756, %v1733, %v1449
      %v1767 = vsel %vm1756, %v1734, %v1451
      %v1768 = vsel %vm1756, %v1735, %v1453
      %v1769 = vsel %vm1756, %v1736, %v1455
      %v1770 = vsel %vm1756, %v1737, %v1457
      %v1771 = vsel %vm1756, %v1738, %v1459
      %v1772 = vsel %vm1756, %v1739, %v1461
      %v1773 = vsel %vm1756, %v1740, %v1463
      %v1774 = vsel %vm1756, %v1741, %v1465
      %v1775 = vsel %vm1756, %v1742, %v1467
      %v1776 = vsel %vm1756, %v1743, %v1469
      %v1777 = vsel %vm1756, %v1744, %v1471
      %v1778 = vsel %vm1756, %v1745, %v1473
      %v1779 = vsel %vm1756, %v1746, %v1475
      %v1780 = vsel %vm1756, %v1747, %v1477
      %v1781 = vsel %vm1756, %v1748, %v1479
      %v1782 = vsel %vm1756, %v1749, %v1481
      %v1783 = vsel %vm1756, %v1750, %v1483
      %v1784 = vsel %vm1756, %v1751, %v1485
      %v1785 = vsel %vm1756, %v1752, %v1487
      %v1786 = vsel %vm1756, %v1753, %v1489
      %v1787 = vsel %vm1756, %v1754, %v1491
      %v1788 = vsel %vm1756, %v1755, %v1493
      %v1789 = vpack.c.bf16 %v1758, %v1757
      %v1790 = vpack.c.bf16 %v1760, %v1759
      %v1791 = vpack.c.bf16 %v1762, %v1761
      %v1792 = vpack.c.bf16 %v1764, %v1763
      %v1793 = vpack.c.bf16 %v1766, %v1765
      %v1794 = vpack.c.bf16 %v1768, %v1767
      %v1795 = vpack.c.bf16 %v1770, %v1769
      %v1796 = vpack.c.bf16 %v1772, %v1771
      %v1797 = vpack.c.bf16 %v1774, %v1773
      %v1798 = vpack.c.bf16 %v1776, %v1775
      %v1799 = vpack.c.bf16 %v1778, %v1777
      %v1800 = vpack.c.bf16 %v1780, %v1779
      %v1801 = vpack.c.bf16 %v1782, %v1781
      %v1802 = vpack.c.bf16 %v1784, %v1783
      %v1803 = vpack.c.bf16 %v1786, %v1785
      %v1804 = vpack.c.bf16 %v1788, %v1787
      %v1805 = vld [vmem:[%s1] sm:$0xf]
      %v1806 = vld [vmem:[%s1 + $0x4] sm:$0xf]
      %v1807 = vld [vmem:[%s1 + $0x8] sm:$0xf]
      %v1808 = vld [vmem:[%s1 + $0xc] sm:$0xf]
      %v1809 = vld [vmem:[%s1 + $0x10] sm:$0xf]
      %v1810 = vld [vmem:[%s1 + $0x14] sm:$0xf]
      %v1811 = vld [vmem:[%s1 + $0x18] sm:$0xf]
      %v1812 = vld [vmem:[%s1 + $0x1c] sm:$0xf]
      %v1813 = vld [vmem:[%s1 + $0x20] sm:$0xf]
      %v1823 = vunpack.c.l.b16 %v1805
      %v1824 = vunpack.c.l.b16 %v1806
      %v1825 = vunpack.c.l.b16 %v1807
      %v1826 = vunpack.c.l.b16 %v1808
      %v1827 = vunpack.c.l.b16 %v1809
      %v1828 = vunpack.c.l.b16 %v1810
      %v1829 = vunpack.c.l.b16 %v1811
      %v1830 = vunpack.c.l.b16 %v1812
      %v1831 = vunpack.c.l.b16 %v1813
      %v1832 = vpack.c.b16 %v1824, %v1823
      %v1833 = vpack.c.b16 %v1826, %v1825
      %v1834 = vpack.c.b16 %v1828, %v1827
      %v1835 = vpack.c.b16 %v1830, %v1829
      %v1836 = vpack.c.b16 %v1831, %v1831
      %vm1841 = vcmask 588800
      %v1843 = vsel %vm1841, %v1789, 0
      %v1846 = vsel %vm1841, %v1790, 0
      %v1849 = vsel %vm1841, %v1791, 0
      %v1852 = vsel %vm1841, %v1792, 0
      %v1855 = vsel %vm1841, %v1793, 0
      %v1858 = vsel %vm1841, %v1794, 0
      %v1861 = vsel %vm1841, %v1795, 0
      %v1864 = vsel %vm1841, %v1796, 0
      %v1867 = vsel %vm1841, %v1797, 0
      %v1870 = vsel %vm1841, %v1798, 0
      %v1873 = vsel %vm1841, %v1799, 0
      %v1876 = vsel %vm1841, %v1800, 0
      %v1879 = vsel %vm1841, %v1801, 0
      %v1882 = vsel %vm1841, %v1802, 0
      %v1885 = vsel %vm1841, %v1803, 0
      %v1888 = vsel %vm1841, %v1804, 0
      %vm1890 = vcmask 1043456
      %v1892 = vsel %vm1890, %v1836, 0
      %1894 = vmatprep.subr.bf16.mxu0 0
      %1895 = vmatpush1.bf16.msra.mxu0 %v1832
      %1896 = vmatprep.subr.bf16.mxu0 0
      %1897 = vmatpush1.bf16.msra.mxu0 %v1833
      %1898 = vmatprep.subr.bf16.mxu0 0
      %1899 = vmatpush1.bf16.msra.mxu0 %v1834
      %1900 = vmatprep.subr.bf16.mxu0 0
      %1901 = vmatpush1.bf16.msra.mxu0 %v1835
      %1902 = vmatprep.subr.bf16.mxu0 0
      %1903 = vmatpush1.bf16.msra.mxu0 %v1892
      %1904 = vmatprep.subr.bf16.mxu0 0
      %1905 = vmatpush1.bf16.msra.mxu0 0
      %1906 = vmatprep.subr.bf16.mxu0 0
      %1907 = vmatpush1.bf16.msra.mxu0 0
      %1908 = vmatprep.subr.bf16.mxu0 0
      %1909 = vmatpush1.bf16.msra.mxu0 0
      %1910 = vmatprep.subr.bf16.mxu0 0
      %1911 = vmatpush1.bf16.msra.mxu0 0
      %1912 = vmatprep.subr.bf16.mxu0 0
      %1913 = vmatpush1.bf16.msra.mxu0 0
      %1914 = vmatprep.subr.bf16.mxu0 0
      %1915 = vmatpush1.bf16.msra.mxu0 0
      %1916 = vmatprep.subr.bf16.mxu0 0
      %1917 = vmatpush1.bf16.msra.mxu0 0
      %1918 = vmatprep.subr.bf16.mxu0 0
      %1919 = vmatpush1.bf16.msra.mxu0 0
      %1920 = vmatprep.subr.bf16.mxu0 0
      %1921 = vmatpush1.bf16.msra.mxu0 0
      %1922 = vmatprep.subr.bf16.mxu0 0
      %1923 = vmatpush1.bf16.msra.mxu0 0
      %1924 = vmatprep.subr.bf16.mxu0 0
      %1925 = vmatpush1.bf16.msra.mxu0 0
      %1926 = vmatprep.mubr.bf16.mxu0 0
      %1927 = vmatmul.mubr.bf16.gmra.mrb[0].mxu0 %v1843
      %v1928 = vpop.f32.mrb[0].mxu0
      %v1929 = vadd.f32 0.0, %v1928
      %v1930 = vpop.f32.mrb[0].mxu0
      %v1931 = vpop.f32.mrb[0].mxu0
      %v1932 = vadd.f32 0.0, %v1931
      %v1933 = vpop.f32.mrb[0].mxu0
      %1934 = vmatprep.mubr.bf16.mxu0 0
      %1935 = vmatmul.mubr.bf16.gmra.mrb[0].mxu0 %v1846
      %v1936 = vpop.f32.mrb[0].mxu0
      %v1937 = vadd.f32 0.0, %v1936
      %v1938 = vpop.f32.mrb[0].mxu0
      %v1939 = vpop.f32.mrb[0].mxu0
      %v1940 = vadd.f32 0.0, %v1939
      %v1941 = vpop.f32.mrb[0].mxu0
      %1942 = vmatprep.mubr.bf16.mxu0 0
      %1943 = vmatmul.mubr.bf16.gmra.mrb[0].mxu0 %v1849
      %v1944 = vpop.f32.mrb[0].mxu0
      %v1945 = vadd.f32 0.0, %v1944
      %v1946 = vpop.f32.mrb[0].mxu0
      %v1947 = vpop.f32.mrb[0].mxu0
      %v1948 = vadd.f32 0.0, %v1947
      %v1949 = vpop.f32.mrb[0].mxu0
      %1950 = vmatprep.mubr.bf16.mxu0 0
      %1951 = vmatmul.mubr.bf16.gmra.mrb[0].mxu0 %v1852
      %v1952 = vpop.f32.mrb[0].mxu0
      %v1953 = vadd.f32 0.0, %v1952
      %v1954 = vpop.f32.mrb[0].mxu0
      %v1955 = vpop.f32.mrb[0].mxu0
      %v1956 = vadd.f32 0.0, %v1955
      %v1957 = vpop.f32.mrb[0].mxu0
      %1958 = vmatprep.mubr.bf16.mxu0 0
      %1959 = vmatmul.mubr.bf16.gmra.mrb[0].mxu0 %v1855
      %v1960 = vpop.f32.mrb[0].mxu0
      %v1961 = vadd.f32 0.0, %v1960
      %v1962 = vpop.f32.mrb[0].mxu0
      %v1963 = vpop.f32.mrb[0].mxu0
      %v1964 = vadd.f32 0.0, %v1963
      %v1965 = vpop.f32.mrb[0].mxu0
      %1966 = vmatprep.mubr.bf16.mxu0 0
      %1967 = vmatmul.mubr.bf16.gmra.mrb[0].mxu0 %v1858
      %v1968 = vpop.f32.mrb[0].mxu0
      %v1969 = vadd.f32 0.0, %v1968
      %v1970 = vpop.f32.mrb[0].mxu0
      %v1971 = vpop.f32.mrb[0].mxu0
      %v1972 = vadd.f32 0.0, %v1971
      %v1973 = vpop.f32.mrb[0].mxu0
      %1974 = vmatprep.mubr.bf16.mxu0 0
      %1975 = vmatmul.mubr.bf16.gmra.mrb[0].mxu0 %v1861
      %v1976 = vpop.f32.mrb[0].mxu0
      %v1977 = vadd.f32 0.0, %v1976
      %v1978 = vpop.f32.mrb[0].mxu0
      %v1979 = vpop.f32.mrb[0].mxu0
      %v1980 = vadd.f32 0.0, %v1979
      %v1981 = vpop.f32.mrb[0].mxu0
      %1982 = vmatprep.mubr.bf16.mxu0 0
      %1983 = vmatmul.mubr.bf16.gmra.mrb[0].mxu0 %v1864
      %v1984 = vpop.f32.mrb[0].mxu0
      %v1985 = vadd.f32 0.0, %v1984
      %v1986 = vpop.f32.mrb[0].mxu0
      %v1987 = vpop.f32.mrb[0].mxu0
      %v1988 = vadd.f32 0.0, %v1987
      %v1989 = vpop.f32.mrb[0].mxu0
      %1990 = vmatprep.mubr.bf16.mxu0 0
      %1991 = vmatmul.mubr.bf16.gmra.mrb[0].mxu0 %v1867
      %v1992 = vpop.f32.mrb[0].mxu0
      %v1993 = vadd.f32 0.0, %v1992
      %v1994 = vpop.f32.mrb[0].mxu0
      %v1995 = vpop.f32.mrb[0].mxu0
      %v1996 = vadd.f32 0.0, %v1995
      %v1997 = vpop.f32.mrb[0].mxu0
      %1998 = vmatprep.mubr.bf16.mxu0 0
      %1999 = vmatmul.mubr.bf16.gmra.mrb[0].mxu0 %v1870
      %v2000 = vpop.f32.mrb[0].mxu0
      %v2001 = vadd.f32 0.0, %v2000
      %v2002 = vpop.f32.mrb[0].mxu0
      %v2003 = vpop.f32.mrb[0].mxu0
      %v2004 = vadd.f32 0.0, %v2003
      %v2005 = vpop.f32.mrb[0].mxu0
      %2006 = vmatprep.mubr.bf16.mxu0 0
      %2007 = vmatmul.mubr.bf16.gmra.mrb[0].mxu0 %v1873
      %v2008 = vpop.f32.mrb[0].mxu0
      %v2009 = vadd.f32 0.0, %v2008
      %v2010 = vpop.f32.mrb[0].mxu0
      %v2011 = vpop.f32.mrb[0].mxu0
      %v2012 = vadd.f32 0.0, %v2011
      %v2013 = vpop.f32.mrb[0].mxu0
      %2014 = vmatprep.mubr.bf16.mxu0 0
      %2015 = vmatmul.mubr.bf16.gmra.mrb[0].mxu0 %v1876
      %v2016 = vpop.f32.mrb[0].mxu0
      %v2017 = vadd.f32 0.0, %v2016
      %v2018 = vpop.f32.mrb[0].mxu0
      %v2019 = vpop.f32.mrb[0].mxu0
      %v2020 = vadd.f32 0.0, %v2019
      %v2021 = vpop.f32.mrb[0].mxu0
      %2022 = vmatprep.mubr.bf16.mxu0 0
      %2023 = vmatmul.mubr.bf16.gmra.mrb[0].mxu0 %v1879
      %v2024 = vpop.f32.mrb[0].mxu0
      %v2025 = vadd.f32 0.0, %v2024
      %v2026 = vpop.f32.mrb[0].mxu0
      %v2027 = vpop.f32.mrb[0].mxu0
      %v2028 = vadd.f32 0.0, %v2027
      %v2029 = vpop.f32.mrb[0].mxu0
      %2030 = vmatprep.mubr.bf16.mxu0 0
      %2031 = vmatmul.mubr.bf16.gmra.mrb[0].mxu0 %v1882
      %v2032 = vpop.f32.mrb[0].mxu0
      %v2033 = vadd.f32 0.0, %v2032
      %v2034 = vpop.f32.mrb[0].mxu0
      %v2035 = vpop.f32.mrb[0].mxu0
      %v2036 = vadd.f32 0.0, %v2035
      %v2037 = vpop.f32.mrb[0].mxu0
      %2038 = vmatprep.mubr.bf16.mxu0 0
      %2039 = vmatmul.mubr.bf16.gmra.mrb[0].mxu0 %v1885
      %v2040 = vpop.f32.mrb[0].mxu0
      %v2041 = vadd.f32 0.0, %v2040
      %v2042 = vpop.f32.mrb[0].mxu0
      %v2043 = vpop.f32.mrb[0].mxu0
      %v2044 = vadd.f32 0.0, %v2043
      %v2045 = vpop.f32.mrb[0].mxu0
      %2046 = vmatprep.mubr.bf16.mxu0 0
      %2047 = vmatmul.mubr.bf16.gmra.mrb[0].mxu0 %v1888
      %v2048 = vpop.f32.mrb[0].mxu0
      %v2049 = vadd.f32 0.0, %v2048
      %v2050 = vpop.f32.mrb[0].mxu0
      %v2051 = vpop.f32.mrb[0].mxu0
      %v2052 = vadd.f32 0.0, %v2051
      %v2053 = vpop.f32.mrb[0].mxu0
      %2054 = vdwg.mxu0
      %v2055 = vsel %vm379, %v1929, 0.0
      %v2056 = vsel %vm379, %v1932, 0.0
      %v2057 = vadd.f32 %v2055, %v2056
      %v2058 = vsel %vm379, %v1937, 0.0
      %v2059 = vadd.f32 %v2057, %v2058
      %v2060 = vsel %vm379, %v1940, 0.0
      %v2061 = vadd.f32 %v2059, %v2060
      %v2062 = vsel %vm379, %v1945, 0.0
      %v2063 = vadd.f32 %v2061, %v2062
      %v2064 = vsel %vm379, %v1948, 0.0
      %v2065 = vadd.f32 %v2063, %v2064
      %v2066 = vsel %vm379, %v1953, 0.0
      %v2067 = vadd.f32 %v2065, %v2066
      %v2068 = vsel %vm379, %v1956, 0.0
      %v2069 = vadd.f32 %v2067, %v2068
      %v2070 = vsel %vm379, %v1961, 0.0
      %v2071 = vadd.f32 %v2069, %v2070
      %v2072 = vsel %vm379, %v1964, 0.0
      %v2073 = vadd.f32 %v2071, %v2072
      %v2074 = vsel %vm379, %v1969, 0.0
      %v2075 = vadd.f32 %v2073, %v2074
      %v2076 = vsel %vm379, %v1972, 0.0
      %v2077 = vadd.f32 %v2075, %v2076
      %v2078 = vsel %vm379, %v1977, 0.0
      %v2079 = vadd.f32 %v2077, %v2078
      %v2080 = vsel %vm379, %v1980, 0.0
      %v2081 = vadd.f32 %v2079, %v2080
      %v2082 = vsel %vm379, %v1985, 0.0
      %v2083 = vadd.f32 %v2081, %v2082
      %v2084 = vsel %vm379, %v1988, 0.0
      %v2085 = vadd.f32 %v2083, %v2084
      %v2086 = vsel %vm379, %v1993, 0.0
      %v2087 = vadd.f32 %v2085, %v2086
      %v2088 = vsel %vm379, %v1996, 0.0
      %v2089 = vadd.f32 %v2087, %v2088
      %v2090 = vsel %vm379, %v2001, 0.0
      %v2091 = vadd.f32 %v2089, %v2090
      %v2092 = vsel %vm379, %v2004, 0.0
      %v2093 = vadd.f32 %v2091, %v2092
      %v2094 = vsel %vm379, %v2009, 0.0
      %v2095 = vadd.f32 %v2093, %v2094
      %v2096 = vsel %vm379, %v2012, 0.0
      %v2097 = vadd.f32 %v2095, %v2096
      %v2098 = vsel %vm379, %v2017, 0.0
      %v2099 = vadd.f32 %v2097, %v2098
      %v2100 = vsel %vm379, %v2020, 0.0
      %v2101 = vadd.f32 %v2099, %v2100
      %v2102 = vsel %vm379, %v2025, 0.0
      %v2103 = vadd.f32 %v2101, %v2102
      %v2104 = vsel %vm379, %v2028, 0.0
      %v2105 = vadd.f32 %v2103, %v2104
      %v2106 = vsel %vm379, %v2033, 0.0
      %v2107 = vadd.f32 %v2105, %v2106
      %v2108 = vsel %vm379, %v2036, 0.0
      %v2109 = vadd.f32 %v2107, %v2108
      %v2110 = vsel %vm379, %v2041, 0.0
      %v2111 = vadd.f32 %v2109, %v2110
      %v2112 = vsel %vm379, %v2044, 0.0
      %v2113 = vadd.f32 %v2111, %v2112
      %v2114 = vsel %vm379, %v2049, 0.0
      %v2115 = vadd.f32 %v2113, %v2114
      %v2116 = vsel %vm379, %v2052, 0.0
      %v2117 = vadd.f32 %v2115, %v2116
      %v2118 = vrot.slane %v2117, 4
      %v2119 = vadd.f32 %v2117, %v2118
      %v2120 = vrot.slane %v2119, 2
      %v2121 = vadd.f32 %v2119, %v2120
      %v2122 = vrot.slane %v2121, 1
      %v2123 = vadd.f32 %v2121, %v2122
      %v2124 = vmul.f32 %v1929, %v1929
      %v2125 = vmul.f32 %v1932, %v1932
      %v2126 = vmul.f32 %v1937, %v1937
      %v2127 = vmul.f32 %v1940, %v1940
      %v2128 = vmul.f32 %v1945, %v1945
      %v2129 = vmul.f32 %v1948, %v1948
      %v2130 = vmul.f32 %v1953, %v1953
      %v2131 = vmul.f32 %v1956, %v1956
      %v2132 = vmul.f32 %v1961, %v1961
      %v2133 = vmul.f32 %v1964, %v1964
      %v2134 = vmul.f32 %v1969, %v1969
      %v2135 = vmul.f32 %v1972, %v1972
      %v2136 = vmul.f32 %v1977, %v1977
      %v2137 = vmul.f32 %v1980, %v1980
      %v2138 = vmul.f32 %v1985, %v1985
      %v2139 = vmul.f32 %v1988, %v1988
      %v2140 = vmul.f32 %v1993, %v1993
      %v2141 = vmul.f32 %v1996, %v1996
      %v2142 = vmul.f32 %v2001, %v2001
      %v2143 = vmul.f32 %v2004, %v2004
      %v2144 = vmul.f32 %v2009, %v2009
      %v2145 = vmul.f32 %v2012, %v2012
      %v2146 = vmul.f32 %v2017, %v2017
      %v2147 = vmul.f32 %v2020, %v2020
      %v2148 = vmul.f32 %v2025, %v2025
      %v2149 = vmul.f32 %v2028, %v2028
      %v2150 = vmul.f32 %v2033, %v2033
      %v2151 = vmul.f32 %v2036, %v2036
      %v2152 = vmul.f32 %v2041, %v2041
      %v2153 = vmul.f32 %v2044, %v2044
      %v2154 = vmul.f32 %v2049, %v2049
      %v2155 = vmul.f32 %v2052, %v2052
      %v2156 = vsel %vm379, %v2124, 0.0
      %v2157 = vsel %vm379, %v2125, 0.0
      %v2158 = vadd.f32 %v2156, %v2157
      %v2159 = vsel %vm379, %v2126, 0.0
      %v2160 = vadd.f32 %v2158, %v2159
      %v2161 = vsel %vm379, %v2127, 0.0
      %v2162 = vadd.f32 %v2160, %v2161
      %v2163 = vsel %vm379, %v2128, 0.0
      %v2164 = vadd.f32 %v2162, %v2163
      %v2165 = vsel %vm379, %v2129, 0.0
      %v2166 = vadd.f32 %v2164, %v2165
      %v2167 = vsel %vm379, %v2130, 0.0
      %v2168 = vadd.f32 %v2166, %v2167
      %v2169 = vsel %vm379, %v2131, 0.0
      %v2170 = vadd.f32 %v2168, %v2169
      %v2171 = vsel %vm379, %v2132, 0.0
      %v2172 = vadd.f32 %v2170, %v2171
      %v2173 = vsel %vm379, %v2133, 0.0
      %v2174 = vadd.f32 %v2172, %v2173
      %v2175 = vsel %vm379, %v2134, 0.0
      %v2176 = vadd.f32 %v2174, %v2175
      %v2177 = vsel %vm379, %v2135, 0.0
      %v2178 = vadd.f32 %v2176, %v2177
      %v2179 = vsel %vm379, %v2136, 0.0
      %v2180 = vadd.f32 %v2178, %v2179
      %v2181 = vsel %vm379, %v2137, 0.0
      %v2182 = vadd.f32 %v2180, %v2181
      %v2183 = vsel %vm379, %v2138, 0.0
      %v2184 = vadd.f32 %v2182, %v2183
      %v2185 = vsel %vm379, %v2139, 0.0
      %v2186 = vadd.f32 %v2184, %v2185
      %v2187 = vsel %vm379, %v2140, 0.0
      %v2188 = vadd.f32 %v2186, %v2187
      %v2189 = vsel %vm379, %v2141, 0.0
      %v2190 = vadd.f32 %v2188, %v2189
      %v2191 = vsel %vm379, %v2142, 0.0
      %v2192 = vadd.f32 %v2190, %v2191
      %v2193 = vsel %vm379, %v2143, 0.0
      %v2194 = vadd.f32 %v2192, %v2193
      %v2195 = vsel %vm379, %v2144, 0.0
      %v2196 = vadd.f32 %v2194, %v2195
      %v2197 = vsel %vm379, %v2145, 0.0
      %v2198 = vadd.f32 %v2196, %v2197
      %v2199 = vsel %vm379, %v2146, 0.0
      %v2200 = vadd.f32 %v2198, %v2199
      %v2201 = vsel %vm379, %v2147, 0.0
      %v2202 = vadd.f32 %v2200, %v2201
      %v2203 = vsel %vm379, %v2148, 0.0
      %v2204 = vadd.f32 %v2202, %v2203
      %v2205 = vsel %vm379, %v2149, 0.0
      %v2206 = vadd.f32 %v2204, %v2205
      %v2207 = vsel %vm379, %v2150, 0.0
      %v2208 = vadd.f32 %v2206, %v2207
      %v2209 = vsel %vm379, %v2151, 0.0
      %v2210 = vadd.f32 %v2208, %v2209
      %v2211 = vsel %vm379, %v2152, 0.0
      %v2212 = vadd.f32 %v2210, %v2211
      %v2213 = vsel %vm379, %v2153, 0.0
      %v2214 = vadd.f32 %v2212, %v2213
      %v2215 = vsel %vm379, %v2154, 0.0
      %v2216 = vadd.f32 %v2214, %v2215
      %v2217 = vsel %vm379, %v2155, 0.0
      %v2218 = vadd.f32 %v2216, %v2217
      %v2219 = vrot.slane %v2218, 4
      %v2220 = vadd.f32 %v2218, %v2219
      %v2221 = vrot.slane %v2220, 2
      %v2222 = vadd.f32 %v2220, %v2221
      %v2223 = vrot.slane %v2222, 1
      %v2224 = vadd.f32 %v2222, %v2223
      %vm2225 = vcmask 1040384
      %v2226 = vsel %vm2225, %v2123, %v2224
      %2227 = vst.msk [vmem:[%s235] sm:$0x3] %vm382, %v2226
      %2228 = vst.msk [vmem:[%s231] sm:$0xff] %vm379, %v1929
      %2229 = vst.msk [vmem:[%s231 + $0x8] sm:$0xff] %vm379, %v1932
      %2230 = vst.msk [vmem:[%s231 + $0x10] sm:$0xff] %vm379, %v1937
      %2231 = vst.msk [vmem:[%s231 + $0x18] sm:$0xff] %vm379, %v1940
      %2232 = vst.msk [vmem:[%s231 + $0x20] sm:$0xff] %vm379, %v1945
      %2233 = vst.msk [vmem:[%s231 + $0x28] sm:$0xff] %vm379, %v1948
      %2234 = vst.msk [vmem:[%s231 + $0x30] sm:$0xff] %vm379, %v1953
      %2235 = vst.msk [vmem:[%s231 + $0x38] sm:$0xff] %vm379, %v1956
      %2236 = vst.msk [vmem:[%s231 + $0x40] sm:$0xff] %vm379, %v1961
      %2237 = vst.msk [vmem:[%s231 + $0x48] sm:$0xff] %vm379, %v1964
      %2238 = vst.msk [vmem:[%s231 + $0x50] sm:$0xff] %vm379, %v1969
      %2239 = vst.msk [vmem:[%s231 + $0x58] sm:$0xff] %vm379, %v1972
      %2240 = vst.msk [vmem:[%s231 + $0x60] sm:$0xff] %vm379, %v1977
      %2241 = vst.msk [vmem:[%s231 + $0x68] sm:$0xff] %vm379, %v1980
      %2242 = vst.msk [vmem:[%s231 + $0x70] sm:$0xff] %vm379, %v1985
      %2243 = vst.msk [vmem:[%s231 + $0x78] sm:$0xff] %vm379, %v1988
      %2244 = vst.msk [vmem:[%s231 + $0x80] sm:$0xff] %vm379, %v1993
      %2245 = vst.msk [vmem:[%s231 + $0x88] sm:$0xff] %vm379, %v1996
      %2246 = vst.msk [vmem:[%s231 + $0x90] sm:$0xff] %vm379, %v2001
      %2247 = vst.msk [vmem:[%s231 + $0x98] sm:$0xff] %vm379, %v2004
      %2248 = vst.msk [vmem:[%s231 + $0xa0] sm:$0xff] %vm379, %v2009
      %2249 = vst.msk [vmem:[%s231 + $0xa8] sm:$0xff] %vm379, %v2012
      %2250 = vst.msk [vmem:[%s231 + $0xb0] sm:$0xff] %vm379, %v2017
      %2251 = vst.msk [vmem:[%s231 + $0xb8] sm:$0xff] %vm379, %v2020
      %2252 = vst.msk [vmem:[%s231 + $0xc0] sm:$0xff] %vm379, %v2025
      %2253 = vst.msk [vmem:[%s231 + $0xc8] sm:$0xff] %vm379, %v2028
      %2254 = vst.msk [vmem:[%s231 + $0xd0] sm:$0xff] %vm379, %v2033
      %2255 = vst.msk [vmem:[%s231 + $0xd8] sm:$0xff] %vm379, %v2036
      %2256 = vst.msk [vmem:[%s231 + $0xe0] sm:$0xff] %vm379, %v2041
      %2257 = vst.msk [vmem:[%s231 + $0xe8] sm:$0xff] %vm379, %v2044
      %2258 = vst.msk [vmem:[%s231 + $0xf0] sm:$0xff] %vm379, %v2049
      %2259 = vst.msk [vmem:[%s231 + $0xf8] sm:$0xff] %vm379, %v2052
      %p2260 = scmp.lt.s32.totalorder %s17, 1
      %s2261 = scalar_select %p2260, %s17, 1
      %s2262 = smul.addr %s2261, 32
      %s2263 = smul.addr %s2262, 8
      %s2264 = scalar_lea.vmem %s4, %s2263
      %p2265 = scmp.lt.s32.totalorder %s17, 1
      %s2266 = scalar_select %p2265, %s17, 1
      %s2267 = smul.addr %s2266, 2
      %s2268 = scalar_lea.vmem %s5, %s2267
      // Predicated region
      $region37: #{double_conv.4} parent=35 // pred_check
        %p2269 = pneg %p124
      $region38: #{double_conv.4} parent=35 // pred_check_branch
        %2271 = sbr.rel (%p2269) target = $region40
      $region39: #{double_conv.4} parent=35 // pred_region
        _
      $region40: #{double_conv.4} parent=35 // pred_fallthru
        _
      // Predicated region
      $region41: #{double_conv.4} parent=35 // pred_check
        %p2272 = pneg %p150
      $region42: #{double_conv.4} parent=35 // pred_check_branch
        %2274 = sbr.rel (%p2272) target = $region44
      $region43: #{double_conv.4} parent=35 // pred_region
        _
      $region44: #{double_conv.4} parent=35 // pred_fallthru
        _
    $region36: #{double_conv.4} parent=5 // pred_fallthru
      _
    %p2275 = scmp.le.s32.totalorder 2, %s12
    // Predicated region
    $region45: #{double_conv.4} parent=5 // pred_check
      %p2276 = pneg %p2275
    $region46: #{double_conv.4} parent=5 // pred_check_branch
      %2278 = sbr.rel (%p2276) target = $region48
    $region47: #{double_conv.4} parent=5 // pred_region
      %s2279 = ssub.s32 %s12, 2
      // Predicated region
      $region49: #{double_conv.4} parent=47 // pred_check
        %p2280 = pneg %p130
      $region50: #{double_conv.4} parent=47 // pred_check_branch
        %2282 = sbr.rel (%p2280) target = $region52
      $region51: #{double_conv.4} parent=47 // pred_region
        %p2283 = scmp.lt.s32.totalorder %s18, 1
        %s2284 = scalar_select %p2283, %s18, 1
        %s2285 = smul.addr %s2284, 32
        %s2286 = smul.addr %s2285, 8
        %s2287 = scalar_lea.vmem %s4, %s2286
      $region52: #{double_conv.4} parent=47 // pred_fallthru
        _
      // Predicated region
      $region53: #{double_conv.4} parent=47 // pred_check
        %p2288 = pneg %p156
      $region54: #{double_conv.4} parent=47 // pred_check_branch
        %2290 = sbr.rel (%p2288) target = $region56
      $region55: #{double_conv.4} parent=47 // pred_region
        %p2291 = scmp.lt.s32.totalorder %s18, 1
        %s2292 = scalar_select %p2291, %s18, 1
        %s2293 = smul.addr %s2292, 2
        %s2294 = scalar_lea.vmem %s5, %s2293
      $region56: #{double_conv.4} parent=47 // pred_fallthru
        _
    $region48: #{double_conv.4} parent=5 // pred_fallthru
      _
  $region6: #{double_conv.4} parent=0 // loop_footer
    %s16 = sadd.s32 1, %s12
  $region7: #{double_conv.4} parent=0 // loop_footer_branch
    %11 = sbr.rel target = $region3
  $region8: #{double_conv.4} parent=0 // loop_exit
    _

// kernel: double_conv.3
$region0: #{double_conv.3}
  #allocation0 [shape = 'u32[]', space=smem, size = 0x4, offset = 0x4, fixed_abs, tag = 'smem constant byte address 0x4 - core index']
  #allocation1 [shape = 'u32[144,128]{1,0:T(1,128)}', space=vmem, size = 0x12000, scoped, tag = 'internal scratch']
  #allocation2 [shape = 'f32[18,18,4]{2,1,0:T(8,128)}', space=vmem, size = 0x36000, scoped, tag = 'scratch operand']
  %s0 = inlined_call_operand.vmem [shape: f32[2,16,16,4], index: 0, kind: input, shape index: {}]
  %s1 = inlined_call_operand.vmem [shape: bf16[36,8], index: 1, kind: input, shape index: {}]
  %s2 = inlined_call_operand.vmem [shape: f32[1,4], index: 2, kind: input, shape index: {}]
  %s3 = inlined_call_operand.vmem [shape: f32[1,4], index: 3, kind: input, shape index: {}]
  %s4 = inlined_call_operand.vmem [shape: f32[2,16,16,8], index: 4, kind: output, shape index: {0}]
  %s5 = inlined_call_operand.vmem [shape: f32[2,2,8], index: 5, kind: output, shape index: {1}]
  %6 = xla_tuple %s4, %s5
  %s7 = sld [smem:[#allocation0]]
  $region57: #{double_conv.3} parent=0
    _
  %s9 = ssub.s32 1, %s7
  %s10 = scalar_select 0, %s9, %s7
  loop: start=0, step=1, limit=4
  $region2: #{double_conv.3} parent=0 // loop_pre_header
    _
  $region3: #{double_conv.3} parent=0 // loop_header
    %s12 = sphi 0, %s16
    %p13 = scmp.ge.s32.totalorder %s12, 4
    %s22 = sphi 0, %s24
    %s25 = sphi 0, %s22
    %s26 = sphi 0, %s25
    %s42 = sphi 0, %s26
    %s46 = sphi 0, %s46
    %s48 = sphi 0, %s46
    %s49 = sphi 0, %s48
    %s63 = sphi 0, %s49
    %s67 = sphi 0, %s67
    %s69 = sphi 0, %s67
    %s70 = sphi 0, %s69
    %s84 = sphi 0, %s70
    %s88 = sphi 0, %s88
    %s90 = sphi 0, %s88
    %s91 = sphi 0, %s90
    %s105 = sphi 0, %s91
    %s111 = sphi 0, %s113
    %s114 = sphi 0, %s111
    %s115 = sphi 0, %s114
    %s131 = sphi 0, %s115
    %s137 = sphi 0, %s139
    %s140 = sphi 0, %s137
    %s141 = sphi 0, %s140
    %s157 = sphi 0, %s141
  $region4: #{double_conv.3} parent=0 // loop_header_branch
    %15 = sbr.rel (%p13) target = $region8
  $region5: #{double_conv.3} parent=0 // loop_body
    %s17 = ssub.s32 %s12, 1
    %s18 = ssub.s32 %s12, 2
    %s19 = sadd.s32 %s12, 1
    %s20 = ssub.s32 %s12, %s19
    %p21 = scmp.eq.s32.totalorder %s20, 0
    %s23 = sadd.s32 %s22, 1
    %s24 = scalar_select %p21, %s22, %s23
    %p27 = pneg %p21
    %p28 = scmp.eq.s32.totalorder %s12, 1
    %p29 = por %p27, %p28
    %p30 = scmp.ne.s32.totalorder %s22, %s25
    %p31 = scmp.eq.s32.totalorder %s12, 0
    %p32 = por %p30, %p31
    %p33 = scmp.ne.s32.totalorder %s22, %s25
    %p34 = scmp.eq.s32.totalorder %s17, 1
    %p35 = por %p33, %p34
    %p36 = scmp.ne.s32.totalorder %s25, %s26
    %p37 = scmp.eq.s32.totalorder %s17, 0
    %p38 = por %p36, %p37
    %p39 = scmp.ne.s32.totalorder %s25, %s26
    %p40 = scmp.eq.s32.totalorder %s18, 1
    %p41 = por %p39, %p40
    %p43 = scmp.ne.s32.totalorder %s26, %s42
    %p44 = scmp.eq.s32.totalorder %s18, 0
    %p45 = por %p43, %p44
    %s47 = sadd.s32 %s46, 1
    %p50 = scmp.eq.s32.totalorder %s12, 1
    %p51 = scmp.ne.s32.totalorder %s46, %s48
    %p52 = scmp.eq.s32.totalorder %s12, 0
    %p53 = por %p51, %p52
    %p54 = scmp.ne.s32.totalorder %s46, %s48
    %p55 = scmp.eq.s32.totalorder %s17, 1
    %p56 = por %p54, %p55
    %p57 = scmp.ne.s32.totalorder %s48, %s49
    %p58 = scmp.eq.s32.totalorder %s17, 0
    %p59 = por %p57, %p58
    %p60 = scmp.ne.s32.totalorder %s48, %s49
    %p61 = scmp.eq.s32.totalorder %s18, 1
    %p62 = por %p60, %p61
    %p64 = scmp.ne.s32.totalorder %s49, %s63
    %p65 = scmp.eq.s32.totalorder %s18, 0
    %p66 = por %p64, %p65
    %s68 = sadd.s32 %s67, 1
    %p71 = scmp.eq.s32.totalorder %s12, 1
    %p72 = scmp.ne.s32.totalorder %s67, %s69
    %p73 = scmp.eq.s32.totalorder %s12, 0
    %p74 = por %p72, %p73
    %p75 = scmp.ne.s32.totalorder %s67, %s69
    %p76 = scmp.eq.s32.totalorder %s17, 1
    %p77 = por %p75, %p76
    %p78 = scmp.ne.s32.totalorder %s69, %s70
    %p79 = scmp.eq.s32.totalorder %s17, 0
    %p80 = por %p78, %p79
    %p81 = scmp.ne.s32.totalorder %s69, %s70
    %p82 = scmp.eq.s32.totalorder %s18, 1
    %p83 = por %p81, %p82
    %p85 = scmp.ne.s32.totalorder %s70, %s84
    %p86 = scmp.eq.s32.totalorder %s18, 0
    %p87 = por %p85, %p86
    %s89 = sadd.s32 %s88, 1
    %p92 = scmp.eq.s32.totalorder %s12, 1
    %p93 = scmp.ne.s32.totalorder %s88, %s90
    %p94 = scmp.eq.s32.totalorder %s12, 0
    %p95 = por %p93, %p94
    %p96 = scmp.ne.s32.totalorder %s88, %s90
    %p97 = scmp.eq.s32.totalorder %s17, 1
    %p98 = por %p96, %p97
    %p99 = scmp.ne.s32.totalorder %s90, %s91
    %p100 = scmp.eq.s32.totalorder %s17, 0
    %p101 = por %p99, %p100
    %p102 = scmp.ne.s32.totalorder %s90, %s91
    %p103 = scmp.eq.s32.totalorder %s18, 1
    %p104 = por %p102, %p103
    %p106 = scmp.ne.s32.totalorder %s91, %s105
    %p107 = scmp.eq.s32.totalorder %s18, 0
    %p108 = por %p106, %p107
    %s109 = ssub.s32 %s12, %s19
    %p110 = scmp.eq.s32.totalorder %s109, 0
    %s112 = sadd.s32 %s111, 1
    %s113 = scalar_select %p110, %s111, %s112
    %p116 = pneg %p110
    %p117 = scmp.eq.s32.totalorder %s12, 1
    %p118 = por %p116, %p117
    %p119 = scmp.ne.s32.totalorder %s111, %s114
    %p120 = scmp.eq.s32.totalorder %s12, 0
    %p121 = por %p119, %p120
    %p122 = scmp.ne.s32.totalorder %s111, %s114
    %p123 = scmp.eq.s32.totalorder %s17, 1
    %p124 = por %p122, %p123
    %p125 = scmp.ne.s32.totalorder %s114, %s115
    %p126 = scmp.eq.s32.totalorder %s17, 0
    %p127 = por %p125, %p126
    %p128 = scmp.ne.s32.totalorder %s114, %s115
    %p129 = scmp.eq.s32.totalorder %s18, 1
    %p130 = por %p128, %p129
    %p132 = scmp.ne.s32.totalorder %s115, %s131
    %p133 = scmp.eq.s32.totalorder %s18, 0
    %p134 = por %p132, %p133
    %s135 = ssub.s32 %s12, %s19
    %p136 = scmp.eq.s32.totalorder %s135, 0
    %s138 = sadd.s32 %s137, 1
    %s139 = scalar_select %p136, %s137, %s138
    %p142 = pneg %p136
    %p143 = scmp.eq.s32.totalorder %s12, 1
    %p144 = por %p142, %p143
    %p145 = scmp.ne.s32.totalorder %s137, %s140
    %p146 = scmp.eq.s32.totalorder %s12, 0
    %p147 = por %p145, %p146
    %p148 = scmp.ne.s32.totalorder %s137, %s140
    %p149 = scmp.eq.s32.totalorder %s17, 1
    %p150 = por %p148, %p149
    %p151 = scmp.ne.s32.totalorder %s140, %s141
    %p152 = scmp.eq.s32.totalorder %s17, 0
    %p153 = por %p151, %p152
    %p154 = scmp.ne.s32.totalorder %s140, %s141
    %p155 = scmp.eq.s32.totalorder %s18, 1
    %p156 = por %p154, %p155
    %p158 = scmp.ne.s32.totalorder %s141, %s157
    %p159 = scmp.eq.s32.totalorder %s18, 0
    %p160 = por %p158, %p159
    %p161 = scmp.le.s32.totalorder 1, %s12
    %p162 = scmp.lt.s32.totalorder %s12, 3
    %p163 = pnand %p161, %p162
    %p164 = pneg %p163
    // Predicated region
    $region9: #{double_conv.3} parent=5 // pred_check
      _
    $region10: #{double_conv.3} parent=5 // pred_check_branch
      %166 = sbr.rel (%p163) target = $region12
    $region11: #{double_conv.3} parent=5 // pred_region
      %s167 = ssub.s32 %s12, 1
      // Predicated region
      $region13: #{double_conv.3} parent=11 // pred_check
        %p168 = pneg %p59
      $region14: #{double_conv.3} parent=11 // pred_check_branch
        %170 = sbr.rel (%p168) target = $region16
      $region15: #{double_conv.3} parent=11 // pred_region
        _
      $region16: #{double_conv.3} parent=11 // pred_fallthru
        _
      // Predicated region
      $region17: #{double_conv.3} parent=11 // pred_check
        %p171 = pneg %p80
      $region18: #{double_conv.3} parent=11 // pred_check_branch
        %173 = sbr.rel (%p171) target = $region20
      $region19: #{double_conv.3} parent=11 // pred_region
        _
      $region20: #{double_conv.3} parent=11 // pred_fallthru
        _
      // Predicated region
      $region21: #{double_conv.3} parent=11 // pred_check
        %p174 = pneg %p101
      $region22: #{double_conv.3} parent=11 // pred_check_branch
        %176 = sbr.rel (%p174) target = $region24
      $region23: #{double_conv.3} parent=11 // pred_region
        _
      $region24: #{double_conv.3} parent=11 // pred_fallthru
        _
    $region12: #{double_conv.3} parent=5 // pred_fallthru
      _
    %p177 = scmp.lt.s32.totalorder %s12, 2
    // Predicated region
    $region25: #{double_conv.3} parent=5 // pred_check
      %p178 = pneg %p177
    $region26: #{double_conv.3} parent=5 // pred_check_branch
      %180 = sbr.rel (%p178) target = $region28
    $region27: #{double_conv.3} parent=5 // pred_region
      // Predicated region
      $region29: #{double_conv.3} parent=27 // pred_check
        %p181 = pneg %p32
      $region30: #{double_conv.3} parent=27 // pred_check_branch
        %183 = sbr.rel (%p181) target = $region32
      $region31: #{double_conv.3} parent=27 // pred_region
        %p184 = scmp.lt.s32.totalorder %s12, 1
        %s185 = scalar_select %p184, %s12, 1
        %s186 = smul.addr %s185, 32
        %s187 = smul.addr %s186, 8
        %s188 = scalar_lea.vmem %s0, %s187
      $region32: #{double_conv.3} parent=27 // pred_fallthru
        _
    $region28: #{double_conv.3} parent=5 // pred_fallthru
      _
    %p189 = scmp.le.s32.totalorder 1, %s12
    %p190 = scmp.lt.s32.totalorder %s12, 3
    %p191 = pnand %p189, %p190
    %p192 = pneg %p191
    // Predicated region
    $region33: #{double_conv.3} parent=5 // pred_check
      _
    $region34: #{double_conv.3} parent=5 // pred_check_branch
      %194 = sbr.rel (%p191) target = $region36
    $region35: #{double_conv.3} parent=5 // pred_region
      %s195 = ssub.s32 %s12, 1
      %p196 = scmp.lt.s32.totalorder %s17, 1
      %s197 = scalar_select %p196, %s17, 1
      %s198 = smul.addr %s197, 32
      %s199 = smul.addr %s198, 8
      %s200 = scalar_lea.vmem %s0, %s199
      %p201 = pneg %p38
      %p202 = pneg %p35
      %p203 = pneg %p59
      %p204 = pneg %p56
      %p205 = pneg %p80
      %p206 = pneg %p77
      %p207 = pneg %p101
      %p208 = pneg %p98
      %p209 = pneg %p127
      %p210 = pneg %p124
      %p211 = scmp.lt.s32.totalorder %s17, 1
      %s212 = scalar_select %p211, %s17, 1
      %s213 = smul.addr %s212, 32
      %s214 = smul.addr %s213, 8
      %s215 = scalar_lea.vmem %s4, %s214
      %p216 = pneg %p153
      %p217 = pneg %p150
      %p218 = scmp.lt.s32.totalorder %s17, 1
      %s219 = scalar_select %p218, %s17, 1
      %s220 = smul.addr %s219, 2
      %s221 = scalar_lea.vmem %s5, %s220
      %p222 = scmp.lt.s32.totalorder %s17, 1
      %s223 = scalar_select %p222, %s17, 1
      %s224 = smul.addr %s223, 32
      %s225 = smul.addr %s224, 8
      %s226 = scalar_lea.vmem %s0, %s225
      %p227 = scmp.lt.s32.totalorder %s17, 1
      %s228 = scalar_select %p227, %s17, 1
      %s229 = smul.addr %s228, 32
      %s230 = smul.addr %s229, 8
      %s231 = scalar_lea.vmem %s4, %s230
      %p232 = scmp.lt.s32.totalorder %s17, 1
      %s233 = scalar_select %p232, %s17, 1
      %s234 = smul.addr %s233, 2
      %s235 = scalar_lea.vmem %s5, %s234
      %v237 = vld [vmem:[%s226] sm:$0xff]
      %v238 = vld [vmem:[%s226 + $0x8] sm:$0xff]
      %v239 = vld [vmem:[%s226 + $0x10] sm:$0xff]
      %v240 = vld [vmem:[%s226 + $0x18] sm:$0xff]
      %v241 = vld [vmem:[%s226 + $0x20] sm:$0xff]
      %v242 = vld [vmem:[%s226 + $0x28] sm:$0xff]
      %v243 = vld [vmem:[%s226 + $0x30] sm:$0xff]
      %v244 = vld [vmem:[%s226 + $0x38] sm:$0xff]
      %v245 = vld [vmem:[%s226 + $0x40] sm:$0xff]
      %v246 = vld [vmem:[%s226 + $0x48] sm:$0xff]
      %v247 = vld [vmem:[%s226 + $0x50] sm:$0xff]
      %v248 = vld [vmem:[%s226 + $0x58] sm:$0xff]
      %v249 = vld [vmem:[%s226 + $0x60] sm:$0xff]
      %v250 = vld [vmem:[%s226 + $0x68] sm:$0xff]
      %v251 = vld [vmem:[%s226 + $0x70] sm:$0xff]
      %v252 = vld [vmem:[%s226 + $0x78] sm:$0xff]
      %v253 = vld [vmem:[%s226 + $0x80] sm:$0xff]
      %v254 = vld [vmem:[%s226 + $0x88] sm:$0xff]
      %v255 = vld [vmem:[%s226 + $0x90] sm:$0xff]
      %v256 = vld [vmem:[%s226 + $0x98] sm:$0xff]
      %v257 = vld [vmem:[%s226 + $0xa0] sm:$0xff]
      %v258 = vld [vmem:[%s226 + $0xa8] sm:$0xff]
      %v259 = vld [vmem:[%s226 + $0xb0] sm:$0xff]
      %v260 = vld [vmem:[%s226 + $0xb8] sm:$0xff]
      %v261 = vld [vmem:[%s226 + $0xc0] sm:$0xff]
      %v262 = vld [vmem:[%s226 + $0xc8] sm:$0xff]
      %v263 = vld [vmem:[%s226 + $0xd0] sm:$0xff]
      %v264 = vld [vmem:[%s226 + $0xd8] sm:$0xff]
      %v265 = vld [vmem:[%s226 + $0xe0] sm:$0xff]
      %v266 = vld [vmem:[%s226 + $0xe8] sm:$0xff]
      %v267 = vld [vmem:[%s226 + $0xf0] sm:$0xff]
      %v268 = vld [vmem:[%s226 + $0xf8] sm:$0xff]
      %vm269 = vcmask 31744
      %270 = vst.msk [vmem:[#allocation2] sm:$0xff] %vm269, 0.0
      %271 = vst.msk [vmem:[#allocation2 + $0x8] sm:$0xff] %vm269, 0.0
      %vm272 = vcmask 25600
      %273 = vst.msk [vmem:[#allocation2 + $0x10] sm:$0x3] %vm272, 0.0
      %274 = vst.msk [vmem:[#allocation2 + $0x18] sm:$0xff] %vm269, 0.0
      %275 = vst.msk [vmem:[#allocation2 + $0x20] sm:$0xff] %vm269, 0.0
      %276 = vst.msk [vmem:[#allocation2 + $0x28] sm:$0x3] %vm272, 0.0
      %277 = vst.msk [vmem:[#allocation2 + $0x30] sm:$0xff] %vm269, 0.0
      %278 = vst.msk [vmem:[#allocation2 + $0x38] sm:$0xff] %vm269, 0.0
      %279 = vst.msk [vmem:[#allocation2 + $0x40] sm:$0x3] %vm272, 0.0
      %280 = vst.msk [vmem:[#allocation2 + $0x48] sm:$0xff] %vm269, 0.0
      %281 = vst.msk [vmem:[#allocation2 + $0x50] sm:$0xff] %vm269, 0.0
      %282 = vst.msk [vmem:[#allocation2 + $0x58] sm:$0x3] %vm272, 0.0
      %283 = vst.msk [vmem:[#allocation2 + $0x60] sm:$0xff] %vm269, 0.0
      %284 = vst.msk [vmem:[#allocation2 + $0x68] sm:$0xff] %vm269, 0.0
      %285 = vst.msk [vmem:[#allocation2 + $0x70] sm:$0x3] %vm272, 0.0
      %286 = vst.msk [vmem:[#allocation2 + $0x78] sm:$0xff] %vm269, 0.0
      %287 = vst.msk [vmem:[#allocation2 + $0x80] sm:$0xff] %vm269, 0.0
      %288 = vst.msk [vmem:[#allocation2 + $0x88] sm:$0x3] %vm272, 0.0
      %289 = vst.msk [vmem:[#allocation2 + $0x90] sm:$0xff] %vm269, 0.0
      %290 = vst.msk [vmem:[#allocation2 + $0x98] sm:$0xff] %vm269, 0.0
      %291 = vst.msk [vmem:[#allocation2 + $0xa0] sm:$0x3] %vm272, 0.0
      %292 = vst.msk [vmem:[#allocation2 + $0xa8] sm:$0xff] %vm269, 0.0
      %293 = vst.msk [vmem:[#allocation2 + $0xb0] sm:$0xff] %vm269, 0.0
      %294 = vst.msk [vmem:[#allocation2 + $0xb8] sm:$0x3] %vm272, 0.0
      %295 = vst.msk [vmem:[#allocation2 + $0xc0] sm:$0xff] %vm269, 0.0
      %296 = vst.msk [vmem:[#allocation2 + $0xc8] sm:$0xff] %vm269, 0.0
      %297 = vst.msk [vmem:[#allocation2 + $0xd0] sm:$0x3] %vm272, 0.0
      %298 = vst.msk [vmem:[#allocation2 + $0xd8] sm:$0xff] %vm269, 0.0
      %299 = vst.msk [vmem:[#allocation2 + $0xe0] sm:$0xff] %vm269, 0.0
      %300 = vst.msk [vmem:[#allocation2 + $0xe8] sm:$0x3] %vm272, 0.0
      %301 = vst.msk [vmem:[#allocation2 + $0xf0] sm:$0xff] %vm269, 0.0
      %302 = vst.msk [vmem:[#allocation2 + $0xf8] sm:$0xff] %vm269, 0.0
      %303 = vst.msk [vmem:[#allocation2 + $0x100] sm:$0x3] %vm272, 0.0
      %304 = vst.msk [vmem:[#allocation2 + $0x108] sm:$0xff] %vm269, 0.0
      %305 = vst.msk [vmem:[#allocation2 + $0x110] sm:$0xff] %vm269, 0.0
      %306 = vst.msk [vmem:[#allocation2 + $0x118] sm:$0x3] %vm272, 0.0
      %307 = vst.msk [vmem:[#allocation2 + $0x120] sm:$0xff] %vm269, 0.0
      %308 = vst.msk [vmem:[#allocation2 + $0x128] sm:$0xff] %vm269, 0.0
      %309 = vst.msk [vmem:[#allocation2 + $0x130] sm:$0x3] %vm272, 0.0
      %310 = vst.msk [vmem:[#allocation2 + $0x138] sm:$0xff] %vm269, 0.0
      %311 = vst.msk [vmem:[#allocation2 + $0x140] sm:$0xff] %vm269, 0.0
      %312 = vst.msk [vmem:[#allocation2 + $0x148] sm:$0x3] %vm272, 0.0
      %313 = vst.msk [vmem:[#allocation2 + $0x150] sm:$0xff] %vm269, 0.0
      %314 = vst.msk [vmem:[#allocation2 + $0x158] sm:$0xff] %vm269, 0.0
      %315 = vst.msk [vmem:[#allocation2 + $0x160] sm:$0x3] %vm272, 0.0
      %316 = vst.msk [vmem:[#allocation2 + $0x168] sm:$0xff] %vm269, 0.0
      %317 = vst.msk [vmem:[#allocation2 + $0x170] sm:$0xff] %vm269, 0.0
      %318 = vst.msk [vmem:[#allocation2 + $0x178] sm:$0x3] %vm272, 0.0
      %319 = vst.msk [vmem:[#allocation2 + $0x180] sm:$0xff] %vm269, 0.0
      %320 = vst.msk [vmem:[#allocation2 + $0x188] sm:$0xff] %vm269, 0.0
      %321 = vst.msk [vmem:[#allocation2 + $0x190] sm:$0x3] %vm272, 0.0
      %322 = vst.msk [vmem:[#allocation2 + $0x198] sm:$0xff] %vm269, 0.0
      %323 = vst.msk [vmem:[#allocation2 + $0x1a0] sm:$0xff] %vm269, 0.0
      %324 = vst.msk [vmem:[#allocation2 + $0x1a8] sm:$0x3] %vm272, 0.0
      %s325 = scalar_lea.vmem [#allocation2], 24
      %326 = vst.msk [vmem:[%s325 + $0x1] sm:$0xff] %vm269, %v237
      %327 = vst.msk [vmem:[%s325 + $0x9] sm:$0xff] %vm269, %v238
      %328 = vst.msk [vmem:[%s325 + $0x19] sm:$0xff] %vm269, %v239
      %329 = vst.msk [vmem:[%s325 + $0x21] sm:$0xff] %vm269, %v240
      %330 = vst.msk [vmem:[%s325 + $0x31] sm:$0xff] %vm269, %v241
      %331 = vst.msk [vmem:[%s325 + $0x39] sm:$0xff] %vm269, %v242
      %332 = vst.msk [vmem:[%s325 + $0x49] sm:$0xff] %vm269, %v243
      %333 = vst.msk [vmem:[%s325 + $0x51] sm:$0xff] %vm269, %v244
      %334 = vst.msk [vmem:[%s325 + $0x61] sm:$0xff] %vm269, %v245
      %335 = vst.msk [vmem:[%s325 + $0x69] sm:$0xff] %vm269, %v246
      %336 = vst.msk [vmem:[%s325 + $0x79] sm:$0xff] %vm269, %v247
      %337 = vst.msk [vmem:[%s325 + $0x81] sm:$0xff] %vm269, %v248
      %338 = vst.msk [vmem:[%s325 + $0x91] sm:$0xff] %vm269, %v249
      %339 = vst.msk [vmem:[%s325 + $0x99] sm:$0xff] %vm269, %v250
      %340 = vst.msk [vmem:[%s325 + $0xa9] sm:$0xff] %vm269, %v251
      %341 = vst.msk [vmem:[%s325 + $0xb1] sm:$0xff] %vm269, %v252
      %342 = vst.msk [vmem:[%s325 + $0xc1] sm:$0xff] %vm269, %v253
      %343 = vst.msk [vmem:[%s325 + $0xc9] sm:$0xff] %vm269, %v254
      %344 = vst.msk [vmem:[%s325 + $0xd9] sm:$0xff] %vm269, %v255
      %345 = vst.msk [vmem:[%s325 + $0xe1] sm:$0xff] %vm269, %v256
      %346 = vst.msk [vmem:[%s325 + $0xf1] sm:$0xff] %vm269, %v257
      %347 = vst.msk [vmem:[%s325 + $0xf9] sm:$0xff] %vm269, %v258
      %348 = vst.msk [vmem:[%s325 + $0x109] sm:$0xff] %vm269, %v259
      %349 = vst.msk [vmem:[%s325 + $0x111] sm:$0xff] %vm269, %v260
      %350 = vst.msk [vmem:[%s325 + $0x121] sm:$0xff] %vm269, %v261
      %351 = vst.msk [vmem:[%s325 + $0x129] sm:$0xff] %vm269, %v262
      %352 = vst.msk [vmem:[%s325 + $0x139] sm:$0xff] %vm269, %v263
      %353 = vst.msk [vmem:[%s325 + $0x141] sm:$0xff] %vm269, %v264
      %354 = vst.msk [vmem:[%s325 + $0x151] sm:$0xff] %vm269, %v265
      %355 = vst.msk [vmem:[%s325 + $0x159] sm:$0xff] %vm269, %v266
      %356 = vst.msk [vmem:[%s325 + $0x169] sm:$0xff] %vm269, %v267
      %357 = vst.msk [vmem:[%s325 + $0x171] sm:$0xff] %vm269, %v268
      %v358 = vld [vmem:[#allocation2] sm:$0xff]
      %v359 = vld [vmem:[#allocation2 + $0x8] sm:$0xff]
      %v360 = vld [vmem:[#allocation2 + $0x10] sm:$0x3]
      %v361 = vld [vmem:[#allocation2 + $0x18] sm:$0xff]
      %v362 = vld [vmem:[#allocation2 + $0x20] sm:$0xff]
      %v363 = vld [vmem:[#allocation2 + $0x28] sm:$0x3]
      %v364 = vld [vmem:[#allocation2 + $0x30] sm:$0xff]
      %v365 = vld [vmem:[#allocation2 + $0x38] sm:$0xff]
      %v366 = vld [vmem:[#allocation2 + $0x40] sm:$0x3]
      %v367 = vld [vmem:[#allocation2 + $0x48] sm:$0xff]
      %v368 = vld [vmem:[#allocation2 + $0x50] sm:$0xff]
      %v369 = vld [vmem:[#allocation2 + $0x58] sm:$0x3]
      %v370 = vld [vmem:[#allocation2 + $0x60] sm:$0xff]
      %v371 = vld [vmem:[#allocation2 + $0x68] sm:$0xff]
      %v372 = vld [vmem:[#allocation2 + $0x70] sm:$0x3]
      %v373 = vld [vmem:[#allocation2 + $0x78] sm:$0xff]
      %v374 = vld [vmem:[#allocation2 + $0x80] sm:$0xff]
      %v375 = vld [vmem:[#allocation2 + $0x88] sm:$0x3]
      %v376 = vld [vmem:[#allocation2 + $0x90] sm:$0xff]
      %v377 = vld [vmem:[#allocation2 + $0x98] sm:$0xff]
      %v378 = vld [vmem:[#allocation2 + $0xa0] sm:$0x3]
      %v379 = vld [vmem:[#allocation2 + $0xa8] sm:$0xff]
      %v380 = vld [vmem:[#allocation2 + $0xb0] sm:$0xff]
      %v381 = vld [vmem:[#allocation2 + $0xb8] sm:$0x3]
      %v382 = vld [vmem:[#allocation2 + $0xc0] sm:$0xff]
      %v383 = vld [vmem:[#allocation2 + $0xc8] sm:$0xff]
      %v384 = vld [vmem:[#allocation2 + $0xd0] sm:$0x3]
      %v385 = vld [vmem:[#allocation2 + $0xd8] sm:$0xff]
      %v386 = vld [vmem:[#allocation2 + $0xe0] sm:$0xff]
      %v387 = vld [vmem:[#allocation2 + $0xe8] sm:$0x3]
      %v388 = vld [vmem:[#allocation2 + $0xf0] sm:$0xff]
      %v389 = vld [vmem:[#allocation2 + $0xf8] sm:$0xff]
      %v390 = vld [vmem:[#allocation2 + $0x100] sm:$0x3]
      %v391 = vld [vmem:[#allocation2 + $0x108] sm:$0xff]
      %v392 = vld [vmem:[#allocation2 + $0x110] sm:$0xff]
      %v393 = vld [vmem:[#allocation2 + $0x118] sm:$0x3]
      %v394 = vld [vmem:[#allocation2 + $0x120] sm:$0xff]
      %v395 = vld [vmem:[#allocation2 + $0x128] sm:$0xff]
      %v396 = vld [vmem:[#allocation2 + $0x130] sm:$0x3]
      %v397 = vld [vmem:[#allocation2 + $0x138] sm:$0xff]
      %v398 = vld [vmem:[#allocation2 + $0x140] sm:$0xff]
      %v399 = vld [vmem:[#allocation2 + $0x148] sm:$0x3]
      %v400 = vld [vmem:[#allocation2 + $0x150] sm:$0xff]
      %v401 = vld [vmem:[#allocation2 + $0x158] sm:$0xff]
      %v402 = vld [vmem:[#allocation2 + $0x160] sm:$0x3]
      %v403 = vld [vmem:[#allocation2 + $0x168] sm:$0xff]
      %v404 = vld [vmem:[#allocation2 + $0x170] sm:$0xff]
      %v405 = vld [vmem:[#allocation2 + $0x178] sm:$0x3]
      %v406 = vld [vmem:[#allocation2 + $0x180] sm:$0xff]
      %v407 = vld [vmem:[#allocation2 + $0x188] sm:$0xff]
      %v408 = vld [vmem:[#allocation2 + $0x190] sm:$0x3]
      %v409 = vld [vmem:[#allocation2 + $0x198] sm:$0xff]
      %v410 = vld [vmem:[#allocation2 + $0x1a0] sm:$0xff]
      %v411 = vld [vmem:[#allocation2 + $0x1a8] sm:$0x3]
      %vm460 = vcmask 1046528
      %v461 = vrot.slane %v358, 1
      %v462 = vrot.slane %v359, 1
      %v463 = vsel %vm460, %v461, %v462
      %v464 = vrot.slane %v360, 1
      %v465 = vsel %vm460, %v462, %v464
      %v466 = vrot.slane %v361, 1
      %v467 = vrot.slane %v362, 1
      %v468 = vsel %vm460, %v466, %v467
      %v469 = vrot.slane %v363, 1
      %v470 = vsel %vm460, %v467, %v469
      %v471 = vrot.slane %v364, 1
      %v472 = vrot.slane %v365, 1
      %v473 = vsel %vm460, %v471, %v472
      %v474 = vrot.slane %v366, 1
      %v475 = vsel %vm460, %v472, %v474
      %v476 = vrot.slane %v367, 1
      %v477 = vrot.slane %v368, 1
      %v478 = vsel %vm460, %v476, %v477
      %v479 = vrot.slane %v369, 1
      %v480 = vsel %vm460, %v477, %v479
      %v481 = vrot.slane %v370, 1
      %v482 = vrot.slane %v371, 1
      %v483 = vsel %vm460, %v481, %v482
      %v484 = vrot.slane %v372, 1
      %v485 = vsel %vm460, %v482, %v484
      %v486 = vrot.slane %v373, 1
      %v487 = vrot.slane %v374, 1
      %v488 = vsel %vm460, %v486, %v487
      %v489 = vrot.slane %v375, 1
      %v490 = vsel %vm460, %v487, %v489
      %v491 = vrot.slane %v376, 1
      %v492 = vrot.slane %v377, 1
      %v493 = vsel %vm460, %v491, %v492
      %v494 = vrot.slane %v378, 1
      %v495 = vsel %vm460, %v492, %v494
      %v496 = vrot.slane %v379, 1
      %v497 = vrot.slane %v380, 1
      %v498 = vsel %vm460, %v496, %v497
      %v499 = vrot.slane %v381, 1
      %v500 = vsel %vm460, %v497, %v499
      %v501 = vrot.slane %v382, 1
      %v502 = vrot.slane %v383, 1
      %v503 = vsel %vm460, %v501, %v502
      %v504 = vrot.slane %v384, 1
      %v505 = vsel %vm460, %v502, %v504
      %v506 = vrot.slane %v385, 1
      %v507 = vrot.slane %v386, 1
      %v508 = vsel %vm460, %v506, %v507
      %v509 = vrot.slane %v387, 1
      %v510 = vsel %vm460, %v507, %v509
      %v511 = vrot.slane %v388, 1
      %v512 = vrot.slane %v389, 1
      %v513 = vsel %vm460, %v511, %v512
      %v514 = vrot.slane %v390, 1
      %v515 = vsel %vm460, %v512, %v514
      %v516 = vrot.slane %v391, 1
      %v517 = vrot.slane %v392, 1
      %v518 = vsel %vm460, %v516, %v517
      %v519 = vrot.slane %v393, 1
      %v520 = vsel %vm460, %v517, %v519
      %v521 = vrot.slane %v394, 1
      %v522 = vrot.slane %v395, 1
      %v523 = vsel %vm460, %v521, %v522
      %v524 = vrot.slane %v396, 1
      %v525 = vsel %vm460, %v522, %v524
      %v526 = vrot.slane %v397, 1
      %v527 = vrot.slane %v398, 1
      %v528 = vsel %vm460, %v526, %v527
      %v529 = vrot.slane %v399, 1
      %v530 = vsel %vm460, %v527, %v529
      %v531 = vrot.slane %v400, 1
      %v532 = vrot.slane %v401, 1
      %v533 = vsel %vm460, %v531, %v532
      %v534 = vrot.slane %v402, 1
      %v535 = vsel %vm460, %v532, %v534
      %v536 = vrot.slane %v403, 1
      %v537 = vrot.slane %v404, 1
      %v538 = vsel %vm460, %v536, %v537
      %v539 = vrot.slane %v405, 1
      %v540 = vsel %vm460, %v537, %v539
      %541 = vrot.lane.b32.xlu0 %v463, 4
      %v542 = vpop.permute.xlu0 %541
      %543 = vrot.lane.b32.xlu0 %v465, 4
      %v544 = vpop.permute.xlu0 %543
      %545 = vrot.lane.b32.xlu0 %v468, 4
      %v546 = vpop.permute.xlu0 %545
      %547 = vrot.lane.b32.xlu0 %v470, 4
      %v548 = vpop.permute.xlu0 %547
      %549 = vrot.lane.b32.xlu0 %v473, 4
      %v550 = vpop.permute.xlu0 %549
      %551 = vrot.lane.b32.xlu0 %v475, 4
      %v552 = vpop.permute.xlu0 %551
      %553 = vrot.lane.b32.xlu0 %v478, 4
      %v554 = vpop.permute.xlu0 %553
      %555 = vrot.lane.b32.xlu0 %v480, 4
      %v556 = vpop.permute.xlu0 %555
      %557 = vrot.lane.b32.xlu0 %v483, 4
      %v558 = vpop.permute.xlu0 %557
      %559 = vrot.lane.b32.xlu0 %v485, 4
      %v560 = vpop.permute.xlu0 %559
      %561 = vrot.lane.b32.xlu0 %v488, 4
      %v562 = vpop.permute.xlu0 %561
      %563 = vrot.lane.b32.xlu0 %v490, 4
      %v564 = vpop.permute.xlu0 %563
      %565 = vrot.lane.b32.xlu0 %v493, 4
      %v566 = vpop.permute.xlu0 %565
      %567 = vrot.lane.b32.xlu0 %v495, 4
      %v568 = vpop.permute.xlu0 %567
      %569 = vrot.lane.b32.xlu0 %v498, 4
      %v570 = vpop.permute.xlu0 %569
      %571 = vrot.lane.b32.xlu0 %v500, 4
      %v572 = vpop.permute.xlu0 %571
      %573 = vrot.lane.b32.xlu0 %v503, 4
      %v574 = vpop.permute.xlu0 %573
      %575 = vrot.lane.b32.xlu0 %v505, 4
      %v576 = vpop.permute.xlu0 %575
      %577 = vrot.lane.b32.xlu0 %v508, 4
      %v578 = vpop.permute.xlu0 %577
      %579 = vrot.lane.b32.xlu0 %v510, 4
      %v580 = vpop.permute.xlu0 %579
      %581 = vrot.lane.b32.xlu0 %v513, 4
      %v582 = vpop.permute.xlu0 %581
      %583 = vrot.lane.b32.xlu0 %v515, 4
      %v584 = vpop.permute.xlu0 %583
      %585 = vrot.lane.b32.xlu0 %v518, 4
      %v586 = vpop.permute.xlu0 %585
      %587 = vrot.lane.b32.xlu0 %v520, 4
      %v588 = vpop.permute.xlu0 %587
      %589 = vrot.lane.b32.xlu0 %v523, 4
      %v590 = vpop.permute.xlu0 %589
      %591 = vrot.lane.b32.xlu0 %v525, 4
      %v592 = vpop.permute.xlu0 %591
      %593 = vrot.lane.b32.xlu0 %v528, 4
      %v594 = vpop.permute.xlu0 %593
      %595 = vrot.lane.b32.xlu0 %v530, 4
      %v596 = vpop.permute.xlu0 %595
      %597 = vrot.lane.b32.xlu0 %v533, 4
      %v598 = vpop.permute.xlu0 %597
      %599 = vrot.lane.b32.xlu0 %v535, 4
      %v600 = vpop.permute.xlu0 %599
      %601 = vrot.lane.b32.xlu0 %v538, 4
      %v602 = vpop.permute.xlu0 %601
      %603 = vrot.lane.b32.xlu0 %v540, 4
      %v604 = vpop.permute.xlu0 %603
      %vm637 = vcmask 1045504
      %v638 = vrot.slane %v358, 2
      %v639 = vrot.slane %v359, 2
      %v640 = vsel %vm637, %v638, %v639
      %v641 = vrot.slane %v360, 2
      %v642 = vsel %vm637, %v639, %v641
      %v643 = vrot.slane %v361, 2
      %v644 = vrot.slane %v362, 2
      %v645 = vsel %vm637, %v643, %v644
      %v646 = vrot.slane %v363, 2
      %v647 = vsel %vm637, %v644, %v646
      %v648 = vrot.slane %v364, 2
      %v649 = vrot.slane %v365, 2
      %v650 = vsel %vm637, %v648, %v649
      %v651 = vrot.slane %v366, 2
      %v652 = vsel %vm637, %v649, %v651
      %v653 = vrot.slane %v367, 2
      %v654 = vrot.slane %v368, 2
      %v655 = vsel %vm637, %v653, %v654
      %v656 = vrot.slane %v369, 2
      %v657 = vsel %vm637, %v654, %v656
      %v658 = vrot.slane %v370, 2
      %v659 = vrot.slane %v371, 2
      %v660 = vsel %vm637, %v658, %v659
      %v661 = vrot.slane %v372, 2
      %v662 = vsel %vm637, %v659, %v661
      %v663 = vrot.slane %v373, 2
      %v664 = vrot.slane %v374, 2
      %v665 = vsel %vm637, %v663, %v664
      %v666 = vrot.slane %v375, 2
      %v667 = vsel %vm637, %v664, %v666
      %v668 = vrot.slane %v376, 2
      %v669 = vrot.slane %v377, 2
      %v670 = vsel %vm637, %v668, %v669
      %v671 = vrot.slane %v378, 2
      %v672 = vsel %vm637, %v669, %v671
      %v673 = vrot.slane %v379, 2
      %v674 = vrot.slane %v380, 2
      %v675 = vsel %vm637, %v673, %v674
      %v676 = vrot.slane %v381, 2
      %v677 = vsel %vm637, %v674, %v676
      %v678 = vrot.slane %v382, 2
      %v679 = vrot.slane %v383, 2
      %v680 = vsel %vm637, %v678, %v679
      %v681 = vrot.slane %v384, 2
      %v682 = vsel %vm637, %v679, %v681
      %v683 = vrot.slane %v385, 2
      %v684 = vrot.slane %v386, 2
      %v685 = vsel %vm637, %v683, %v684
      %v686 = vrot.slane %v387, 2
      %v687 = vsel %vm637, %v684, %v686
      %v688 = vrot.slane %v388, 2
      %v689 = vrot.slane %v389, 2
      %v690 = vsel %vm637, %v688, %v689
      %v691 = vrot.slane %v390, 2
      %v692 = vsel %vm637, %v689, %v691
      %v693 = vrot.slane %v391, 2
      %v694 = vrot.slane %v392, 2
      %v695 = vsel %vm637, %v693, %v694
      %v696 = vrot.slane %v393, 2
      %v697 = vsel %vm637, %v694, %v696
      %v698 = vrot.slane %v394, 2
      %v699 = vrot.slane %v395, 2
      %v700 = vsel %vm637, %v698, %v699
      %v701 = vrot.slane %v396, 2
      %v702 = vsel %vm637, %v699, %v701
      %v703 = vrot.slane %v397, 2
      %v704 = vrot.slane %v398, 2
      %v705 = vsel %vm637, %v703, %v704
      %v706 = vrot.slane %v399, 2
      %v707 = vsel %vm637, %v704, %v706
      %v708 = vrot.slane %v400, 2
      %v709 = vrot.slane %v401, 2
      %v710 = vsel %vm637, %v708, %v709
      %v711 = vrot.slane %v402, 2
      %v712 = vsel %vm637, %v709, %v711
      %v713 = vrot.slane %v403, 2
      %v714 = vrot.slane %v404, 2
      %v715 = vsel %vm637, %v713, %v714
      %v716 = vrot.slane %v405, 2
      %v717 = vsel %vm637, %v714, %v716
      %718 = vrot.lane.b32.xlu0 %v640, 8
      %v719 = vpop.permute.xlu0 %718
      %720 = vrot.lane.b32.xlu0 %v642, 8
      %v721 = vpop.permute.xlu0 %720
      %722 = vrot.lane.b32.xlu0 %v645, 8
      %v723 = vpop.permute.xlu0 %722
      %724 = vrot.lane.b32.xlu0 %v647, 8
      %v725 = vpop.permute.xlu0 %724
      %726 = vrot.lane.b32.xlu0 %v650, 8
      %v727 = vpop.permute.xlu0 %726
      %728 = vrot.lane.b32.xlu0 %v652, 8
      %v729 = vpop.permute.xlu0 %728
      %730 = vrot.lane.b32.xlu0 %v655, 8
      %v731 = vpop.permute.xlu0 %730
      %732 = vrot.lane.b32.xlu0 %v657, 8
      %v733 = vpop.permute.xlu0 %732
      %734 = vrot.lane.b32.xlu0 %v660, 8
      %v735 = vpop.permute.xlu0 %734
      %736 = vrot.lane.b32.xlu0 %v662, 8
      %v737 = vpop.permute.xlu0 %736
      %738 = vrot.lane.b32.xlu0 %v665, 8
      %v739 = vpop.permute.xlu0 %738
      %740 = vrot.lane.b32.xlu0 %v667, 8
      %v741 = vpop.permute.xlu0 %740
      %742 = vrot.lane.b32.xlu0 %v670, 8
      %v743 = vpop.permute.xlu0 %742
      %744 = vrot.lane.b32.xlu0 %v672, 8
      %v745 = vpop.permute.xlu0 %744
      %746 = vrot.lane.b32.xlu0 %v675, 8
      %v747 = vpop.permute.xlu0 %746
      %748 = vrot.lane.b32.xlu0 %v677, 8
      %v749 = vpop.permute.xlu0 %748
      %750 = vrot.lane.b32.xlu0 %v680, 8
      %v751 = vpop.permute.xlu0 %750
      %752 = vrot.lane.b32.xlu0 %v682, 8
      %v753 = vpop.permute.xlu0 %752
      %754 = vrot.lane.b32.xlu0 %v685, 8
      %v755 = vpop.permute.xlu0 %754
      %756 = vrot.lane.b32.xlu0 %v687, 8
      %v757 = vpop.permute.xlu0 %756
      %758 = vrot.lane.b32.xlu0 %v690, 8
      %v759 = vpop.permute.xlu0 %758
      %760 = vrot.lane.b32.xlu0 %v692, 8
      %v761 = vpop.permute.xlu0 %760
      %762 = vrot.lane.b32.xlu0 %v695, 8
      %v763 = vpop.permute.xlu0 %762
      %764 = vrot.lane.b32.xlu0 %v697, 8
      %v765 = vpop.permute.xlu0 %764
      %766 = vrot.lane.b32.xlu0 %v700, 8
      %v767 = vpop.permute.xlu0 %766
      %768 = vrot.lane.b32.xlu0 %v702, 8
      %v769 = vpop.permute.xlu0 %768
      %770 = vrot.lane.b32.xlu0 %v705, 8
      %v771 = vpop.permute.xlu0 %770
      %772 = vrot.lane.b32.xlu0 %v707, 8
      %v773 = vpop.permute.xlu0 %772
      %774 = vrot.lane.b32.xlu0 %v710, 8
      %v775 = vpop.permute.xlu0 %774
      %776 = vrot.lane.b32.xlu0 %v712, 8
      %v777 = vpop.permute.xlu0 %776
      %778 = vrot.lane.b32.xlu0 %v715, 8
      %v779 = vpop.permute.xlu0 %778
      %780 = vrot.lane.b32.xlu0 %v717, 8
      %v781 = vpop.permute.xlu0 %780
      %816 = vrot.lane.b32.xlu0 %v361, 12
      %v817 = vpop.permute.xlu0 %816
      %818 = vrot.lane.b32.xlu0 %v362, 12
      %v819 = vpop.permute.xlu0 %818
      %820 = vrot.lane.b32.xlu0 %v364, 12
      %v821 = vpop.permute.xlu0 %820
      %822 = vrot.lane.b32.xlu0 %v365, 12
      %v823 = vpop.permute.xlu0 %822
      %824 = vrot.lane.b32.xlu0 %v367, 12
      %v825 = vpop.permute.xlu0 %824
      %826 = vrot.lane.b32.xlu0 %v368, 12
      %v827 = vpop.permute.xlu0 %826
      %828 = vrot.lane.b32.xlu0 %v370, 12
      %v829 = vpop.permute.xlu0 %828
      %830 = vrot.lane.b32.xlu0 %v371, 12
      %v831 = vpop.permute.xlu0 %830
      %832 = vrot.lane.b32.xlu0 %v373, 12
      %v833 = vpop.permute.xlu0 %832
      %834 = vrot.lane.b32.xlu0 %v374, 12
      %v835 = vpop.permute.xlu0 %834
      %836 = vrot.lane.b32.xlu0 %v376, 12
      %v837 = vpop.permute.xlu0 %836
      %838 = vrot.lane.b32.xlu0 %v377, 12
      %v839 = vpop.permute.xlu0 %838
      %840 = vrot.lane.b32.xlu0 %v379, 12
      %v841 = vpop.permute.xlu0 %840
      %842 = vrot.lane.b32.xlu0 %v380, 12
      %v843 = vpop.permute.xlu0 %842
      %844 = vrot.lane.b32.xlu0 %v382, 12
      %v845 = vpop.permute.xlu0 %844
      %846 = vrot.lane.b32.xlu0 %v383, 12
      %v847 = vpop.permute.xlu0 %846
      %848 = vrot.lane.b32.xlu0 %v385, 12
      %v849 = vpop.permute.xlu0 %848
      %850 = vrot.lane.b32.xlu0 %v386, 12
      %v851 = vpop.permute.xlu0 %850
      %852 = vrot.lane.b32.xlu0 %v388, 12
      %v853 = vpop.permute.xlu0 %852
      %854 = vrot.lane.b32.xlu0 %v389, 12
      %v855 = vpop.permute.xlu0 %854
      %856 = vrot.lane.b32.xlu0 %v391, 12
      %v857 = vpop.permute.xlu0 %856
      %858 = vrot.lane.b32.xlu0 %v392, 12
      %v859 = vpop.permute.xlu0 %858
      %860 = vrot.lane.b32.xlu0 %v394, 12
      %v861 = vpop.permute.xlu0 %860
      %862 = vrot.lane.b32.xlu0 %v395, 12
      %v863 = vpop.permute.xlu0 %862
      %864 = vrot.lane.b32.xlu0 %v397, 12
      %v865 = vpop.permute.xlu0 %864
      %866 = vrot.lane.b32.xlu0 %v398, 12
      %v867 = vpop.permute.xlu0 %866
      %868 = vrot.lane.b32.xlu0 %v400, 12
      %v869 = vpop.permute.xlu0 %868
      %870 = vrot.lane.b32.xlu0 %v401, 12
      %v871 = vpop.permute.xlu0 %870
      %872 = vrot.lane.b32.xlu0 %v403, 12
      %v873 = vpop.permute.xlu0 %872
      %874 = vrot.lane.b32.xlu0 %v404, 12
      %v875 = vpop.permute.xlu0 %874
      %876 = vrot.lane.b32.xlu0 %v406, 12
      %v877 = vpop.permute.xlu0 %876
      %878 = vrot.lane.b32.xlu0 %v407, 12
      %v879 = vpop.permute.xlu0 %878
      %v913 = vrot.slane %v406, 1
      %v914 = vrot.slane %v407, 1
      %v915 = vsel %vm460, %v913, %v914
      %v916 = vrot.slane %v408, 1
      %v917 = vsel %vm460, %v914, %v916
      %918 = vrot.lane.b32.xlu0 %v468, 16
      %v919 = vpop.permute.xlu0 %918
      %920 = vrot.lane.b32.xlu0 %v470, 16
      %v921 = vpop.permute.xlu0 %920
      %922 = vrot.lane.b32.xlu0 %v473, 16
      %v923 = vpop.permute.xlu0 %922
      %924 = vrot.lane.b32.xlu0 %v475, 16
      %v925 = vpop.permute.xlu0 %924
      %926 = vrot.lane.b32.xlu0 %v478, 16
      %v927 = vpop.permute.xlu0 %926
      %928 = vrot.lane.b32.xlu0 %v480, 16
      %v929 = vpop.permute.xlu0 %928
      %930 = vrot.lane.b32.xlu0 %v483, 16
      %v931 = vpop.permute.xlu0 %930
      %932 = vrot.lane.b32.xlu0 %v485, 16
      %v933 = vpop.permute.xlu0 %932
      %934 = vrot.lane.b32.xlu0 %v488, 16
      %v935 = vpop.permute.xlu0 %934
      %936 = vrot.lane.b32.xlu0 %v490, 16
      %v937 = vpop.permute.xlu0 %936
      %938 = vrot.lane.b32.xlu0 %v493, 16
      %v939 = vpop.permute.xlu0 %938
      %940 = vrot.lane.b32.xlu0 %v495, 16
      %v941 = vpop.permute.xlu0 %940
      %942 = vrot.lane.b32.xlu0 %v498, 16
      %v943 = vpop.permute.xlu0 %942
      %944 = vrot.lane.b32.xlu0 %v500, 16
      %v945 = vpop.permute.xlu0 %944
      %946 = vrot.lane.b32.xlu0 %v503, 16
      %v947 = vpop.permute.xlu0 %946
      %948 = vrot.lane.b32.xlu0 %v505, 16
      %v949 = vpop.permute.xlu0 %948
      %950 = vrot.lane.b32.xlu0 %v508, 16
      %v951 = vpop.permute.xlu0 %950
      %952 = vrot.lane.b32.xlu0 %v510, 16
      %v953 = vpop.permute.xlu0 %952
      %954 = vrot.lane.b32.xlu0 %v513, 16
      %v955 = vpop.permute.xlu0 %954
      %956 = vrot.lane.b32.xlu0 %v515, 16
      %v957 = vpop.permute.xlu0 %956
      %958 = vrot.lane.b32.xlu0 %v518, 16
      %v959 = vpop.permute.xlu0 %958
      %960 = vrot.lane.b32.xlu0 %v520, 16
      %v961 = vpop.permute.xlu0 %960
      %962 = vrot.lane.b32.xlu0 %v523, 16
      %v963 = vpop.permute.xlu0 %962
      %964 = vrot.lane.b32.xlu0 %v525, 16
      %v965 = vpop.permute.xlu0 %964
      %966 = vrot.lane.b32.xlu0 %v528, 16
      %v967 = vpop.permute.xlu0 %966
      %968 = vrot.lane.b32.xlu0 %v530, 16
      %v969 = vpop.permute.xlu0 %968
      %970 = vrot.lane.b32.xlu0 %v533, 16
      %v971 = vpop.permute.xlu0 %970
      %972 = vrot.lane.b32.xlu0 %v535, 16
      %v973 = vpop.permute.xlu0 %972
      %974 = vrot.lane.b32.xlu0 %v538, 16
      %v975 = vpop.permute.xlu0 %974
      %976 = vrot.lane.b32.xlu0 %v540, 16
      %v977 = vpop.permute.xlu0 %976
      %978 = vrot.lane.b32.xlu0 %v915, 16
      %v979 = vpop.permute.xlu0 %978
      %980 = vrot.lane.b32.xlu0 %v917, 16
      %v981 = vpop.permute.xlu0 %980
      %v1014 = vrot.slane %v406, 2
      %v1015 = vrot.slane %v407, 2
      %v1016 = vsel %vm637, %v1014, %v1015
      %v1017 = vrot.slane %v408, 2
      %v1018 = vsel %vm637, %v1015, %v1017
      %1019 = vrot.lane.b32.xlu0 %v645, 20
      %v1020 = vpop.permute.xlu0 %1019
      %1021 = vrot.lane.b32.xlu0 %v647, 20
      %v1022 = vpop.permute.xlu0 %1021
      %1023 = vrot.lane.b32.xlu0 %v650, 20
      %v1024 = vpop.permute.xlu0 %1023
      %1025 = vrot.lane.b32.xlu0 %v652, 20
      %v1026 = vpop.permute.xlu0 %1025
      %1027 = vrot.lane.b32.xlu0 %v655, 20
      %v1028 = vpop.permute.xlu0 %1027
      %1029 = vrot.lane.b32.xlu0 %v657, 20
      %v1030 = vpop.permute.xlu0 %1029
      %1031 = vrot.lane.b32.xlu0 %v660, 20
      %v1032 = vpop.permute.xlu0 %1031
      %1033 = vrot.lane.b32.xlu0 %v662, 20
      %v1034 = vpop.permute.xlu0 %1033
      %1035 = vrot.lane.b32.xlu0 %v665, 20
      %v1036 = vpop.permute.xlu0 %1035
      %1037 = vrot.lane.b32.xlu0 %v667, 20
      %v1038 = vpop.permute.xlu0 %1037
      %1039 = vrot.lane.b32.xlu0 %v670, 20
      %v1040 = vpop.permute.xlu0 %1039
      %1041 = vrot.lane.b32.xlu0 %v672, 20
      %v1042 = vpop.permute.xlu0 %1041
      %1043 = vrot.lane.b32.xlu0 %v675, 20
      %v1044 = vpop.permute.xlu0 %1043
      %1045 = vrot.lane.b32.xlu0 %v677, 20
      %v1046 = vpop.permute.xlu0 %1045
      %1047 = vrot.lane.b32.xlu0 %v680, 20
      %v1048 = vpop.permute.xlu0 %1047
      %1049 = vrot.lane.b32.xlu0 %v682, 20
      %v1050 = vpop.permute.xlu0 %1049
      %1051 = vrot.lane.b32.xlu0 %v685, 20
      %v1052 = vpop.permute.xlu0 %1051
      %1053 = vrot.lane.b32.xlu0 %v687, 20
      %v1054 = vpop.permute.xlu0 %1053
      %1055 = vrot.lane.b32.xlu0 %v690, 20
      %v1056 = vpop.permute.xlu0 %1055
      %1057 = vrot.lane.b32.xlu0 %v692, 20
      %v1058 = vpop.permute.xlu0 %1057
      %1059 = vrot.lane.b32.xlu0 %v695, 20
      %v1060 = vpop.permute.xlu0 %1059
      %1061 = vrot.lane.b32.xlu0 %v697, 20
      %v1062 = vpop.permute.xlu0 %1061
      %1063 = vrot.lane.b32.xlu0 %v700, 20
      %v1064 = vpop.permute.xlu0 %1063
      %1065 = vrot.lane.b32.xlu0 %v702, 20
      %v1066 = vpop.permute.xlu0 %1065
      %1067 = vrot.lane.b32.xlu0 %v705, 20
      %v1068 = vpop.permute.xlu0 %1067
      %1069 = vrot.lane.b32.xlu0 %v707, 20
      %v1070 = vpop.permute.xlu0 %1069
      %1071 = vrot.lane.b32.xlu0 %v710, 20
      %v1072 = vpop.permute.xlu0 %1071
      %1073 = vrot.lane.b32.xlu0 %v712, 20
      %v1074 = vpop.permute.xlu0 %1073
      %1075 = vrot.lane.b32.xlu0 %v715, 20
      %v1076 = vpop.permute.xlu0 %1075
      %1077 = vrot.lane.b32.xlu0 %v717, 20
      %v1078 = vpop.permute.xlu0 %1077
      %1079 = vrot.lane.b32.xlu0 %v1016, 20
      %v1080 = vpop.permute.xlu0 %1079
      %1081 = vrot.lane.b32.xlu0 %v1018, 20
      %v1082 = vpop.permute.xlu0 %1081
      %1117 = vrot.lane.b32.xlu0 %v364, 24
      %v1118 = vpop.permute.xlu0 %1117
      %1119 = vrot.lane.b32.xlu0 %v365, 24
      %v1120 = vpop.permute.xlu0 %1119
      %1121 = vrot.lane.b32.xlu0 %v367, 24
      %v1122 = vpop.permute.xlu0 %1121
      %1123 = vrot.lane.b32.xlu0 %v368, 24
      %v1124 = vpop.permute.xlu0 %1123
      %1125 = vrot.lane.b32.xlu0 %v370, 24
      %v1126 = vpop.permute.xlu0 %1125
      %1127 = vrot.lane.b32.xlu0 %v371, 24
      %v1128 = vpop.permute.xlu0 %1127
      %1129 = vrot.lane.b32.xlu0 %v373, 24
      %v1130 = vpop.permute.xlu0 %1129
      %1131 = vrot.lane.b32.xlu0 %v374, 24
      %v1132 = vpop.permute.xlu0 %1131
      %1133 = vrot.lane.b32.xlu0 %v376, 24
      %v1134 = vpop.permute.xlu0 %1133
      %1135 = vrot.lane.b32.xlu0 %v377, 24
      %v1136 = vpop.permute.xlu0 %1135
      %1137 = vrot.lane.b32.xlu0 %v379, 24
      %v1138 = vpop.permute.xlu0 %1137
      %1139 = vrot.lane.b32.xlu0 %v380, 24
      %v1140 = vpop.permute.xlu0 %1139
      %1141 = vrot.lane.b32.xlu0 %v382, 24
      %v1142 = vpop.permute.xlu0 %1141
      %1143 = vrot.lane.b32.xlu0 %v383, 24
      %v1144 = vpop.permute.xlu0 %1143
      %1145 = vrot.lane.b32.xlu0 %v385, 24
      %v1146 = vpop.permute.xlu0 %1145
      %1147 = vrot.lane.b32.xlu0 %v386, 24
      %v1148 = vpop.permute.xlu0 %1147
      %1149 = vrot.lane.b32.xlu0 %v388, 24
      %v1150 = vpop.permute.xlu0 %1149
      %1151 = vrot.lane.b32.xlu0 %v389, 24
      %v1152 = vpop.permute.xlu0 %1151
      %1153 = vrot.lane.b32.xlu0 %v391, 24
      %v1154 = vpop.permute.xlu0 %1153
      %1155 = vrot.lane.b32.xlu0 %v392, 24
      %v1156 = vpop.permute.xlu0 %1155
      %1157 = vrot.lane.b32.xlu0 %v394, 24
      %v1158 = vpop.permute.xlu0 %1157
      %1159 = vrot.lane.b32.xlu0 %v395, 24
      %v1160 = vpop.permute.xlu0 %1159
      %1161 = vrot.lane.b32.xlu0 %v397, 24
      %v1162 = vpop.permute.xlu0 %1161
      %1163 = vrot.lane.b32.xlu0 %v398, 24
      %v1164 = vpop.permute.xlu0 %1163
      %1165 = vrot.lane.b32.xlu0 %v400, 24
      %v1166 = vpop.permute.xlu0 %1165
      %1167 = vrot.lane.b32.xlu0 %v401, 24
      %v1168 = vpop.permute.xlu0 %1167
      %1169 = vrot.lane.b32.xlu0 %v403, 24
      %v1170 = vpop.permute.xlu0 %1169
      %1171 = vrot.lane.b32.xlu0 %v404, 24
      %v1172 = vpop.permute.xlu0 %1171
      %1173 = vrot.lane.b32.xlu0 %v406, 24
      %v1174 = vpop.permute.xlu0 %1173
      %1175 = vrot.lane.b32.xlu0 %v407, 24
      %v1176 = vpop.permute.xlu0 %1175
      %1177 = vrot.lane.b32.xlu0 %v409, 24
      %v1178 = vpop.permute.xlu0 %1177
      %1179 = vrot.lane.b32.xlu0 %v410, 24
      %v1180 = vpop.permute.xlu0 %1179
      %v1214 = vrot.slane %v409, 1
      %v1215 = vrot.slane %v410, 1
      %v1216 = vsel %vm460, %v1214, %v1215
      %v1217 = vrot.slane %v411, 1
      %v1218 = vsel %vm460, %v1215, %v1217
      %1219 = vrot.lane.b32.xlu0 %v473, 28
      %v1220 = vpop.permute.xlu0 %1219
      %1221 = vrot.lane.b32.xlu0 %v475, 28
      %v1222 = vpop.permute.xlu0 %1221
      %1223 = vrot.lane.b32.xlu0 %v478, 28
      %v1224 = vpop.permute.xlu0 %1223
      %1225 = vrot.lane.b32.xlu0 %v480, 28
      %v1226 = vpop.permute.xlu0 %1225
      %1227 = vrot.lane.b32.xlu0 %v483, 28
      %v1228 = vpop.permute.xlu0 %1227
      %1229 = vrot.lane.b32.xlu0 %v485, 28
      %v1230 = vpop.permute.xlu0 %1229
      %1231 = vrot.lane.b32.xlu0 %v488, 28
      %v1232 = vpop.permute.xlu0 %1231
      %1233 = vrot.lane.b32.xlu0 %v490, 28
      %v1234 = vpop.permute.xlu0 %1233
      %1235 = vrot.lane.b32.xlu0 %v493, 28
      %v1236 = vpop.permute.xlu0 %1235
      %1237 = vrot.lane.b32.xlu0 %v495, 28
      %v1238 = vpop.permute.xlu0 %1237
      %1239 = vrot.lane.b32.xlu0 %v498, 28
      %v1240 = vpop.permute.xlu0 %1239
      %1241 = vrot.lane.b32.xlu0 %v500, 28
      %v1242 = vpop.permute.xlu0 %1241
      %1243 = vrot.lane.b32.xlu0 %v503, 28
      %v1244 = vpop.permute.xlu0 %1243
      %1245 = vrot.lane.b32.xlu0 %v505, 28
      %v1246 = vpop.permute.xlu0 %1245
      %1247 = vrot.lane.b32.xlu0 %v508, 28
      %v1248 = vpop.permute.xlu0 %1247
      %1249 = vrot.lane.b32.xlu0 %v510, 28
      %v1250 = vpop.permute.xlu0 %1249
      %1251 = vrot.lane.b32.xlu0 %v513, 28
      %v1252 = vpop.permute.xlu0 %1251
      %1253 = vrot.lane.b32.xlu0 %v515, 28
      %v1254 = vpop.permute.xlu0 %1253
      %1255 = vrot.lane.b32.xlu0 %v518, 28
      %v1256 = vpop.permute.xlu0 %1255
      %1257 = vrot.lane.b32.xlu0 %v520, 28
      %v1258 = vpop.permute.xlu0 %1257
      %1259 = vrot.lane.b32.xlu0 %v523, 28
      %v1260 = vpop.permute.xlu0 %1259
      %1261 = vrot.lane.b32.xlu0 %v525, 28
      %v1262 = vpop.permute.xlu0 %1261
      %1263 = vrot.lane.b32.xlu0 %v528, 28
      %v1264 = vpop.permute.xlu0 %1263
      %1265 = vrot.lane.b32.xlu0 %v530, 28
      %v1266 = vpop.permute.xlu0 %1265
      %1267 = vrot.lane.b32.xlu0 %v533, 28
      %v1268 = vpop.permute.xlu0 %1267
      %1269 = vrot.lane.b32.xlu0 %v535, 28
      %v1270 = vpop.permute.xlu0 %1269
      %1271 = vrot.lane.b32.xlu0 %v538, 28
      %v1272 = vpop.permute.xlu0 %1271
      %1273 = vrot.lane.b32.xlu0 %v540, 28
      %v1274 = vpop.permute.xlu0 %1273
      %1275 = vrot.lane.b32.xlu0 %v915, 28
      %v1276 = vpop.permute.xlu0 %1275
      %1277 = vrot.lane.b32.xlu0 %v917, 28
      %v1278 = vpop.permute.xlu0 %1277
      %1279 = vrot.lane.b32.xlu0 %v1216, 28
      %v1280 = vpop.permute.xlu0 %1279
      %1281 = vrot.lane.b32.xlu0 %v1218, 28
      %v1282 = vpop.permute.xlu0 %1281
      %v1315 = vrot.slane %v409, 2
      %v1316 = vrot.slane %v410, 2
      %v1317 = vsel %vm637, %v1315, %v1316
      %v1318 = vrot.slane %v411, 2
      %v1319 = vsel %vm637, %v1316, %v1318
      %1320 = vrot.lane.b32.xlu0 %v650, 32
      %v1321 = vpop.permute.xlu0 %1320
      %1322 = vrot.lane.b32.xlu0 %v652, 32
      %v1323 = vpop.permute.xlu0 %1322
      %1324 = vrot.lane.b32.xlu0 %v655, 32
      %v1325 = vpop.permute.xlu0 %1324
      %1326 = vrot.lane.b32.xlu0 %v657, 32
      %v1327 = vpop.permute.xlu0 %1326
      %1328 = vrot.lane.b32.xlu0 %v660, 32
      %v1329 = vpop.permute.xlu0 %1328
      %1330 = vrot.lane.b32.xlu0 %v662, 32
      %v1331 = vpop.permute.xlu0 %1330
      %1332 = vrot.lane.b32.xlu0 %v665, 32
      %v1333 = vpop.permute.xlu0 %1332
      %1334 = vrot.lane.b32.xlu0 %v667, 32
      %v1335 = vpop.permute.xlu0 %1334
      %1336 = vrot.lane.b32.xlu0 %v670, 32
      %v1337 = vpop.permute.xlu0 %1336
      %1338 = vrot.lane.b32.xlu0 %v672, 32
      %v1339 = vpop.permute.xlu0 %1338
      %1340 = vrot.lane.b32.xlu0 %v675, 32
      %v1341 = vpop.permute.xlu0 %1340
      %1342 = vrot.lane.b32.xlu0 %v677, 32
      %v1343 = vpop.permute.xlu0 %1342
      %1344 = vrot.lane.b32.xlu0 %v680, 32
      %v1345 = vpop.permute.xlu0 %1344
      %1346 = vrot.lane.b32.xlu0 %v682, 32
      %v1347 = vpop.permute.xlu0 %1346
      %1348 = vrot.lane.b32.xlu0 %v685, 32
      %v1349 = vpop.permute.xlu0 %1348
      %1350 = vrot.lane.b32.xlu0 %v687, 32
      %v1351 = vpop.permute.xlu0 %1350
      %1352 = vrot.lane.b32.xlu0 %v690, 32
      %v1353 = vpop.permute.xlu0 %1352
      %1354 = vrot.lane.b32.xlu0 %v692, 32
      %v1355 = vpop.permute.xlu0 %1354
      %1356 = vrot.lane.b32.xlu0 %v695, 32
      %v1357 = vpop.permute.xlu0 %1356
      %1358 = vrot.lane.b32.xlu0 %v697, 32
      %v1359 = vpop.permute.xlu0 %1358
      %1360 = vrot.lane.b32.xlu0 %v700, 32
      %v1361 = vpop.permute.xlu0 %1360
      %1362 = vrot.lane.b32.xlu0 %v702, 32
      %v1363 = vpop.permute.xlu0 %1362
      %1364 = vrot.lane.b32.xlu0 %v705, 32
      %v1365 = vpop.permute.xlu0 %1364
      %1366 = vrot.lane.b32.xlu0 %v707, 32
      %v1367 = vpop.permute.xlu0 %1366
      %1368 = vrot.lane.b32.xlu0 %v710, 32
      %v1369 = vpop.permute.xlu0 %1368
      %1370 = vrot.lane.b32.xlu0 %v712, 32
      %v1371 = vpop.permute.xlu0 %1370
      %1372 = vrot.lane.b32.xlu0 %v715, 32
      %v1373 = vpop.permute.xlu0 %1372
      %1374 = vrot.lane.b32.xlu0 %v717, 32
      %v1375 = vpop.permute.xlu0 %1374
      %1376 = vrot.lane.b32.xlu0 %v1016, 32
      %v1377 = vpop.permute.xlu0 %1376
      %1378 = vrot.lane.b32.xlu0 %v1018, 32
      %v1379 = vpop.permute.xlu0 %1378
      %1380 = vrot.lane.b32.xlu0 %v1317, 32
      %v1381 = vpop.permute.xlu0 %1380
      %1382 = vrot.lane.b32.xlu0 %v1319, 32
      %v1383 = vpop.permute.xlu0 %1382
      %v1416 = vsel %vm269, %v358, %v542
      %v1417 = vsel %vm269, %v359, %v544
      %v1418 = vsel %vm269, %v361, %v546
      %v1419 = vsel %vm269, %v362, %v548
      %v1420 = vsel %vm269, %v364, %v550
      %v1421 = vsel %vm269, %v365, %v552
      %v1422 = vsel %vm269, %v367, %v554
      %v1423 = vsel %vm269, %v368, %v556
      %v1424 = vsel %vm269, %v370, %v558
      %v1425 = vsel %vm269, %v371, %v560
      %v1426 = vsel %vm269, %v373, %v562
      %v1427 = vsel %vm269, %v374, %v564
      %v1428 = vsel %vm269, %v376, %v566
      %v1429 = vsel %vm269, %v377, %v568
      %v1430 = vsel %vm269, %v379, %v570
      %v1431 = vsel %vm269, %v380, %v572
      %v1432 = vsel %vm269, %v382, %v574
      %v1433 = vsel %vm269, %v383, %v576
      %v1434 = vsel %vm269, %v385, %v578
      %v1435 = vsel %vm269, %v386, %v580
      %v1436 = vsel %vm269, %v388, %v582
      %v1437 = vsel %vm269, %v389, %v584
      %v1438 = vsel %vm269, %v391, %v586
      %v1439 = vsel %vm269, %v392, %v588
      %v1440 = vsel %vm269, %v394, %v590
      %v1441 = vsel %vm269, %v395, %v592
      %v1442 = vsel %vm269, %v397, %v594
      %v1443 = vsel %vm269, %v398, %v596
      %v1444 = vsel %vm269, %v400, %v598
      %v1445 = vsel %vm269, %v401, %v600
      %v1446 = vsel %vm269, %v403, %v602
      %v1447 = vsel %vm269, %v404, %v604
      %vm1448 = vcmask 64512
      %v1449 = vsel %vm1448, %v1416, %v719
      %v1450 = vsel %vm1448, %v1417, %v721
      %v1451 = vsel %vm1448, %v1418, %v723
      %v1452 = vsel %vm1448, %v1419, %v725
      %v1453 = vsel %vm1448, %v1420, %v727
      %v1454 = vsel %vm1448, %v1421, %v729
      %v1455 = vsel %vm1448, %v1422, %v731
      %v1456 = vsel %vm1448, %v1423, %v733
      %v1457 = vsel %vm1448, %v1424, %v735
      %v1458 = vsel %vm1448, %v1425, %v737
      %v1459 = vsel %vm1448, %v1426, %v739
      %v1460 = vsel %vm1448, %v1427, %v741
      %v1461 = vsel %vm1448, %v1428, %v743
      %v1462 = vsel %vm1448, %v1429, %v745
      %v1463 = vsel %vm1448, %v1430, %v747
      %v1464 = vsel %vm1448, %v1431, %v749
      %v1465 = vsel %vm1448, %v1432, %v751
      %v1466 = vsel %vm1448, %v1433, %v753
      %v1467 = vsel %vm1448, %v1434, %v755
      %v1468 = vsel %vm1448, %v1435, %v757
      %v1469 = vsel %vm1448, %v1436, %v759
      %v1470 = vsel %vm1448, %v1437, %v761
      %v1471 = vsel %vm1448, %v1438, %v763
      %v1472 = vsel %vm1448, %v1439, %v765
      %v1473 = vsel %vm1448, %v1440, %v767
      %v1474 = vsel %vm1448, %v1441, %v769
      %v1475 = vsel %vm1448, %v1442, %v771
      %v1476 = vsel %vm1448, %v1443, %v773
      %v1477 = vsel %vm1448, %v1444, %v775
      %v1478 = vsel %vm1448, %v1445, %v777
      %v1479 = vsel %vm1448, %v1446, %v779
      %v1480 = vsel %vm1448, %v1447, %v781
      %vm1481 = vcmask 97280
      %v1482 = vsel %vm1481, %v1449, %v817
      %v1483 = vsel %vm1481, %v1450, %v819
      %v1484 = vsel %vm1481, %v1451, %v821
      %v1485 = vsel %vm1481, %v1452, %v823
      %v1486 = vsel %vm1481, %v1453, %v825
      %v1487 = vsel %vm1481, %v1454, %v827
      %v1488 = vsel %vm1481, %v1455, %v829
      %v1489 = vsel %vm1481, %v1456, %v831
      %v1490 = vsel %vm1481, %v1457, %v833
      %v1491 = vsel %vm1481, %v1458, %v835
      %v1492 = vsel %vm1481, %v1459, %v837
      %v1493 = vsel %vm1481, %v1460, %v839
      %v1494 = vsel %vm1481, %v1461, %v841
      %v1495 = vsel %vm1481, %v1462, %v843
      %v1496 = vsel %vm1481, %v1463, %v845
      %v1497 = vsel %vm1481, %v1464, %v847
      %v1498 = vsel %vm1481, %v1465, %v849
      %v1499 = vsel %vm1481, %v1466, %v851
      %v1500 = vsel %vm1481, %v1467, %v853
      %v1501 = vsel %vm1481, %v1468, %v855
      %v1502 = vsel %vm1481, %v1469, %v857
      %v1503 = vsel %vm1481, %v1470, %v859
      %v1504 = vsel %vm1481, %v1471, %v861
      %v1505 = vsel %vm1481, %v1472, %v863
      %v1506 = vsel %vm1481, %v1473, %v865
      %v1507 = vsel %vm1481, %v1474, %v867
      %v1508 = vsel %vm1481, %v1475, %v869
      %v1509 = vsel %vm1481, %v1476, %v871
      %v1510 = vsel %vm1481, %v1477, %v873
      %v1511 = vsel %vm1481, %v1478, %v875
      %v1512 = vsel %vm1481, %v1479, %v877
      %v1513 = vsel %vm1481, %v1480, %v879
      %vm1514 = vcmask 130048
      %v1515 = vsel %vm1514, %v1482, %v919
      %v1516 = vsel %vm1514, %v1483, %v921
      %v1517 = vsel %vm1514, %v1484, %v923
      %v1518 = vsel %vm1514, %v1485, %v925
      %v1519 = vsel %vm1514, %v1486, %v927
      %v1520 = vsel %vm1514, %v1487, %v929
      %v1521 = vsel %vm1514, %v1488, %v931
      %v1522 = vsel %vm1514, %v1489, %v933
      %v1523 = vsel %vm1514, %v1490, %v935
      %v1524 = vsel %vm1514, %v1491, %v937
      %v1525 = vsel %vm1514, %v1492, %v939
      %v1526 = vsel %vm1514, %v1493, %v941
      %v1527 = vsel %vm1514, %v1494, %v943
      %v1528 = vsel %vm1514, %v1495, %v945
      %v1529 = vsel %vm1514, %v1496, %v947
      %v1530 = vsel %vm1514, %v1497, %v949
      %v1531 = vsel %vm1514, %v1498, %v951
      %v1532 = vsel %vm1514, %v1499, %v953
      %v1533 = vsel %vm1514, %v1500, %v955
      %v1534 = vsel %vm1514, %v1501, %v957
      %v1535 = vsel %vm1514, %v1502, %v959
      %v1536 = vsel %vm1514, %v1503, %v961
      %v1537 = vsel %vm1514, %v1504, %v963
      %v1538 = vsel %vm1514, %v1505, %v965
      %v1539 = vsel %vm1514, %v1506, %v967
      %v1540 = vsel %vm1514, %v1507, %v969
      %v1541 = vsel %vm1514, %v1508, %v971
      %v1542 = vsel %vm1514, %v1509, %v973
      %v1543 = vsel %vm1514, %v1510, %v975
      %v1544 = vsel %vm1514, %v1511, %v977
      %v1545 = vsel %vm1514, %v1512, %v979
      %v1546 = vsel %vm1514, %v1513, %v981
      %vm1547 = vcmask 162816
      %v1548 = vsel %vm1547, %v1515, %v1020
      %v1549 = vsel %vm1547, %v1516, %v1022
      %v1550 = vsel %vm1547, %v1517, %v1024
      %v1551 = vsel %vm1547, %v1518, %v1026
      %v1552 = vsel %vm1547, %v1519, %v1028
      %v1553 = vsel %vm1547, %v1520, %v1030
      %v1554 = vsel %vm1547, %v1521, %v1032
      %v1555 = vsel %vm1547, %v1522, %v1034
      %v1556 = vsel %vm1547, %v1523, %v1036
      %v1557 = vsel %vm1547, %v1524, %v1038
      %v1558 = vsel %vm1547, %v1525, %v1040
      %v1559 = vsel %vm1547, %v1526, %v1042
      %v1560 = vsel %vm1547, %v1527, %v1044
      %v1561 = vsel %vm1547, %v1528, %v1046
      %v1562 = vsel %vm1547, %v1529, %v1048
      %v1563 = vsel %vm1547, %v1530, %v1050
      %v1564 = vsel %vm1547, %v1531, %v1052
      %v1565 = vsel %vm1547, %v1532, %v1054
      %v1566 = vsel %vm1547, %v1533, %v1056
      %v1567 = vsel %vm1547, %v1534, %v1058
      %v1568 = vsel %vm1547, %v1535, %v1060
      %v1569 = vsel %vm1547, %v1536, %v1062
      %v1570 = vsel %vm1547, %v1537, %v1064
      %v1571 = vsel %vm1547, %v1538, %v1066
      %v1572 = vsel %vm1547, %v1539, %v1068
      %v1573 = vsel %vm1547, %v1540, %v1070
      %v1574 = vsel %vm1547, %v1541, %v1072
      %v1575 = vsel %vm1547, %v1542, %v1074
      %v1576 = vsel %vm1547, %v1543, %v1076
      %v1577 = vsel %vm1547, %v1544, %v1078
      %v1578 = vsel %vm1547, %v1545, %v1080
      %v1579 = vsel %vm1547, %v1546, %v1082
      %vm1580 = vcmask 195584
      %v1581 = vsel %vm1580, %v1548, %v1118
      %v1582 = vsel %vm1580, %v1549, %v1120
      %v1583 = vsel %vm1580, %v1550, %v1122
      %v1584 = vsel %vm1580, %v1551, %v1124
      %v1585 = vsel %vm1580, %v1552, %v1126
      %v1586 = vsel %vm1580, %v1553, %v1128
      %v1587 = vsel %vm1580, %v1554, %v1130
      %v1588 = vsel %vm1580, %v1555, %v1132
      %v1589 = vsel %vm1580, %v1556, %v1134
      %v1590 = vsel %vm1580, %v1557, %v1136
      %v1591 = vsel %vm1580, %v1558, %v1138
      %v1592 = vsel %vm1580, %v1559, %v1140
      %v1593 = vsel %vm1580, %v1560, %v1142
      %v1594 = vsel %vm1580, %v1561, %v1144
      %v1595 = vsel %vm1580, %v1562, %v1146
      %v1596 = vsel %vm1580, %v1563, %v1148
      %v1597 = vsel %vm1580, %v1564, %v1150
      %v1598 = vsel %vm1580, %v1565, %v1152
      %v1599 = vsel %vm1580, %v1566, %v1154
      %v1600 = vsel %vm1580, %v1567, %v1156
      %v1601 = vsel %vm1580, %v1568, %v1158
      %v1602 = vsel %vm1580, %v1569, %v1160
      %v1603 = vsel %vm1580, %v1570, %v1162
      %v1604 = vsel %vm1580, %v1571, %v1164
      %v1605 = vsel %vm1580, %v1572, %v1166
      %v1606 = vsel %vm1580, %v1573, %v1168
      %v1607 = vsel %vm1580, %v1574, %v1170
      %v1608 = vsel %vm1580, %v1575, %v1172
      %v1609 = vsel %vm1580, %v1576, %v1174
      %v1610 = vsel %vm1580, %v1577, %v1176
      %v1611 = vsel %vm1580, %v1578, %v1178
      %v1612 = vsel %vm1580, %v1579, %v1180
      %vm1613 = vcmask 228352
      %v1614 = vsel %vm1613, %v1581, %v1220
      %v1615 = vsel %vm1613, %v1582, %v1222
      %v1616 = vsel %vm1613, %v1583, %v1224
      %v1617 = vsel %vm1613, %v1584, %v1226
      %v1618 = vsel %vm1613, %v1585, %v1228
      %v1619 = vsel %vm1613, %v1586, %v1230
      %v1620 = vsel %vm1613, %v1587, %v1232
      %v1621 = vsel %vm1613, %v1588, %v1234
      %v1622 = vsel %vm1613, %v1589, %v1236
      %v1623 = vsel %vm1613, %v1590, %v1238
      %v1624 = vsel %vm1613, %v1591, %v1240
      %v1625 = vsel %vm1613, %v1592, %v1242
      %v1626 = vsel %vm1613, %v1593, %v1244
      %v1627 = vsel %vm1613, %v1594, %v1246
      %v1628 = vsel %vm1613, %v1595, %v1248
      %v1629 = vsel %vm1613, %v1596, %v1250
      %v1630 = vsel %vm1613, %v1597, %v1252
      %v1631 = vsel %vm1613, %v1598, %v1254
      %v1632 = vsel %vm1613, %v1599, %v1256
      %v1633 = vsel %vm1613, %v1600, %v1258
      %v1634 = vsel %vm1613, %v1601, %v1260
      %v1635 = vsel %vm1613, %v1602, %v1262
      %v1636 = vsel %vm1613, %v1603, %v1264
      %v1637 = vsel %vm1613, %v1604, %v1266
      %v1638 = vsel %vm1613, %v1605, %v1268
      %v1639 = vsel %vm1613, %v1606, %v1270
      %v1640 = vsel %vm1613, %v1607, %v1272
      %v1641 = vsel %vm1613, %v1608, %v1274
      %v1642 = vsel %vm1613, %v1609, %v1276
      %v1643 = vsel %vm1613, %v1610, %v1278
      %v1644 = vsel %vm1613, %v1611, %v1280
      %v1645 = vsel %vm1613, %v1612, %v1282
      %vm1646 = vcmask 261120
      %v1647 = vsel %vm1646, %v1614, %v1321
      %v1648 = vsel %vm1646, %v1615, %v1323
      %v1649 = vsel %vm1646, %v1616, %v1325
      %v1650 = vsel %vm1646, %v1617, %v1327
      %v1651 = vsel %vm1646, %v1618, %v1329
      %v1652 = vsel %vm1646, %v1619, %v1331
      %v1653 = vsel %vm1646, %v1620, %v1333
      %v1654 = vsel %vm1646, %v1621, %v1335
      %v1655 = vsel %vm1646, %v1622, %v1337
      %v1656 = vsel %vm1646, %v1623, %v1339
      %v1657 = vsel %vm1646, %v1624, %v1341
      %v1658 = vsel %vm1646, %v1625, %v1343
      %v1659 = vsel %vm1646, %v1626, %v1345
      %v1660 = vsel %vm1646, %v1627, %v1347
      %v1661 = vsel %vm1646, %v1628, %v1349
      %v1662 = vsel %vm1646, %v1629, %v1351
      %v1663 = vsel %vm1646, %v1630, %v1353
      %v1664 = vsel %vm1646, %v1631, %v1355
      %v1665 = vsel %vm1646, %v1632, %v1357
      %v1666 = vsel %vm1646, %v1633, %v1359
      %v1667 = vsel %vm1646, %v1634, %v1361
      %v1668 = vsel %vm1646, %v1635, %v1363
      %v1669 = vsel %vm1646, %v1636, %v1365
      %v1670 = vsel %vm1646, %v1637, %v1367
      %v1671 = vsel %vm1646, %v1638, %v1369
      %v1672 = vsel %vm1646, %v1639, %v1371
      %v1673 = vsel %vm1646, %v1640, %v1373
      %v1674 = vsel %vm1646, %v1641, %v1375
      %v1675 = vsel %vm1646, %v1642, %v1377
      %v1676 = vsel %vm1646, %v1643, %v1379
      %v1677 = vsel %vm1646, %v1644, %v1381
      %v1678 = vsel %vm1646, %v1645, %v1383
      %v1679 = vpack.c.bf16 %v1648, %v1647
      %v1680 = vpack.c.bf16 %v1650, %v1649
      %v1681 = vpack.c.bf16 %v1652, %v1651
      %v1682 = vpack.c.bf16 %v1654, %v1653
      %v1683 = vpack.c.bf16 %v1656, %v1655
      %v1684 = vpack.c.bf16 %v1658, %v1657
      %v1685 = vpack.c.bf16 %v1660, %v1659
      %v1686 = vpack.c.bf16 %v1662, %v1661
      %v1687 = vpack.c.bf16 %v1664, %v1663
      %v1688 = vpack.c.bf16 %v1666, %v1665
      %v1689 = vpack.c.bf16 %v1668, %v1667
      %v1690 = vpack.c.bf16 %v1670, %v1669
      %v1691 = vpack.c.bf16 %v1672, %v1671
      %v1692 = vpack.c.bf16 %v1674, %v1673
      %v1693 = vpack.c.bf16 %v1676, %v1675
      %v1694 = vpack.c.bf16 %v1678, %v1677
      %v1695 = vld [vmem:[%s1] sm:$0xf]
      %v1696 = vld [vmem:[%s1 + $0x4] sm:$0xf]
      %v1697 = vld [vmem:[%s1 + $0x8] sm:$0xf]
      %v1698 = vld [vmem:[%s1 + $0xc] sm:$0xf]
      %v1699 = vld [vmem:[%s1 + $0x10] sm:$0x3]
      %v1705 = vunpack.c.l.b16 %v1695
      %v1706 = vunpack.c.l.b16 %v1696
      %v1707 = vunpack.c.l.b16 %v1697
      %v1708 = vunpack.c.l.b16 %v1698
      %v1709 = vunpack.c.l.b16 %v1699
      %v1710 = vpack.c.b16 %v1706, %v1705
      %v1711 = vpack.c.b16 %v1708, %v1707
      %v1712 = vpack.c.b16 %v1709, %v1709
      %vm1715 = vcmask 293888
      %v1717 = vsel %vm1715, %v1679, 0
      %v1720 = vsel %vm1715, %v1680, 0
      %v1723 = vsel %vm1715, %v1681, 0
      %v1726 = vsel %vm1715, %v1682, 0
      %v1729 = vsel %vm1715, %v1683, 0
      %v1732 = vsel %vm1715, %v1684, 0
      %v1735 = vsel %vm1715, %v1685, 0
      %v1738 = vsel %vm1715, %v1686, 0
      %v1741 = vsel %vm1715, %v1687, 0
      %v1744 = vsel %vm1715, %v1688, 0
      %v1747 = vsel %vm1715, %v1689, 0
      %v1750 = vsel %vm1715, %v1690, 0
      %v1753 = vsel %vm1715, %v1691, 0
      %v1756 = vsel %vm1715, %v1692, 0
      %v1759 = vsel %vm1715, %v1693, 0
      %v1762 = vsel %vm1715, %v1694, 0
      %vm1764 = vcmask 1041408
      %v1766 = vsel %vm1764, %v1712, 0
      %1768 = vmatprep.subr.bf16.mxu0 0
      %1769 = vmatpush1.bf16.msra.mxu0 %v1710
      %1770 = vmatprep.subr.bf16.mxu0 0
      %1771 = vmatpush1.bf16.msra.mxu0 %v1711
      %1772 = vmatprep.subr.bf16.mxu0 0
      %1773 = vmatpush1.bf16.msra.mxu0 %v1766
      %1774 = vmatprep.subr.bf16.mxu0 0
      %1775 = vmatpush1.bf16.msra.mxu0 0
      %1776 = vmatprep.subr.bf16.mxu0 0
      %1777 = vmatpush1.bf16.msra.mxu0 0
      %1778 = vmatprep.subr.bf16.mxu0 0
      %1779 = vmatpush1.bf16.msra.mxu0 0
      %1780 = vmatprep.subr.bf16.mxu0 0
      %1781 = vmatpush1.bf16.msra.mxu0 0
      %1782 = vmatprep.subr.bf16.mxu0 0
      %1783 = vmatpush1.bf16.msra.mxu0 0
      %1784 = vmatprep.subr.bf16.mxu0 0
      %1785 = vmatpush1.bf16.msra.mxu0 0
      %1786 = vmatprep.subr.bf16.mxu0 0
      %1787 = vmatpush1.bf16.msra.mxu0 0
      %1788 = vmatprep.subr.bf16.mxu0 0
      %1789 = vmatpush1.bf16.msra.mxu0 0
      %1790 = vmatprep.subr.bf16.mxu0 0
      %1791 = vmatpush1.bf16.msra.mxu0 0
      %1792 = vmatprep.subr.bf16.mxu0 0
      %1793 = vmatpush1.bf16.msra.mxu0 0
      %1794 = vmatprep.subr.bf16.mxu0 0
      %1795 = vmatpush1.bf16.msra.mxu0 0
      %1796 = vmatprep.subr.bf16.mxu0 0
      %1797 = vmatpush1.bf16.msra.mxu0 0
      %1798 = vmatprep.subr.bf16.mxu0 0
      %1799 = vmatpush1.bf16.msra.mxu0 0
      %1800 = vmatprep.mubr.bf16.mxu0 0
      %1801 = vmatmul.mubr.bf16.gmra.mrb[0].mxu0 %v1717
      %v1802 = vpop.f32.mrb[0].mxu0
      %v1803 = vadd.f32 0.0, %v1802
      %v1804 = vpop.f32.mrb[0].mxu0
      %v1805 = vpop.f32.mrb[0].mxu0
      %v1806 = vadd.f32 0.0, %v1805
      %v1807 = vpop.f32.mrb[0].mxu0
      %1808 = vmatprep.mubr.bf16.mxu0 0
      %1809 = vmatmul.mubr.bf16.gmra.mrb[0].mxu0 %v1720
      %v1810 = vpop.f32.mrb[0].mxu0
      %v1811 = vadd.f32 0.0, %v1810
      %v1812 = vpop.f32.mrb[0].mxu0
      %v1813 = vpop.f32.mrb[0].mxu0
      %v1814 = vadd.f32 0.0, %v1813
      %v1815 = vpop.f32.mrb[0].mxu0
      %1816 = vmatprep.mubr.bf16.mxu0 0
      %1817 = vmatmul.mubr.bf16.gmra.mrb[0].mxu0 %v1723
      %v1818 = vpop.f32.mrb[0].mxu0
      %v1819 = vadd.f32 0.0, %v1818
      %v1820 = vpop.f32.mrb[0].mxu0
      %v1821 = vpop.f32.mrb[0].mxu0
      %v1822 = vadd.f32 0.0, %v1821
      %v1823 = vpop.f32.mrb[0].mxu0
      %1824 = vmatprep.mubr.bf16.mxu0 0
      %1825 = vmatmul.mubr.bf16.gmra.mrb[0].mxu0 %v1726
      %v1826 = vpop.f32.mrb[0].mxu0
      %v1827 = vadd.f32 0.0, %v1826
      %v1828 = vpop.f32.mrb[0].mxu0
      %v1829 = vpop.f32.mrb[0].mxu0
      %v1830 = vadd.f32 0.0, %v1829
      %v1831 = vpop.f32.mrb[0].mxu0
      %1832 = vmatprep.mubr.bf16.mxu0 0
      %1833 = vmatmul.mubr.bf16.gmra.mrb[0].mxu0 %v1729
      %v1834 = vpop.f32.mrb[0].mxu0
      %v1835 = vadd.f32 0.0, %v1834
      %v1836 = vpop.f32.mrb[0].mxu0
      %v1837 = vpop.f32.mrb[0].mxu0
      %v1838 = vadd.f32 0.0, %v1837
      %v1839 = vpop.f32.mrb[0].mxu0
      %1840 = vmatprep.mubr.bf16.mxu0 0
      %1841 = vmatmul.mubr.bf16.gmra.mrb[0].mxu0 %v1732
      %v1842 = vpop.f32.mrb[0].mxu0
      %v1843 = vadd.f32 0.0, %v1842
      %v1844 = vpop.f32.mrb[0].mxu0
      %v1845 = vpop.f32.mrb[0].mxu0
      %v1846 = vadd.f32 0.0, %v1845
      %v1847 = vpop.f32.mrb[0].mxu0
      %1848 = vmatprep.mubr.bf16.mxu0 0
      %1849 = vmatmul.mubr.bf16.gmra.mrb[0].mxu0 %v1735
      %v1850 = vpop.f32.mrb[0].mxu0
      %v1851 = vadd.f32 0.0, %v1850
      %v1852 = vpop.f32.mrb[0].mxu0
      %v1853 = vpop.f32.mrb[0].mxu0
      %v1854 = vadd.f32 0.0, %v1853
      %v1855 = vpop.f32.mrb[0].mxu0
      %1856 = vmatprep.mubr.bf16.mxu0 0
      %1857 = vmatmul.mubr.bf16.gmra.mrb[0].mxu0 %v1738
      %v1858 = vpop.f32.mrb[0].mxu0
      %v1859 = vadd.f32 0.0, %v1858
      %v1860 = vpop.f32.mrb[0].mxu0
      %v1861 = vpop.f32.mrb[0].mxu0
      %v1862 = vadd.f32 0.0, %v1861
      %v1863 = vpop.f32.mrb[0].mxu0
      %1864 = vmatprep.mubr.bf16.mxu0 0
      %1865 = vmatmul.mubr.bf16.gmra.mrb[0].mxu0 %v1741
      %v1866 = vpop.f32.mrb[0].mxu0
      %v1867 = vadd.f32 0.0, %v1866
      %v1868 = vpop.f32.mrb[0].mxu0
      %v1869 = vpop.f32.mrb[0].mxu0
      %v1870 = vadd.f32 0.0, %v1869
      %v1871 = vpop.f32.mrb[0].mxu0
      %1872 = vmatprep.mubr.bf16.mxu0 0
      %1873 = vmatmul.mubr.bf16.gmra.mrb[0].mxu0 %v1744
      %v1874 = vpop.f32.mrb[0].mxu0
      %v1875 = vadd.f32 0.0, %v1874
      %v1876 = vpop.f32.mrb[0].mxu0
      %v1877 = vpop.f32.mrb[0].mxu0
      %v1878 = vadd.f32 0.0, %v1877
      %v1879 = vpop.f32.mrb[0].mxu0
      %1880 = vmatprep.mubr.bf16.mxu0 0
      %1881 = vmatmul.mubr.bf16.gmra.mrb[0].mxu0 %v1747
      %v1882 = vpop.f32.mrb[0].mxu0
      %v1883 = vadd.f32 0.0, %v1882
      %v1884 = vpop.f32.mrb[0].mxu0
      %v1885 = vpop.f32.mrb[0].mxu0
      %v1886 = vadd.f32 0.0, %v1885
      %v1887 = vpop.f32.mrb[0].mxu0
      %1888 = vmatprep.mubr.bf16.mxu0 0
      %1889 = vmatmul.mubr.bf16.gmra.mrb[0].mxu0 %v1750
      %v1890 = vpop.f32.mrb[0].mxu0
      %v1891 = vadd.f32 0.0, %v1890
      %v1892 = vpop.f32.mrb[0].mxu0
      %v1893 = vpop.f32.mrb[0].mxu0
      %v1894 = vadd.f32 0.0, %v1893
      %v1895 = vpop.f32.mrb[0].mxu0
      %1896 = vmatprep.mubr.bf16.mxu0 0
      %1897 = vmatmul.mubr.bf16.gmra.mrb[0].mxu0 %v1753
      %v1898 = vpop.f32.mrb[0].mxu0
      %v1899 = vadd.f32 0.0, %v1898
      %v1900 = vpop.f32.mrb[0].mxu0
      %v1901 = vpop.f32.mrb[0].mxu0
      %v1902 = vadd.f32 0.0, %v1901
      %v1903 = vpop.f32.mrb[0].mxu0
      %1904 = vmatprep.mubr.bf16.mxu0 0
      %1905 = vmatmul.mubr.bf16.gmra.mrb[0].mxu0 %v1756
      %v1906 = vpop.f32.mrb[0].mxu0
      %v1907 = vadd.f32 0.0, %v1906
      %v1908 = vpop.f32.mrb[0].mxu0
      %v1909 = vpop.f32.mrb[0].mxu0
      %v1910 = vadd.f32 0.0, %v1909
      %v1911 = vpop.f32.mrb[0].mxu0
      %1912 = vmatprep.mubr.bf16.mxu0 0
      %1913 = vmatmul.mubr.bf16.gmra.mrb[0].mxu0 %v1759
      %v1914 = vpop.f32.mrb[0].mxu0
      %v1915 = vadd.f32 0.0, %v1914
      %v1916 = vpop.f32.mrb[0].mxu0
      %v1917 = vpop.f32.mrb[0].mxu0
      %v1918 = vadd.f32 0.0, %v1917
      %v1919 = vpop.f32.mrb[0].mxu0
      %1920 = vmatprep.mubr.bf16.mxu0 0
      %1921 = vmatmul.mubr.bf16.gmra.mrb[0].mxu0 %v1762
      %v1922 = vpop.f32.mrb[0].mxu0
      %v1923 = vadd.f32 0.0, %v1922
      %v1924 = vpop.f32.mrb[0].mxu0
      %v1925 = vpop.f32.mrb[0].mxu0
      %v1926 = vadd.f32 0.0, %v1925
      %v1927 = vpop.f32.mrb[0].mxu0
      %1928 = vdwg.mxu0
      %v1929 = vsel %vm1448, %v1803, 0.0
      %v1930 = vsel %vm1448, %v1806, 0.0
      %v1931 = vadd.f32 %v1929, %v1930
      %v1932 = vsel %vm1448, %v1811, 0.0
      %v1933 = vadd.f32 %v1931, %v1932
      %v1934 = vsel %vm1448, %v1814, 0.0
      %v1935 = vadd.f32 %v1933, %v1934
      %v1936 = vsel %vm1448, %v1819, 0.0
      %v1937 = vadd.f32 %v1935, %v1936
      %v1938 = vsel %vm1448, %v1822, 0.0
      %v1939 = vadd.f32 %v1937, %v1938
      %v1940 = vsel %vm1448, %v1827, 0.0
      %v1941 = vadd.f32 %v1939, %v1940
      %v1942 = vsel %vm1448, %v1830, 0.0
      %v1943 = vadd.f32 %v1941, %v1942
      %v1944 = vsel %vm1448, %v1835, 0.0
      %v1945 = vadd.f32 %v1943, %v1944
      %v1946 = vsel %vm1448, %v1838, 0.0
      %v1947 = vadd.f32 %v1945, %v1946
      %v1948 = vsel %vm1448, %v1843, 0.0
      %v1949 = vadd.f32 %v1947, %v1948
      %v1950 = vsel %vm1448, %v1846, 0.0
      %v1951 = vadd.f32 %v1949, %v1950
      %v1952 = vsel %vm1448, %v1851, 0.0
      %v1953 = vadd.f32 %v1951, %v1952
      %v1954 = vsel %vm1448, %v1854, 0.0
      %v1955 = vadd.f32 %v1953, %v1954
      %v1956 = vsel %vm1448, %v1859, 0.0
      %v1957 = vadd.f32 %v1955, %v1956
      %v1958 = vsel %vm1448, %v1862, 0.0
      %v1959 = vadd.f32 %v1957, %v1958
      %v1960 = vsel %vm1448, %v1867, 0.0
      %v1961 = vadd.f32 %v1959, %v1960
      %v1962 = vsel %vm1448, %v1870, 0.0
      %v1963 = vadd.f32 %v1961, %v1962
      %v1964 = vsel %vm1448, %v1875, 0.0
      %v1965 = vadd.f32 %v1963, %v1964
      %v1966 = vsel %vm1448, %v1878, 0.0
      %v1967 = vadd.f32 %v1965, %v1966
      %v1968 = vsel %vm1448, %v1883, 0.0
      %v1969 = vadd.f32 %v1967, %v1968
      %v1970 = vsel %vm1448, %v1886, 0.0
      %v1971 = vadd.f32 %v1969, %v1970
      %v1972 = vsel %vm1448, %v1891, 0.0
      %v1973 = vadd.f32 %v1971, %v1972
      %v1974 = vsel %vm1448, %v1894, 0.0
      %v1975 = vadd.f32 %v1973, %v1974
      %v1976 = vsel %vm1448, %v1899, 0.0
      %v1977 = vadd.f32 %v1975, %v1976
      %v1978 = vsel %vm1448, %v1902, 0.0
      %v1979 = vadd.f32 %v1977, %v1978
      %v1980 = vsel %vm1448, %v1907, 0.0
      %v1981 = vadd.f32 %v1979, %v1980
      %v1982 = vsel %vm1448, %v1910, 0.0
      %v1983 = vadd.f32 %v1981, %v1982
      %v1984 = vsel %vm1448, %v1915, 0.0
      %v1985 = vadd.f32 %v1983, %v1984
      %v1986 = vsel %vm1448, %v1918, 0.0
      %v1987 = vadd.f32 %v1985, %v1986
      %v1988 = vsel %vm1448, %v1923, 0.0
      %v1989 = vadd.f32 %v1987, %v1988
      %v1990 = vsel %vm1448, %v1926, 0.0
      %v1991 = vadd.f32 %v1989, %v1990
      %v1992 = vrot.slane %v1991, 4
      %v1993 = vadd.f32 %v1991, %v1992
      %v1994 = vrot.slane %v1993, 2
      %v1995 = vadd.f32 %v1993, %v1994
      %v1996 = vrot.slane %v1995, 1
      %v1997 = vadd.f32 %v1995, %v1996
      %v1998 = vmul.f32 %v1803, %v1803
      %v1999 = vmul.f32 %v1806, %v1806
      %v2000 = vmul.f32 %v1811, %v1811
      %v2001 = vmul.f32 %v1814, %v1814
      %v2002 = vmul.f32 %v1819, %v1819
      %v2003 = vmul.f32 %v1822, %v1822
      %v2004 = vmul.f32 %v1827, %v1827
      %v2005 = vmul.f32 %v1830, %v1830
      %v2006 = vmul.f32 %v1835, %v1835
      %v2007 = vmul.f32 %v1838, %v1838
      %v2008 = vmul.f32 %v1843, %v1843
      %v2009 = vmul.f32 %v1846, %v1846
      %v2010 = vmul.f32 %v1851, %v1851
      %v2011 = vmul.f32 %v1854, %v1854
      %v2012 = vmul.f32 %v1859, %v1859
      %v2013 = vmul.f32 %v1862, %v1862
      %v2014 = vmul.f32 %v1867, %v1867
      %v2015 = vmul.f32 %v1870, %v1870
      %v2016 = vmul.f32 %v1875, %v1875
      %v2017 = vmul.f32 %v1878, %v1878
      %v2018 = vmul.f32 %v1883, %v1883
      %v2019 = vmul.f32 %v1886, %v1886
      %v2020 = vmul.f32 %v1891, %v1891
      %v2021 = vmul.f32 %v1894, %v1894
      %v2022 = vmul.f32 %v1899, %v1899
      %v2023 = vmul.f32 %v1902, %v1902
      %v2024 = vmul.f32 %v1907, %v1907
      %v2025 = vmul.f32 %v1910, %v1910
      %v2026 = vmul.f32 %v1915, %v1915
      %v2027 = vmul.f32 %v1918, %v1918
      %v2028 = vmul.f32 %v1923, %v1923
      %v2029 = vmul.f32 %v1926, %v1926
      %v2030 = vsel %vm1448, %v1998, 0.0
      %v2031 = vsel %vm1448, %v1999, 0.0
      %v2032 = vadd.f32 %v2030, %v2031
      %v2033 = vsel %vm1448, %v2000, 0.0
      %v2034 = vadd.f32 %v2032, %v2033
      %v2035 = vsel %vm1448, %v2001, 0.0
      %v2036 = vadd.f32 %v2034, %v2035
      %v2037 = vsel %vm1448, %v2002, 0.0
      %v2038 = vadd.f32 %v2036, %v2037
      %v2039 = vsel %vm1448, %v2003, 0.0
      %v2040 = vadd.f32 %v2038, %v2039
      %v2041 = vsel %vm1448, %v2004, 0.0
      %v2042 = vadd.f32 %v2040, %v2041
      %v2043 = vsel %vm1448, %v2005, 0.0
      %v2044 = vadd.f32 %v2042, %v2043
      %v2045 = vsel %vm1448, %v2006, 0.0
      %v2046 = vadd.f32 %v2044, %v2045
      %v2047 = vsel %vm1448, %v2007, 0.0
      %v2048 = vadd.f32 %v2046, %v2047
      %v2049 = vsel %vm1448, %v2008, 0.0
      %v2050 = vadd.f32 %v2048, %v2049
      %v2051 = vsel %vm1448, %v2009, 0.0
      %v2052 = vadd.f32 %v2050, %v2051
      %v2053 = vsel %vm1448, %v2010, 0.0
      %v2054 = vadd.f32 %v2052, %v2053
      %v2055 = vsel %vm1448, %v2011, 0.0
      %v2056 = vadd.f32 %v2054, %v2055
      %v2057 = vsel %vm1448, %v2012, 0.0
      %v2058 = vadd.f32 %v2056, %v2057
      %v2059 = vsel %vm1448, %v2013, 0.0
      %v2060 = vadd.f32 %v2058, %v2059
      %v2061 = vsel %vm1448, %v2014, 0.0
      %v2062 = vadd.f32 %v2060, %v2061
      %v2063 = vsel %vm1448, %v2015, 0.0
      %v2064 = vadd.f32 %v2062, %v2063
      %v2065 = vsel %vm1448, %v2016, 0.0
      %v2066 = vadd.f32 %v2064, %v2065
      %v2067 = vsel %vm1448, %v2017, 0.0
      %v2068 = vadd.f32 %v2066, %v2067
      %v2069 = vsel %vm1448, %v2018, 0.0
      %v2070 = vadd.f32 %v2068, %v2069
      %v2071 = vsel %vm1448, %v2019, 0.0
      %v2072 = vadd.f32 %v2070, %v2071
      %v2073 = vsel %vm1448, %v2020, 0.0
      %v2074 = vadd.f32 %v2072, %v2073
      %v2075 = vsel %vm1448, %v2021, 0.0
      %v2076 = vadd.f32 %v2074, %v2075
      %v2077 = vsel %vm1448, %v2022, 0.0
      %v2078 = vadd.f32 %v2076, %v2077
      %v2079 = vsel %vm1448, %v2023, 0.0
      %v2080 = vadd.f32 %v2078, %v2079
      %v2081 = vsel %vm1448, %v2024, 0.0
      %v2082 = vadd.f32 %v2080, %v2081
      %v2083 = vsel %vm1448, %v2025, 0.0
      %v2084 = vadd.f32 %v2082, %v2083
      %v2085 = vsel %vm1448, %v2026, 0.0
      %v2086 = vadd.f32 %v2084, %v2085
      %v2087 = vsel %vm1448, %v2027, 0.0
      %v2088 = vadd.f32 %v2086, %v2087
      %v2089 = vsel %vm1448, %v2028, 0.0
      %v2090 = vadd.f32 %v2088, %v2089
      %v2091 = vsel %vm1448, %v2029, 0.0
      %v2092 = vadd.f32 %v2090, %v2091
      %v2093 = vrot.slane %v2092, 4
      %v2094 = vadd.f32 %v2092, %v2093
      %v2095 = vrot.slane %v2094, 2
      %v2096 = vadd.f32 %v2094, %v2095
      %v2097 = vrot.slane %v2096, 1
      %v2098 = vadd.f32 %v2096, %v2097
      %vm2099 = vcmask 1040384
      %v2100 = vsel %vm2099, %v1997, %v2098
      %vm2101 = vcmask 58368
      %2102 = vst.msk [vmem:[%s235] sm:$0x3] %vm2101, %v2100
      %2103 = vst.msk [vmem:[%s231] sm:$0xff] %vm1448, %v1803
      %2104 = vst.msk [vmem:[%s231 + $0x8] sm:$0xff] %vm1448, %v1806
      %2105 = vst.msk [vmem:[%s231 + $0x10] sm:$0xff] %vm1448, %v1811
      %2106 = vst.msk [vmem:[%s231 + $0x18] sm:$0xff] %vm1448, %v1814
      %2107 = vst.msk [vmem:[%s231 + $0x20] sm:$0xff] %vm1448, %v1819
      %2108 = vst.msk [vmem:[%s231 + $0x28] sm:$0xff] %vm1448, %v1822
      %2109 = vst.msk [vmem:[%s231 + $0x30] sm:$0xff] %vm1448, %v1827
      %2110 = vst.msk [vmem:[%s231 + $0x38] sm:$0xff] %vm1448, %v1830
      %2111 = vst.msk [vmem:[%s231 + $0x40] sm:$0xff] %vm1448, %v1835
      %2112 = vst.msk [vmem:[%s231 + $0x48] sm:$0xff] %vm1448, %v1838
      %2113 = vst.msk [vmem:[%s231 + $0x50] sm:$0xff] %vm1448, %v1843
      %2114 = vst.msk [vmem:[%s231 + $0x58] sm:$0xff] %vm1448, %v1846
      %2115 = vst.msk [vmem:[%s231 + $0x60] sm:$0xff] %vm1448, %v1851
      %2116 = vst.msk [vmem:[%s231 + $0x68] sm:$0xff] %vm1448, %v1854
      %2117 = vst.msk [vmem:[%s231 + $0x70] sm:$0xff] %vm1448, %v1859
      %2118 = vst.msk [vmem:[%s231 + $0x78] sm:$0xff] %vm1448, %v1862
      %2119 = vst.msk [vmem:[%s231 + $0x80] sm:$0xff] %vm1448, %v1867
      %2120 = vst.msk [vmem:[%s231 + $0x88] sm:$0xff] %vm1448, %v1870
      %2121 = vst.msk [vmem:[%s231 + $0x90] sm:$0xff] %vm1448, %v1875
      %2122 = vst.msk [vmem:[%s231 + $0x98] sm:$0xff] %vm1448, %v1878
      %2123 = vst.msk [vmem:[%s231 + $0xa0] sm:$0xff] %vm1448, %v1883
      %2124 = vst.msk [vmem:[%s231 + $0xa8] sm:$0xff] %vm1448, %v1886
      %2125 = vst.msk [vmem:[%s231 + $0xb0] sm:$0xff] %vm1448, %v1891
      %2126 = vst.msk [vmem:[%s231 + $0xb8] sm:$0xff] %vm1448, %v1894
      %2127 = vst.msk [vmem:[%s231 + $0xc0] sm:$0xff] %vm1448, %v1899
      %2128 = vst.msk [vmem:[%s231 + $0xc8] sm:$0xff] %vm1448, %v1902
      %2129 = vst.msk [vmem:[%s231 + $0xd0] sm:$0xff] %vm1448, %v1907
      %2130 = vst.msk [vmem:[%s231 + $0xd8] sm:$0xff] %vm1448, %v1910
      %2131 = vst.msk [vmem:[%s231 + $0xe0] sm:$0xff] %vm1448, %v1915
      %2132 = vst.msk [vmem:[%s231 + $0xe8] sm:$0xff] %vm1448, %v1918
      %2133 = vst.msk [vmem:[%s231 + $0xf0] sm:$0xff] %vm1448, %v1923
      %2134 = vst.msk [vmem:[%s231 + $0xf8] sm:$0xff] %vm1448, %v1926
      %p2135 = scmp.lt.s32.totalorder %s17, 1
      %s2136 = scalar_select %p2135, %s17, 1
      %s2137 = smul.addr %s2136, 32
      %s2138 = smul.addr %s2137, 8
      %s2139 = scalar_lea.vmem %s4, %s2138
      %p2140 = scmp.lt.s32.totalorder %s17, 1
      %s2141 = scalar_select %p2140, %s17, 1
      %s2142 = smul.addr %s2141, 2
      %s2143 = scalar_lea.vmem %s5, %s2142
      // Predicated region
      $region37: #{double_conv.3} parent=35 // pred_check
        %p2144 = pneg %p124
      $region38: #{double_conv.3} parent=35 // pred_check_branch
        %2146 = sbr.rel (%p2144) target = $region40
      $region39: #{double_conv.3} parent=35 // pred_region
        _
      $region40: #{double_conv.3} parent=35 // pred_fallthru
        _
      // Predicated region
      $region41: #{double_conv.3} parent=35 // pred_check
        %p2147 = pneg %p150
      $region42: #{double_conv.3} parent=35 // pred_check_branch
        %2149 = sbr.rel (%p2147) target = $region44
      $region43: #{double_conv.3} parent=35 // pred_region
        _
      $region44: #{double_conv.3} parent=35 // pred_fallthru
        _
    $region36: #{double_conv.3} parent=5 // pred_fallthru
      _
    %p2150 = scmp.le.s32.totalorder 2, %s12
    // Predicated region
    $region45: #{double_conv.3} parent=5 // pred_check
      %p2151 = pneg %p2150
    $region46: #{double_conv.3} parent=5 // pred_check_branch
      %2153 = sbr.rel (%p2151) target = $region48
    $region47: #{double_conv.3} parent=5 // pred_region
      %s2154 = ssub.s32 %s12, 2
      // Predicated region
      $region49: #{double_conv.3} parent=47 // pred_check
        %p2155 = pneg %p130
      $region50: #{double_conv.3} parent=47 // pred_check_branch
        %2157 = sbr.rel (%p2155) target = $region52
      $region51: #{double_conv.3} parent=47 // pred_region
        %p2158 = scmp.lt.s32.totalorder %s18, 1
        %s2159 = scalar_select %p2158, %s18, 1
        %s2160 = smul.addr %s2159, 32
        %s2161 = smul.addr %s2160, 8
        %s2162 = scalar_lea.vmem %s4, %s2161
      $region52: #{double_conv.3} parent=47 // pred_fallthru
        _
      // Predicated region
      $region53: #{double_conv.3} parent=47 // pred_check
        %p2163 = pneg %p156
      $region54: #{double_conv.3} parent=47 // pred_check_branch
        %2165 = sbr.rel (%p2163) target = $region56
      $region55: #{double_conv.3} parent=47 // pred_region
        %p2166 = scmp.lt.s32.totalorder %s18, 1
        %s2167 = scalar_select %p2166, %s18, 1
        %s2168 = smul.addr %s2167, 2
        %s2169 = scalar_lea.vmem %s5, %s2168
      $region56: #{double_conv.3} parent=47 // pred_fallthru
        _
    $region48: #{double_conv.3} parent=5 // pred_fallthru
      _
  $region6: #{double_conv.3} parent=0 // loop_footer
    %s16 = sadd.s32 1, %s12
  $region7: #{double_conv.3} parent=0 // loop_footer_branch
    %11 = sbr.rel target = $region3
  $region8: #{double_conv.3} parent=0 // loop_exit
    _

</llo_original>
